<compile_context>
chip_gen: v6e
topology: v6e:2x2x1
jax: 0.10.0
libtpu: 0.0.40
codegen_flags: <defaults>
</compile_context>

<pallas_src>
import jax
import jax.numpy as jnp
from jax.experimental import pallas as pl
from jax.experimental.pallas import tpu as pltpu

# ---------------------------------------------------------------------------
# Static geometry fixed by the PyTorch module (3x32x32 -> Conv3x3(64) -> FC 10)
# ---------------------------------------------------------------------------
C_IN = 3
H = W = 32
C_OUT = 64
N_CLS = 10
WP = W + 2                  # padded row width (34)
BAND = H * WP               # spatial band per image incl. 2 dead cols per row (1088)
XLEN = (H + 4) * WP         # flattened padded input length per channel (36*34 = 1224)
KJ = 32                     # im2col rows: 27 taps + 1 ones(bias) row + 4 zero rows
N_CHUNKS = 2                # output-channel chunks (FC-weight pipeline depth)
CH = C_OUT // N_CHUNKS      # 32 channels per chunk

W_DTYPE = jnp.float32       # FC weight storage dtype (bfloat16 halves its DMA)


# ---------------------------------------------------------------------------
# Fused kernel: in-kernel im2col -> conv matmul (+bias) -> ReLU -> FC partials
# ---------------------------------------------------------------------------
def fused_kernel(x_ref, wconv_ref, wfc_ref, fcb_ref, out_ref, patches_ref, acc_ref):
    k = pl.program_id(0)          # output-channel chunk
    b = pl.program_id(1)          # image

    # ---- once per image (k == 0): build im2col^T in VMEM, init accumulator ----
    @pl.when(k == 0)
    def _build_patches():
        xb = x_ref[0]                                           # (3, 1224)
        patches_ref[b] = jnp.zeros((KJ, BAND), jnp.float32)
        for c in range(C_IN):
            xc = xb[c]                                          # (1224,)
            for kh in range(3):
                for kw in range(3):
                    off = WP * (kh + 1) + kw - 1                # static tap offset
                    j = c * 9 + kh * 3 + kw
                    patches_ref[b, j, :] = xc[off:off + BAND]
        patches_ref[b, 27, :] = jnp.ones((BAND,), jnp.float32)  # conv-bias row
        acc_ref[b] = jnp.zeros((N_CLS, BAND), jnp.float32)

    # ---- conv (+ folded bias) + ReLU for this chunk of output channels (MXU) ---
    conv = jnp.dot(wconv_ref[...], patches_ref[b],
                   preferred_element_type=jnp.float32)          # (CH, BAND)
    act = jnp.maximum(conv, 0.0)

    # ---- FC partial: elementwise multiply + channel reduction (VPU) ------------
    wfc = wfc_ref[...].astype(jnp.float32)                      # (N_CLS, CH, BAND)
    acc_ref[b] += jnp.sum(wfc * act[None, :, :], axis=1)        # (N_CLS, BAND)

    # ---- logits (lane reduction + FC bias); final value written at last chunk --
    logits = jnp.sum(acc_ref[b], axis=-1) + fcb_ref[0]          # (N_CLS,)
    out_ref[...] = logits.reshape(1, 1, N_CLS)


def _fused_forward(xflat, wconv, wfc, fcb):
    B = xflat.shape[0]
    cost = pl.CostEstimate(
        flops=2 * B * C_OUT * KJ * BAND + 2 * B * N_CLS * C_OUT * BAND,
        transcendentals=0,
        bytes_accessed=(N_CHUNKS * xflat.size * xflat.dtype.itemsize
                        + wconv.size * wconv.dtype.itemsize
                        + wfc.size * wfc.dtype.itemsize
                        + fcb.size * fcb.dtype.itemsize
                        + B * N_CLS * 4),
    )
    out = pl.pallas_call(
        fused_kernel,
        out_shape=jax.ShapeDtypeStruct((B, 1, N_CLS), jnp.float32),
        grid_spec=pltpu.PrefetchScalarGridSpec(
            num_scalar_prefetch=0,
            grid=(N_CHUNKS, B),
            in_specs=[
                pl.BlockSpec((1, C_IN, XLEN), lambda k, b: (b, 0, 0)),    # input image
                pl.BlockSpec((CH, KJ), lambda k, b: (k, 0)),              # conv weight
                pl.BlockSpec((N_CLS, CH, BAND), lambda k, b: (0, k, 0)),  # FC weight
                pl.BlockSpec((1, N_CLS), lambda k, b: (0, 0)),            # FC bias
            ],
            out_specs=pl.BlockSpec((1, 1, N_CLS), lambda k, b: (b, 0, 0)),
            scratch_shapes=[
                pltpu.VMEM((B, KJ, BAND), jnp.float32),      # im2col^T per image
                pltpu.VMEM((B, N_CLS, BAND), jnp.float32),   # FC lane accumulators
            ],
        ),
        compiler_params=pltpu.CompilerParams(
            dimension_semantics=("arbitrary", "parallel")),
        cost_estimate=cost,
    )(xflat, wconv, wfc, fcb)
    return out.reshape(B, N_CLS)


# ---------------------------------------------------------------------------
# One-time parameter prep (all static layout work lives here, not at runtime)
# ---------------------------------------------------------------------------
def prepare_params(params):
    conv_w = params["conv_w"]                   # (64, 3, 3, 3)  (O, C, KH, KW)
    conv_b = params["conv_b"]                   # (64,)
    fc_w = params["fc_w"]                       # (10, 65536), NCHW-flatten order
    fc_b = params["fc_b"]                       # (10,)

    # Conv weight as an im2col matrix: column order (c, kh, kw); column 27 carries the
    # conv bias (multiplied by the in-kernel "ones" row); columns 28..31 are zero.
    wmat = conv_w.reshape(C_OUT, 27)
    wmat = jnp.concatenate(
        [wmat, conv_b[:, None], jnp.zeros((C_OUT, KJ - 28), conv_w.dtype)], axis=1)

    # FC weight permuted to the kernel's activation layout (o, c, band-position) where
    # band-position = row*34 + (col+1); the two dead columns per row are zero-weighted.
    wfc = fc_w.reshape(N_CLS, C_OUT, H, W)
    wfc = jnp.pad(wfc, ((0, 0), (0, 0), (0, 0), (1, 1)))      # (10, 64, 32, 34)
    wfc = wfc.reshape(N_CLS, C_OUT, BAND).astype(W_DTYPE)

    return {"wconv": wmat, "wfc": wfc, "fcb": fc_b.reshape(1, N_CLS)}


# ---------------------------------------------------------------------------
# Forward pass: the only wrapper work is one small zero-pad of the 24 KiB input.
# ---------------------------------------------------------------------------
@jax.jit
def simple_model_forward(x, p):
    B, c, h, w = x.shape
    assert (c, h, w) == (C_IN, H, W), "fc1 requires a 3x32x32 input"
    xpad = jnp.pad(x, ((0, 0), (0, 0), (2, 2), (1, 1)))        # (B, 3, 36, 34)
    xflat = xpad.reshape(B, C_IN, XLEN)                        # (B, 3, 1224)
    return _fused_forward(xflat, p["wconv"], p["wfc"], p["fcb"])


def init_params(key):
    k1, k2, k3, k4 = jax.random.split(key, 4)
    return {
        "conv_w": jax.random.normal(k1, (C_OUT, C_IN, 3, 3), jnp.float32) * 0.05,
        "conv_b": jax.random.normal(k2, (C_OUT,), jnp.float32) * 0.05,
        "fc_w": jax.random.normal(k3, (N_CLS, C_OUT * H * W), jnp.float32) * 0.01,
        "fc_b": jax.random.normal(k4, (N_CLS,), jnp.float32) * 0.01,
    }


def reference_forward(x, params):
    # Pure-f32 JAX reference (matches the PyTorch module).
    y = jax.lax.conv_general_dilated(
        x, params["conv_w"], window_strides=(1, 1), padding="SAME",
        dimension_numbers=("NCHW", "OIHW", "NCHW"))
    y = y + params["conv_b"].reshape(1, C_OUT, 1, 1)
    y = jnp.maximum(y, 0.0)
    y = y.reshape(y.shape[0], -1)
    return y @ params["fc_w"].T + params["fc_b"]


if __name__ == "__main__":
    key = jax.random.PRNGKey(0)
    kx, kp = jax.random.split(key)
    # fc1 expects 64*32*32 features, so spatial must be 32x32; batch=2, channels=3.
    x = jax.random.normal(kx, (2, C_IN, H, W), jnp.float32)
    params = init_params(kp)
    prepped = prepare_params(params)

    out = simple_model_forward(x, prepped)
    out = jax.block_until_ready(out)

    ref = reference_forward(x, params)
    assert out.shape == (2, N_CLS)
    assert jnp.allclose(out, ref, atol=1e-3, rtol=1e-3), "mismatch vs reference"

    print("KERNEL_OK")
</pallas_src>

<mosaic_0001>
module attributes {stable_mosaic.version = 11 : i64} {
  func.func @fused_kernel(%arg0: i32, %arg1: i32, %arg2: memref<1x3x1224xf32, #tpu.memory_space<vmem>>, %arg3: memref<32x32xf32, #tpu.memory_space<vmem>>, %arg4: memref<10x32x1088xf32, #tpu.memory_space<vmem>>, %arg5: memref<1x10xf32, #tpu.memory_space<vmem>>, %arg6: memref<1x1x10xf32, #tpu.memory_space<vmem>>, %arg7: memref<2x32x1088xf32, #tpu.memory_space<vmem>>, %arg8: memref<2x10x1088xf32, #tpu.memory_space<vmem>>) attributes {dimension_semantics = [#tpu.dimension_semantics<arbitrary>, #tpu.dimension_semantics<parallel>], iteration_bounds = array<i64: 2, 2>, scalar_prefetch = 0 : i64, scratch_operands = 2 : i64, tpu.core_type = #tpu.core_type<tc>, window_params = [{transform_indices = @transform_0, window_bounds = array<i64: 1, 3, 1224>}, {transform_indices = @transform_1, window_bounds = array<i64: 32, 32>}, {transform_indices = @transform_2, window_bounds = array<i64: 10, 32, 1088>}, {pipeline_mode = #tpu.pipeline_mode<synchronous>, transform_indices = @transform_3, window_bounds = array<i64: 1, 10>}, {transform_indices = @transform_4, window_bounds = array<i64: 1, 1, 10>}]} {
    %c0_i32 = arith.constant 0 : i32
    %0 = arith.cmpi eq, %arg0, %c0_i32 : i32
    %1 = arith.extui %0 : i1 to i32
    %c0_i32_0 = arith.constant 0 : i32
    %2 = arith.cmpi ne, %1, %c0_i32_0 : i32
    scf.if %2 {
      %c0_21 = arith.constant 0 : index
      %c0_22 = arith.constant 0 : index
      %c0_23 = arith.constant 0 : index
      %32 = vector.load %arg2[%c0_21, %c0_22, %c0_23] : memref<1x3x1224xf32, #tpu.memory_space<vmem>>, vector<1x3x1224xf32>
      %33 = vector.shape_cast %32 : vector<1x3x1224xf32> to vector<3x1224xf32>
      %cst_24 = arith.constant 0.000000e+00 : f32
      %34 = vector.broadcast %cst_24 : f32 to vector<32x1088xf32>
      %35 = arith.index_cast %arg1 : i32 to index
      %c0_25 = arith.constant 0 : index
      %c0_26 = arith.constant 0 : index
      %36 = vector.load %arg7[%35, %c0_25, %c0_26] : memref<2x32x1088xf32, #tpu.memory_space<vmem>>, vector<1x32x1088xf32>
      %37 = vector.shape_cast %36 : vector<1x32x1088xf32> to vector<32x1088xf32>
      %38 = vector.shape_cast %34 : vector<32x1088xf32> to vector<1x32x1088xf32>
      tpu.vector_store %arg7[%35, %c0_25, %c0_26], %38 {strides = array<i32>} : memref<2x32x1088xf32, #tpu.memory_space<vmem>>, vector<1x32x1088xf32>,
      %39 = vector.extract_strided_slice %33 {offsets = [0, 0], sizes = [1, 1224], strides = [1, 1]} : vector<3x1224xf32> to vector<1x1224xf32>
      %40 = vector.shape_cast %39 : vector<1x1224xf32> to vector<1224xf32>
      %41 = vector.extract_strided_slice %40 {offsets = [33], sizes = [1088], strides = [1]} : vector<1224xf32> to vector<1088xf32>
      %42 = arith.index_cast %arg1 : i32 to index
      %c0_27 = arith.constant 0 : index
      %c0_28 = arith.constant 0 : index
      %43 = vector.load %arg7[%42, %c0_27, %c0_28] : memref<2x32x1088xf32, #tpu.memory_space<vmem>>, vector<1x1x1088xf32>
      %44 = vector.shape_cast %43 : vector<1x1x1088xf32> to vector<1088xf32>
      %45 = vector.shape_cast %41 : vector<1088xf32> to vector<1x1x1088xf32>
      tpu.vector_store %arg7[%42, %c0_27, %c0_28], %45 {strides = array<i32>} : memref<2x32x1088xf32, #tpu.memory_space<vmem>>, vector<1x1x1088xf32>,
      %46 = vector.extract_strided_slice %40 {offsets = [34], sizes = [1088], strides = [1]} : vector<1224xf32> to vector<1088xf32>
      %47 = arith.index_cast %arg1 : i32 to index
      %c1 = arith.constant 1 : index
      %c0_29 = arith.constant 0 : index
      %48 = vector.load %arg7[%47, %c1, %c0_29] : memref<2x32x1088xf32, #tpu.memory_space<vmem>>, vector<1x1x1088xf32>
      %49 = vector.shape_cast %48 : vector<1x1x1088xf32> to vector<1088xf32>
      %50 = vector.shape_cast %46 : vector<1088xf32> to vector<1x1x1088xf32>
      tpu.vector_store %arg7[%47, %c1, %c0_29], %50 {strides = array<i32>} : memref<2x32x1088xf32, #tpu.memory_space<vmem>>, vector<1x1x1088xf32>,
      %51 = vector.extract_strided_slice %40 {offsets = [35], sizes = [1088], strides = [1]} : vector<1224xf32> to vector<1088xf32>
      %52 = arith.index_cast %arg1 : i32 to index
      %c2 = arith.constant 2 : index
      %c0_30 = arith.constant 0 : index
      %53 = vector.load %arg7[%52, %c2, %c0_30] : memref<2x32x1088xf32, #tpu.memory_space<vmem>>, vector<1x1x1088xf32>
      %54 = vector.shape_cast %53 : vector<1x1x1088xf32> to vector<1088xf32>
      %55 = vector.shape_cast %51 : vector<1088xf32> to vector<1x1x1088xf32>
      tpu.vector_store %arg7[%52, %c2, %c0_30], %55 {strides = array<i32>} : memref<2x32x1088xf32, #tpu.memory_space<vmem>>, vector<1x1x1088xf32>,
      %56 = vector.extract_strided_slice %40 {offsets = [67], sizes = [1088], strides = [1]} : vector<1224xf32> to vector<1088xf32>
      %57 = arith.index_cast %arg1 : i32 to index
      %c3 = arith.constant 3 : index
      %c0_31 = arith.constant 0 : index
      %58 = vector.load %arg7[%57, %c3, %c0_31] : memref<2x32x1088xf32, #tpu.memory_space<vmem>>, vector<1x1x1088xf32>
      %59 = vector.shape_cast %58 : vector<1x1x1088xf32> to vector<1088xf32>
      %60 = vector.shape_cast %56 : vector<1088xf32> to vector<1x1x1088xf32>
      tpu.vector_store %arg7[%57, %c3, %c0_31], %60 {strides = array<i32>} : memref<2x32x1088xf32, #tpu.memory_space<vmem>>, vector<1x1x1088xf32>,
      %61 = vector.extract_strided_slice %40 {offsets = [68], sizes = [1088], strides = [1]} : vector<1224xf32> to vector<1088xf32>
      %62 = arith.index_cast %arg1 : i32 to index
      %c4 = arith.constant 4 : index
      %c0_32 = arith.constant 0 : index
      %63 = vector.load %arg7[%62, %c4, %c0_32] : memref<2x32x1088xf32, #tpu.memory_space<vmem>>, vector<1x1x1088xf32>
      %64 = vector.shape_cast %63 : vector<1x1x1088xf32> to vector<1088xf32>
      %65 = vector.shape_cast %61 : vector<1088xf32> to vector<1x1x1088xf32>
      tpu.vector_store %arg7[%62, %c4, %c0_32], %65 {strides = array<i32>} : memref<2x32x1088xf32, #tpu.memory_space<vmem>>, vector<1x1x1088xf32>,
      %66 = vector.extract_strided_slice %40 {offsets = [69], sizes = [1088], strides = [1]} : vector<1224xf32> to vector<1088xf32>
      %67 = arith.index_cast %arg1 : i32 to index
      %c5 = arith.constant 5 : index
      %c0_33 = arith.constant 0 : index
      %68 = vector.load %arg7[%67, %c5, %c0_33] : memref<2x32x1088xf32, #tpu.memory_space<vmem>>, vector<1x1x1088xf32>
      %69 = vector.shape_cast %68 : vector<1x1x1088xf32> to vector<1088xf32>
      %70 = vector.shape_cast %66 : vector<1088xf32> to vector<1x1x1088xf32>
      tpu.vector_store %arg7[%67, %c5, %c0_33], %70 {strides = array<i32>} : memref<2x32x1088xf32, #tpu.memory_space<vmem>>, vector<1x1x1088xf32>,
      %71 = vector.extract_strided_slice %40 {offsets = [101], sizes = [1088], strides = [1]} : vector<1224xf32> to vector<1088xf32>
      %72 = arith.index_cast %arg1 : i32 to index
      %c6 = arith.constant 6 : index
      %c0_34 = arith.constant 0 : index
      %73 = vector.load %arg7[%72, %c6, %c0_34] : memref<2x32x1088xf32, #tpu.memory_space<vmem>>, vector<1x1x1088xf32>
      %74 = vector.shape_cast %73 : vector<1x1x1088xf32> to vector<1088xf32>
      %75 = vector.shape_cast %71 : vector<1088xf32> to vector<1x1x1088xf32>
      tpu.vector_store %arg7[%72, %c6, %c0_34], %75 {strides = array<i32>} : memref<2x32x1088xf32, #tpu.memory_space<vmem>>, vector<1x1x1088xf32>,
      %76 = vector.extract_strided_slice %40 {offsets = [102], sizes = [1088], strides = [1]} : vector<1224xf32> to vector<1088xf32>
      %77 = arith.index_cast %arg1 : i32 to index
      %c7 = arith.constant 7 : index
      %c0_35 = arith.constant 0 : index
      %78 = vector.load %arg7[%77, %c7, %c0_35] : memref<2x32x1088xf32, #tpu.memory_space<vmem>>, vector<1x1x1088xf32>
      %79 = vector.shape_cast %78 : vector<1x1x1088xf32> to vector<1088xf32>
      %80 = vector.shape_cast %76 : vector<1088xf32> to vector<1x1x1088xf32>
      tpu.vector_store %arg7[%77, %c7, %c0_35], %80 {strides = array<i32>} : memref<2x32x1088xf32, #tpu.memory_space<vmem>>, vector<1x1x1088xf32>,
      %81 = vector.extract_strided_slice %40 {offsets = [103], sizes = [1088], strides = [1]} : vector<1224xf32> to vector<1088xf32>
      %82 = arith.index_cast %arg1 : i32 to index
      %c8 = arith.constant 8 : index
      %c0_36 = arith.constant 0 : index
      %83 = vector.load %arg7[%82, %c8, %c0_36] : memref<2x32x1088xf32, #tpu.memory_space<vmem>>, vector<1x1x1088xf32>
      %84 = vector.shape_cast %83 : vector<1x1x1088xf32> to vector<1088xf32>
      %85 = vector.shape_cast %81 : vector<1088xf32> to vector<1x1x1088xf32>
      tpu.vector_store %arg7[%82, %c8, %c0_36], %85 {strides = array<i32>} : memref<2x32x1088xf32, #tpu.memory_space<vmem>>, vector<1x1x1088xf32>,
      %86 = vector.extract_strided_slice %33 {offsets = [1, 0], sizes = [1, 1224], strides = [1, 1]} : vector<3x1224xf32> to vector<1x1224xf32>
      %87 = vector.shape_cast %86 : vector<1x1224xf32> to vector<1224xf32>
      %88 = vector.extract_strided_slice %87 {offsets = [33], sizes = [1088], strides = [1]} : vector<1224xf32> to vector<1088xf32>
      %89 = arith.index_cast %arg1 : i32 to index
      %c9 = arith.constant 9 : index
      %c0_37 = arith.constant 0 : index
      %90 = vector.load %arg7[%89, %c9, %c0_37] : memref<2x32x1088xf32, #tpu.memory_space<vmem>>, vector<1x1x1088xf32>
      %91 = vector.shape_cast %90 : vector<1x1x1088xf32> to vector<1088xf32>
      %92 = vector.shape_cast %88 : vector<1088xf32> to vector<1x1x1088xf32>
      tpu.vector_store %arg7[%89, %c9, %c0_37], %92 {strides = array<i32>} : memref<2x32x1088xf32, #tpu.memory_space<vmem>>, vector<1x1x1088xf32>,
      %93 = vector.extract_strided_slice %87 {offsets = [34], sizes = [1088], strides = [1]} : vector<1224xf32> to vector<1088xf32>
      %94 = arith.index_cast %arg1 : i32 to index
      %c10 = arith.constant 10 : index
      %c0_38 = arith.constant 0 : index
      %95 = vector.load %arg7[%94, %c10, %c0_38] : memref<2x32x1088xf32, #tpu.memory_space<vmem>>, vector<1x1x1088xf32>
      %96 = vector.shape_cast %95 : vector<1x1x1088xf32> to vector<1088xf32>
      %97 = vector.shape_cast %93 : vector<1088xf32> to vector<1x1x1088xf32>
      tpu.vector_store %arg7[%94, %c10, %c0_38], %97 {strides = array<i32>} : memref<2x32x1088xf32, #tpu.memory_space<vmem>>, vector<1x1x1088xf32>,
      %98 = vector.extract_strided_slice %87 {offsets = [35], sizes = [1088], strides = [1]} : vector<1224xf32> to vector<1088xf32>
      %99 = arith.index_cast %arg1 : i32 to index
      %c11 = arith.constant 11 : index
      %c0_39 = arith.constant 0 : index
      %100 = vector.load %arg7[%99, %c11, %c0_39] : memref<2x32x1088xf32, #tpu.memory_space<vmem>>, vector<1x1x1088xf32>
      %101 = vector.shape_cast %100 : vector<1x1x1088xf32> to vector<1088xf32>
      %102 = vector.shape_cast %98 : vector<1088xf32> to vector<1x1x1088xf32>
      tpu.vector_store %arg7[%99, %c11, %c0_39], %102 {strides = array<i32>} : memref<2x32x1088xf32, #tpu.memory_space<vmem>>, vector<1x1x1088xf32>,
      %103 = vector.extract_strided_slice %87 {offsets = [67], sizes = [1088], strides = [1]} : vector<1224xf32> to vector<1088xf32>
      %104 = arith.index_cast %arg1 : i32 to index
      %c12 = arith.constant 12 : index
      %c0_40 = arith.constant 0 : index
      %105 = vector.load %arg7[%104, %c12, %c0_40] : memref<2x32x1088xf32, #tpu.memory_space<vmem>>, vector<1x1x1088xf32>
      %106 = vector.shape_cast %105 : vector<1x1x1088xf32> to vector<1088xf32>
      %107 = vector.shape_cast %103 : vector<1088xf32> to vector<1x1x1088xf32>
      tpu.vector_store %arg7[%104, %c12, %c0_40], %107 {strides = array<i32>} : memref<2x32x1088xf32, #tpu.memory_space<vmem>>, vector<1x1x1088xf32>,
      %108 = vector.extract_strided_slice %87 {offsets = [68], sizes = [1088], strides = [1]} : vector<1224xf32> to vector<1088xf32>
      %109 = arith.index_cast %arg1 : i32 to index
      %c13 = arith.constant 13 : index
      %c0_41 = arith.constant 0 : index
      %110 = vector.load %arg7[%109, %c13, %c0_41] : memref<2x32x1088xf32, #tpu.memory_space<vmem>>, vector<1x1x1088xf32>
      %111 = vector.shape_cast %110 : vector<1x1x1088xf32> to vector<1088xf32>
      %112 = vector.shape_cast %108 : vector<1088xf32> to vector<1x1x1088xf32>
      tpu.vector_store %arg7[%109, %c13, %c0_41], %112 {strides = array<i32>} : memref<2x32x1088xf32, #tpu.memory_space<vmem>>, vector<1x1x1088xf32>,
      %113 = vector.extract_strided_slice %87 {offsets = [69], sizes = [1088], strides = [1]} : vector<1224xf32> to vector<1088xf32>
      %114 = arith.index_cast %arg1 : i32 to index
      %c14 = arith.constant 14 : index
      %c0_42 = arith.constant 0 : index
      %115 = vector.load %arg7[%114, %c14, %c0_42] : memref<2x32x1088xf32, #tpu.memory_space<vmem>>, vector<1x1x1088xf32>
      %116 = vector.shape_cast %115 : vector<1x1x1088xf32> to vector<1088xf32>
      %117 = vector.shape_cast %113 : vector<1088xf32> to vector<1x1x1088xf32>
      tpu.vector_store %arg7[%114, %c14, %c0_42], %117 {strides = array<i32>} : memref<2x32x1088xf32, #tpu.memory_space<vmem>>, vector<1x1x1088xf32>,
      %118 = vector.extract_strided_slice %87 {offsets = [101], sizes = [1088], strides = [1]} : vector<1224xf32> to vector<1088xf32>
      %119 = arith.index_cast %arg1 : i32 to index
      %c15 = arith.constant 15 : index
      %c0_43 = arith.constant 0 : index
      %120 = vector.load %arg7[%119, %c15, %c0_43] : memref<2x32x1088xf32, #tpu.memory_space<vmem>>, vector<1x1x1088xf32>
      %121 = vector.shape_cast %120 : vector<1x1x1088xf32> to vector<1088xf32>
      %122 = vector.shape_cast %118 : vector<1088xf32> to vector<1x1x1088xf32>
      tpu.vector_store %arg7[%119, %c15, %c0_43], %122 {strides = array<i32>} : memref<2x32x1088xf32, #tpu.memory_space<vmem>>, vector<1x1x1088xf32>,
      %123 = vector.extract_strided_slice %87 {offsets = [102], sizes = [1088], strides = [1]} : vector<1224xf32> to vector<1088xf32>
      %124 = arith.index_cast %arg1 : i32 to index
      %c16 = arith.constant 16 : index
      %c0_44 = arith.constant 0 : index
      %125 = vector.load %arg7[%124, %c16, %c0_44] : memref<2x32x1088xf32, #tpu.memory_space<vmem>>, vector<1x1x1088xf32>
      %126 = vector.shape_cast %125 : vector<1x1x1088xf32> to vector<1088xf32>
      %127 = vector.shape_cast %123 : vector<1088xf32> to vector<1x1x1088xf32>
      tpu.vector_store %arg7[%124, %c16, %c0_44], %127 {strides = array<i32>} : memref<2x32x1088xf32, #tpu.memory_space<vmem>>, vector<1x1x1088xf32>,
      %128 = vector.extract_strided_slice %87 {offsets = [103], sizes = [1088], strides = [1]} : vector<1224xf32> to vector<1088xf32>
      %129 = arith.index_cast %arg1 : i32 to index
      %c17 = arith.constant 17 : index
      %c0_45 = arith.constant 0 : index
      %130 = vector.load %arg7[%129, %c17, %c0_45] : memref<2x32x1088xf32, #tpu.memory_space<vmem>>, vector<1x1x1088xf32>
      %131 = vector.shape_cast %130 : vector<1x1x1088xf32> to vector<1088xf32>
      %132 = vector.shape_cast %128 : vector<1088xf32> to vector<1x1x1088xf32>
      tpu.vector_store %arg7[%129, %c17, %c0_45], %132 {strides = array<i32>} : memref<2x32x1088xf32, #tpu.memory_space<vmem>>, vector<1x1x1088xf32>,
      %133 = vector.extract_strided_slice %33 {offsets = [2, 0], sizes = [1, 1224], strides = [1, 1]} : vector<3x1224xf32> to vector<1x1224xf32>
      %134 = vector.shape_cast %133 : vector<1x1224xf32> to vector<1224xf32>
      %135 = vector.extract_strided_slice %134 {offsets = [33], sizes = [1088], strides = [1]} : vector<1224xf32> to vector<1088xf32>
      %136 = arith.index_cast %arg1 : i32 to index
      %c18 = arith.constant 18 : index
      %c0_46 = arith.constant 0 : index
      %137 = vector.load %arg7[%136, %c18, %c0_46] : memref<2x32x1088xf32, #tpu.memory_space<vmem>>, vector<1x1x1088xf32>
      %138 = vector.shape_cast %137 : vector<1x1x1088xf32> to vector<1088xf32>
      %139 = vector.shape_cast %135 : vector<1088xf32> to vector<1x1x1088xf32>
      tpu.vector_store %arg7[%136, %c18, %c0_46], %139 {strides = array<i32>} : memref<2x32x1088xf32, #tpu.memory_space<vmem>>, vector<1x1x1088xf32>,
      %140 = vector.extract_strided_slice %134 {offsets = [34], sizes = [1088], strides = [1]} : vector<1224xf32> to vector<1088xf32>
      %141 = arith.index_cast %arg1 : i32 to index
      %c19 = arith.constant 19 : index
      %c0_47 = arith.constant 0 : index
      %142 = vector.load %arg7[%141, %c19, %c0_47] : memref<2x32x1088xf32, #tpu.memory_space<vmem>>, vector<1x1x1088xf32>
      %143 = vector.shape_cast %142 : vector<1x1x1088xf32> to vector<1088xf32>
      %144 = vector.shape_cast %140 : vector<1088xf32> to vector<1x1x1088xf32>
      tpu.vector_store %arg7[%141, %c19, %c0_47], %144 {strides = array<i32>} : memref<2x32x1088xf32, #tpu.memory_space<vmem>>, vector<1x1x1088xf32>,
      %145 = vector.extract_strided_slice %134 {offsets = [35], sizes = [1088], strides = [1]} : vector<1224xf32> to vector<1088xf32>
      %146 = arith.index_cast %arg1 : i32 to index
      %c20 = arith.constant 20 : index
      %c0_48 = arith.constant 0 : index
      %147 = vector.load %arg7[%146, %c20, %c0_48] : memref<2x32x1088xf32, #tpu.memory_space<vmem>>, vector<1x1x1088xf32>
      %148 = vector.shape_cast %147 : vector<1x1x1088xf32> to vector<1088xf32>
      %149 = vector.shape_cast %145 : vector<1088xf32> to vector<1x1x1088xf32>
      tpu.vector_store %arg7[%146, %c20, %c0_48], %149 {strides = array<i32>} : memref<2x32x1088xf32, #tpu.memory_space<vmem>>, vector<1x1x1088xf32>,
      %150 = vector.extract_strided_slice %134 {offsets = [67], sizes = [1088], strides = [1]} : vector<1224xf32> to vector<1088xf32>
      %151 = arith.index_cast %arg1 : i32 to index
      %c21 = arith.constant 21 : index
      %c0_49 = arith.constant 0 : index
      %152 = vector.load %arg7[%151, %c21, %c0_49] : memref<2x32x1088xf32, #tpu.memory_space<vmem>>, vector<1x1x1088xf32>
      %153 = vector.shape_cast %152 : vector<1x1x1088xf32> to vector<1088xf32>
      %154 = vector.shape_cast %150 : vector<1088xf32> to vector<1x1x1088xf32>
      tpu.vector_store %arg7[%151, %c21, %c0_49], %154 {strides = array<i32>} : memref<2x32x1088xf32, #tpu.memory_space<vmem>>, vector<1x1x1088xf32>,
      %155 = vector.extract_strided_slice %134 {offsets = [68], sizes = [1088], strides = [1]} : vector<1224xf32> to vector<1088xf32>
      %156 = arith.index_cast %arg1 : i32 to index
      %c22 = arith.constant 22 : index
      %c0_50 = arith.constant 0 : index
      %157 = vector.load %arg7[%156, %c22, %c0_50] : memref<2x32x1088xf32, #tpu.memory_space<vmem>>, vector<1x1x1088xf32>
      %158 = vector.shape_cast %157 : vector<1x1x1088xf32> to vector<1088xf32>
      %159 = vector.shape_cast %155 : vector<1088xf32> to vector<1x1x1088xf32>
      tpu.vector_store %arg7[%156, %c22, %c0_50], %159 {strides = array<i32>} : memref<2x32x1088xf32, #tpu.memory_space<vmem>>, vector<1x1x1088xf32>,
      %160 = vector.extract_strided_slice %134 {offsets = [69], sizes = [1088], strides = [1]} : vector<1224xf32> to vector<1088xf32>
      %161 = arith.index_cast %arg1 : i32 to index
      %c23 = arith.constant 23 : index
      %c0_51 = arith.constant 0 : index
      %162 = vector.load %arg7[%161, %c23, %c0_51] : memref<2x32x1088xf32, #tpu.memory_space<vmem>>, vector<1x1x1088xf32>
      %163 = vector.shape_cast %162 : vector<1x1x1088xf32> to vector<1088xf32>
      %164 = vector.shape_cast %160 : vector<1088xf32> to vector<1x1x1088xf32>
      tpu.vector_store %arg7[%161, %c23, %c0_51], %164 {strides = array<i32>} : memref<2x32x1088xf32, #tpu.memory_space<vmem>>, vector<1x1x1088xf32>,
      %165 = vector.extract_strided_slice %134 {offsets = [101], sizes = [1088], strides = [1]} : vector<1224xf32> to vector<1088xf32>
      %166 = arith.index_cast %arg1 : i32 to index
      %c24 = arith.constant 24 : index
      %c0_52 = arith.constant 0 : index
      %167 = vector.load %arg7[%166, %c24, %c0_52] : memref<2x32x1088xf32, #tpu.memory_space<vmem>>, vector<1x1x1088xf32>
      %168 = vector.shape_cast %167 : vector<1x1x1088xf32> to vector<1088xf32>
      %169 = vector.shape_cast %165 : vector<1088xf32> to vector<1x1x1088xf32>
      tpu.vector_store %arg7[%166, %c24, %c0_52], %169 {strides = array<i32>} : memref<2x32x1088xf32, #tpu.memory_space<vmem>>, vector<1x1x1088xf32>,
      %170 = vector.extract_strided_slice %134 {offsets = [102], sizes = [1088], strides = [1]} : vector<1224xf32> to vector<1088xf32>
      %171 = arith.index_cast %arg1 : i32 to index
      %c25 = arith.constant 25 : index
      %c0_53 = arith.constant 0 : index
      %172 = vector.load %arg7[%171, %c25, %c0_53] : memref<2x32x1088xf32, #tpu.memory_space<vmem>>, vector<1x1x1088xf32>
      %173 = vector.shape_cast %172 : vector<1x1x1088xf32> to vector<1088xf32>
      %174 = vector.shape_cast %170 : vector<1088xf32> to vector<1x1x1088xf32>
      tpu.vector_store %arg7[%171, %c25, %c0_53], %174 {strides = array<i32>} : memref<2x32x1088xf32, #tpu.memory_space<vmem>>, vector<1x1x1088xf32>,
      %175 = vector.extract_strided_slice %134 {offsets = [103], sizes = [1088], strides = [1]} : vector<1224xf32> to vector<1088xf32>
      %176 = arith.index_cast %arg1 : i32 to index
      %c26 = arith.constant 26 : index
      %c0_54 = arith.constant 0 : index
      %177 = vector.load %arg7[%176, %c26, %c0_54] : memref<2x32x1088xf32, #tpu.memory_space<vmem>>, vector<1x1x1088xf32>
      %178 = vector.shape_cast %177 : vector<1x1x1088xf32> to vector<1088xf32>
      %179 = vector.shape_cast %175 : vector<1088xf32> to vector<1x1x1088xf32>
      tpu.vector_store %arg7[%176, %c26, %c0_54], %179 {strides = array<i32>} : memref<2x32x1088xf32, #tpu.memory_space<vmem>>, vector<1x1x1088xf32>,
      %cst_55 = arith.constant 1.000000e+00 : f32
      %180 = vector.broadcast %cst_55 : f32 to vector<1088xf32>
      %181 = arith.index_cast %arg1 : i32 to index
      %c27 = arith.constant 27 : index
      %c0_56 = arith.constant 0 : index
      %182 = vector.load %arg7[%181, %c27, %c0_56] : memref<2x32x1088xf32, #tpu.memory_space<vmem>>, vector<1x1x1088xf32>
      %183 = vector.shape_cast %182 : vector<1x1x1088xf32> to vector<1088xf32>
      %184 = vector.shape_cast %180 : vector<1088xf32> to vector<1x1x1088xf32>
      tpu.vector_store %arg7[%181, %c27, %c0_56], %184 {strides = array<i32>} : memref<2x32x1088xf32, #tpu.memory_space<vmem>>, vector<1x1x1088xf32>,
      %cst_57 = arith.constant 0.000000e+00 : f32
      %185 = vector.broadcast %cst_57 : f32 to vector<10x1088xf32>
      %186 = arith.index_cast %arg1 : i32 to index
      %c0_58 = arith.constant 0 : index
      %c0_59 = arith.constant 0 : index
      %187 = vector.load %arg8[%186, %c0_58, %c0_59] : memref<2x10x1088xf32, #tpu.memory_space<vmem>>, vector<1x10x1088xf32>
      %188 = vector.shape_cast %187 : vector<1x10x1088xf32> to vector<10x1088xf32>
      %189 = vector.shape_cast %185 : vector<10x1088xf32> to vector<1x10x1088xf32>
      tpu.vector_store %arg8[%186, %c0_58, %c0_59], %189 {strides = array<i32>} : memref<2x10x1088xf32, #tpu.memory_space<vmem>>, vector<1x10x1088xf32>,
    } else {
    }
    %c0 = arith.constant 0 : index
    %c0_1 = arith.constant 0 : index
    %3 = vector.load %arg3[%c0, %c0_1] : memref<32x32xf32, #tpu.memory_space<vmem>>, vector<32x32xf32>
    %4 = arith.index_cast %arg1 : i32 to index
    %c0_2 = arith.constant 0 : index
    %c0_3 = arith.constant 0 : index
    %5 = vector.load %arg7[%4, %c0_2, %c0_3] : memref<2x32x1088xf32, #tpu.memory_space<vmem>>, vector<1x32x1088xf32>
    %6 = vector.shape_cast %5 : vector<1x32x1088xf32> to vector<32x1088xf32>
    %cst = arith.constant dense<0.000000e+00> : vector<32x1088xf32>
    %7 = tpu.matmul %3, %6, %cst {dimension_numbers = #tpu.dot_dimension_numbers<[1], [0], [0], [1], [0, 0, 1, 1], [], []>} : vector<32x32xf32>, vector<32x1088xf32>, vector<32x1088xf32> -> vector<32x1088xf32>
    %cst_4 = arith.constant 0.000000e+00 : f32
    %8 = vector.broadcast %cst_4 : f32 to vector<32x1088xf32>
    %9 = arith.maximumf %7, %8 : vector<32x1088xf32>
    %c0_5 = arith.constant 0 : index
    %c0_6 = arith.constant 0 : index
    %c0_7 = arith.constant 0 : index
    %10 = vector.load %arg4[%c0_5, %c0_6, %c0_7] : memref<10x32x1088xf32, #tpu.memory_space<vmem>>, vector<10x32x1088xf32>
    %11 = arith.index_cast %arg1 : i32 to index
    %c0_8 = arith.constant 0 : index
    %c0_9 = arith.constant 0 : index
    %12 = vector.load %arg8[%11, %c0_8, %c0_9] : memref<2x10x1088xf32, #tpu.memory_space<vmem>>, vector<1x10x1088xf32>
    %13 = vector.shape_cast %12 : vector<1x10x1088xf32> to vector<10x1088xf32>
    %14 = vector.shape_cast %9 : vector<32x1088xf32> to vector<1x32x1088xf32>
    %15 = vector.broadcast %14 : vector<1x32x1088xf32> to vector<10x32x1088xf32>
    %16 = arith.mulf %10, %15 : vector<10x32x1088xf32>
    %cst_10 = arith.constant dense<0.000000e+00> : vector<10x1088xf32>
    %17 = vector.multi_reduction <add>, %16, %cst_10 [1] : vector<10x32x1088xf32> to vector<10x1088xf32>
    %18 = arith.addf %13, %17 : vector<10x1088xf32>
    %19 = arith.index_cast %arg1 : i32 to index
    %c0_11 = arith.constant 0 : index
    %c0_12 = arith.constant 0 : index
    %20 = vector.load %arg8[%19, %c0_11, %c0_12] : memref<2x10x1088xf32, #tpu.memory_space<vmem>>, vector<1x10x1088xf32>
    %21 = vector.shape_cast %20 : vector<1x10x1088xf32> to vector<10x1088xf32>
    %22 = vector.shape_cast %18 : vector<10x1088xf32> to vector<1x10x1088xf32>
    tpu.vector_store %arg8[%19, %c0_11, %c0_12], %22 {strides = array<i32>} : memref<2x10x1088xf32, #tpu.memory_space<vmem>>, vector<1x10x1088xf32>,
    %23 = arith.index_cast %arg1 : i32 to index
    %c0_13 = arith.constant 0 : index
    %c0_14 = arith.constant 0 : index
    %24 = vector.load %arg8[%23, %c0_13, %c0_14] : memref<2x10x1088xf32, #tpu.memory_space<vmem>>, vector<1x10x1088xf32>
    %25 = vector.shape_cast %24 : vector<1x10x1088xf32> to vector<10x1088xf32>
    %cst_15 = arith.constant dense<0.000000e+00> : vector<10xf32>
    %26 = vector.multi_reduction <add>, %25, %cst_15 [1] : vector<10x1088xf32> to vector<10xf32>
    %c0_16 = arith.constant 0 : index
    %c0_17 = arith.constant 0 : index
    %27 = vector.load %arg5[%c0_16, %c0_17] : memref<1x10xf32, #tpu.memory_space<vmem>>, vector<1x10xf32>
    %28 = vector.shape_cast %27 : vector<1x10xf32> to vector<10xf32>
    %29 = arith.addf %26, %28 : vector<10xf32>
    %30 = vector.shape_cast %29 : vector<10xf32> to vector<1x1x10xf32>
    %c0_18 = arith.constant 0 : index
    %c0_19 = arith.constant 0 : index
    %c0_20 = arith.constant 0 : index
    %31 = vector.load %arg6[%c0_18, %c0_19, %c0_20] : memref<1x1x10xf32, #tpu.memory_space<vmem>>, vector<1x1x10xf32>
    tpu.vector_store %arg6[%c0_18, %c0_19, %c0_20], %30 {strides = array<i32>} : memref<1x1x10xf32, #tpu.memory_space<vmem>>, vector<1x1x10xf32>,
    return
  }
  func.func @transform_0(%arg0: i32, %arg1: i32) -> (i32, i32, i32) {
    %c0_i32 = arith.constant 0 : i32
    %c0_i32_0 = arith.constant 0 : i32
    %c0_i32_1 = arith.constant 0 : i32
    return %arg1, %c0_i32, %c0_i32_0 : i32, i32, i32
  }
  func.func @transform_1(%arg0: i32, %arg1: i32) -> (i32, i32) {
    %c0_i32 = arith.constant 0 : i32
    %c0_i32_0 = arith.constant 0 : i32
    return %arg0, %c0_i32 : i32, i32
  }
  func.func @transform_2(%arg0: i32, %arg1: i32) -> (i32, i32, i32) {
    %c0_i32 = arith.constant 0 : i32
    %c0_i32_0 = arith.constant 0 : i32
    %c0_i32_1 = arith.constant 0 : i32
    return %c0_i32, %arg0, %c0_i32_0 : i32, i32, i32
  }
  func.func @transform_3(%arg0: i32, %arg1: i32) -> (i32, i32) {
    %c0_i32 = arith.constant 0 : i32
    %c0_i32_0 = arith.constant 0 : i32
    %c0_i32_1 = arith.constant 0 : i32
    return %c0_i32, %c0_i32_0 : i32, i32
  }
  func.func @transform_4(%arg0: i32, %arg1: i32) -> (i32, i32, i32) {
    %c0_i32 = arith.constant 0 : i32
    %c0_i32_0 = arith.constant 0 : i32
    %c0_i32_1 = arith.constant 0 : i32
    return %arg1, %c0_i32, %c0_i32_0 : i32, i32, i32
  }
}

</mosaic_0001>

<llo_original>
// kernel: simple_model_forward.1
$region0: #{simple_model_forward.1}
  #allocation0 [shape = 'u32[]', space=smem, size = 0x4, offset = 0x4, fixed_abs, tag = 'smem constant byte address 0x4 - core index']
  #allocation1 [shape = 'u32[144,128]{1,0:T(1,128)}', space=vmem, size = 0x12000, scoped, tag = 'internal scratch']
  #allocation2 [shape = 'f32[2,32,1088]{2,1,0:T(8,128)}', space=vmem, size = 0x48000, scoped, tag = 'scratch operand']
  #allocation3 [shape = 'f32[2,10,1088]{2,1,0:T(8,128)}', space=vmem, size = 0x24000, scoped, tag = 'scratch operand']
  #allocation10 [shape = 's32[]', space=sflag, size = 0x4, offset = 0, fixed_abs, tag = 'sflag constant byte address 0x0 - dummy sync flag']
  %s0 = inlined_call_operand.vmem [shape: f32[2,3,1224], index: 0, kind: input, shape index: {}]
  %s1 = inlined_call_operand.vmem [shape: f32[64,32], index: 1, kind: input, shape index: {}]
  %s2 = inlined_call_operand.hbm [shape: f32[10,64,1088], index: 2, kind: input, shape index: {}]
  %s3 = inlined_call_operand.hbm [shape: f32[1,10], index: 3, kind: input, shape index: {}]
  %s4 = inlined_call_operand.hbm [shape: f32[2,1,10], index: 4, kind: output, shape index: {}]
  %s5 = sld [smem:[#allocation0]]
  $region61: #{simple_model_forward.1} parent=0
    _
  %s7 = ssub.s32 1, %s5
  %s8 = scalar_select 0, %s7, %s5
  $region1: #{simple_model_forward.1} parent=0
    #allocation4 [shape = 'u8[2949120]{0}', space=vmem, size = 0x2d0000, scoped, tag = 'input window, operand 2']
    #allocation5 [shape = 's32[2]{0}', space=sflag, size = 0x8, scoped, tag = 'scoped memory for simple_model_forward.1']
    #allocation6 [shape = 's32[2]{0}', space=sflag, size = 0x8, scoped, tag = 'scoped memory for simple_model_forward.1']
    #allocation7 [shape = 'u8[512]{0}', space=vmem, size = 0x400, scoped, tag = 'input window, operand 3, single buffered']
    #allocation8 [shape = 's32[1]{0}', space=sflag, size = 0x4, scoped, tag = 'scoped memory for simple_model_forward.1']
    #allocation9 [shape = 'u8[1024]{0}', space=vmem, size = 0x400, scoped, tag = 'output window, operand 0']
    %9 = vsyncpa [#allocation5], 0
    %s10 = scalar_lea.sflag [#allocation5], 1
    %11 = vsyncpa %s10, 0
    %12 = vsyncpa [#allocation8], 0
    %13 = vsyncpa [#allocation6], 0
    %s14 = scalar_lea.sflag [#allocation6], 1
    %15 = vsyncpa %s14, 0
    loop: start=0, step=1, limit=6
    $region2: #{simple_model_forward.1} parent=1 // loop_pre_header
      _
    $region3: #{simple_model_forward.1} parent=1 // loop_header
      %s17 = sphi 0, %s21
      %p18 = scmp.ge.s32.totalorder %s17, 6
      %s24 = sphi 0, %s36
      %s25 = sphi 0, %s32
      %s26 = sphi 0, %s24
      %s27 = sphi 0, %s25
      %s28 = sphi 0, %s26
      %s29 = sphi 0, %s27
      %s39 = sphi 0, %s41
      %s42 = sphi 0, %s39
      %s43 = sphi 0, %s42
      %s59 = sphi 0, %s43
      %s65 = sphi 0, %s67
      %s68 = sphi 0, %s65
      %s69 = sphi 0, %s68
      %s85 = sphi 0, %s69
      %s91 = sphi 0, %s93
      %s94 = sphi 0, %s91
      %s95 = sphi 0, %s94
      %s111 = sphi 0, %s95
      %s115 = sphi 0, %s115
      %s117 = sphi 0, %s115
      %s118 = sphi 0, %s117
      %s132 = sphi 0, %s118
      %s138 = sphi 0, %s140
      %s141 = sphi 0, %s138
      %s142 = sphi 0, %s141
      %s158 = sphi 0, %s142
    $region4: #{simple_model_forward.1} parent=1 // loop_header_branch
      %20 = sbr.rel (%p18) target = $region8
    $region5: #{simple_model_forward.1} parent=1 // loop_body
      %s22 = ssub.s32 %s17, 1
      %s23 = ssub.s32 %s17, 2
      %s30 = sadd.s32 1, %s25
      %p31 = scmp.ge.s32.totalorder %s30, 2
      %s32 = scalar_select %p31, 0, %s30
      %s33 = sadd.s32 1, %s24
      %s34 = scalar_select %p31, %s33, %s24
      %p35 = scmp.ge.s32.totalorder %s34, 2
      %s36 = scalar_select %p35, 0, %s34
      %s37 = ssub.s32 %s25, %s32
      %p38 = scmp.eq.s32.totalorder %s37, 0
      %s40 = sadd.s32 %s39, 1
      %s41 = scalar_select %p38, %s39, %s40
      %p44 = pneg %p38
      %p45 = scmp.eq.s32.totalorder %s17, 3
      %p46 = por %p44, %p45
      %p47 = scmp.ne.s32.totalorder %s39, %s42
      %p48 = scmp.eq.s32.totalorder %s17, 0
      %p49 = por %p47, %p48
      %p50 = scmp.ne.s32.totalorder %s39, %s42
      %p51 = scmp.eq.s32.totalorder %s22, 3
      %p52 = por %p50, %p51
      %p53 = scmp.ne.s32.totalorder %s42, %s43
      %p54 = scmp.eq.s32.totalorder %s22, 0
      %p55 = por %p53, %p54
      %p56 = scmp.ne.s32.totalorder %s42, %s43
      %p57 = scmp.eq.s32.totalorder %s23, 3
      %p58 = por %p56, %p57
      %p60 = scmp.ne.s32.totalorder %s43, %s59
      %p61 = scmp.eq.s32.totalorder %s23, 0
      %p62 = por %p60, %p61
      %s63 = ssub.s32 %s24, %s36
      %p64 = scmp.eq.s32.totalorder %s63, 0
      %s66 = sadd.s32 %s65, 1
      %s67 = scalar_select %p64, %s65, %s66
      %p70 = pneg %p64
      %p71 = scmp.eq.s32.totalorder %s17, 3
      %p72 = por %p70, %p71
      %p73 = scmp.ne.s32.totalorder %s65, %s68
      %p74 = scmp.eq.s32.totalorder %s17, 0
      %p75 = por %p73, %p74
      %p76 = scmp.ne.s32.totalorder %s65, %s68
      %p77 = scmp.eq.s32.totalorder %s22, 3
      %p78 = por %p76, %p77
      %p79 = scmp.ne.s32.totalorder %s68, %s69
      %p80 = scmp.eq.s32.totalorder %s22, 0
      %p81 = por %p79, %p80
      %p82 = scmp.ne.s32.totalorder %s68, %s69
      %p83 = scmp.eq.s32.totalorder %s23, 3
      %p84 = por %p82, %p83
      %p86 = scmp.ne.s32.totalorder %s69, %s85
      %p87 = scmp.eq.s32.totalorder %s23, 0
      %p88 = por %p86, %p87
      %s89 = ssub.s32 %s24, %s36
      %p90 = scmp.eq.s32.totalorder %s89, 0
      %s92 = sadd.s32 %s91, 1
      %s93 = scalar_select %p90, %s91, %s92
      %p96 = pneg %p90
      %p97 = scmp.eq.s32.totalorder %s17, 3
      %p98 = por %p96, %p97
      %p99 = scmp.ne.s32.totalorder %s91, %s94
      %p100 = scmp.eq.s32.totalorder %s17, 0
      %p101 = por %p99, %p100
      %p102 = scmp.ne.s32.totalorder %s91, %s94
      %p103 = scmp.eq.s32.totalorder %s22, 3
      %p104 = por %p102, %p103
      %p105 = scmp.ne.s32.totalorder %s94, %s95
      %p106 = scmp.eq.s32.totalorder %s22, 0
      %p107 = por %p105, %p106
      %p108 = scmp.ne.s32.totalorder %s94, %s95
      %p109 = scmp.eq.s32.totalorder %s23, 3
      %p110 = por %p108, %p109
      %p112 = scmp.ne.s32.totalorder %s95, %s111
      %p113 = scmp.eq.s32.totalorder %s23, 0
      %p114 = por %p112, %p113
      %s116 = sadd.s32 %s115, 1
      %p119 = scmp.eq.s32.totalorder %s17, 3
      %p120 = scmp.ne.s32.totalorder %s115, %s117
      %p121 = scmp.eq.s32.totalorder %s17, 0
      %p122 = por %p120, %p121
      %p123 = scmp.ne.s32.totalorder %s115, %s117
      %p124 = scmp.eq.s32.totalorder %s22, 3
      %p125 = por %p123, %p124
      %p126 = scmp.ne.s32.totalorder %s117, %s118
      %p127 = scmp.eq.s32.totalorder %s22, 0
      %p128 = por %p126, %p127
      %p129 = scmp.ne.s32.totalorder %s117, %s118
      %p130 = scmp.eq.s32.totalorder %s23, 3
      %p131 = por %p129, %p130
      %p133 = scmp.ne.s32.totalorder %s118, %s132
      %p134 = scmp.eq.s32.totalorder %s23, 0
      %p135 = por %p133, %p134
      %s136 = ssub.s32 %s25, %s32
      %p137 = scmp.eq.s32.totalorder %s136, 0
      %s139 = sadd.s32 %s138, 1
      %s140 = scalar_select %p137, %s138, %s139
      %p143 = pneg %p137
      %p144 = scmp.eq.s32.totalorder %s17, 3
      %p145 = por %p143, %p144
      %p146 = scmp.ne.s32.totalorder %s138, %s141
      %p147 = scmp.eq.s32.totalorder %s17, 0
      %p148 = por %p146, %p147
      %p149 = scmp.ne.s32.totalorder %s138, %s141
      %p150 = scmp.eq.s32.totalorder %s22, 3
      %p151 = por %p149, %p150
      %p152 = scmp.ne.s32.totalorder %s141, %s142
      %p153 = scmp.eq.s32.totalorder %s22, 0
      %p154 = por %p152, %p153
      %p155 = scmp.ne.s32.totalorder %s141, %s142
      %p156 = scmp.eq.s32.totalorder %s23, 3
      %p157 = por %p155, %p156
      %p159 = scmp.ne.s32.totalorder %s142, %s158
      %p160 = scmp.eq.s32.totalorder %s23, 0
      %p161 = por %p159, %p160
      %p162 = scmp.le.s32.totalorder 1, %s17
      %p163 = scmp.lt.s32.totalorder %s17, 5
      %p164 = pnand %p162, %p163
      %p165 = pneg %p164
      // Predicated region
      $region9: #{simple_model_forward.1} parent=5 // pred_check
        _
      $region10: #{simple_model_forward.1} parent=5 // pred_check_branch
        %167 = sbr.rel (%p164) target = $region12
      $region11: #{simple_model_forward.1} parent=5 // pred_region
        %s168 = ssub.s32 %s17, 1
        // Predicated region
        $region13: #{simple_model_forward.1} parent=11 // pred_check
          %p169 = pneg %p128
        $region14: #{simple_model_forward.1} parent=11 // pred_check_branch
          %171 = sbr.rel (%p169) target = $region16
        $region15: #{simple_model_forward.1} parent=11 // pred_region
          %s173 = ssub.s32 16, 16
          %174 = vsyncadd [#allocation8], %s173
          %s176 = sshll.u32 [#allocation7], 4
          %s177 = int_to_ptr.vmem [resolvable:$true] %s176
          %179 = dma.hbm_to_vmem [thread:$0]  %s3, 16, %s177, [#allocation8]
        $region16: #{simple_model_forward.1} parent=11 // pred_fallthru
          _
      $region12: #{simple_model_forward.1} parent=5 // pred_fallthru
        _
      %p180 = scmp.lt.s32.totalorder %s17, 4
      // Predicated region
      $region17: #{simple_model_forward.1} parent=5 // pred_check
        %p181 = pneg %p180
      $region18: #{simple_model_forward.1} parent=5 // pred_check_branch
        %183 = sbr.rel (%p181) target = $region20
      $region19: #{simple_model_forward.1} parent=5 // pred_region
        // Predicated region
        $region21: #{simple_model_forward.1} parent=19 // pred_check
          %p184 = pneg %p49
        $region22: #{simple_model_forward.1} parent=19 // pred_check_branch
          %186 = sbr.rel (%p184) target = $region24
        $region23: #{simple_model_forward.1} parent=19 // pred_region
          %p187 = scmp.lt.s32.totalorder %s25, 1
          %s188 = scalar_select %p187, %s25, 1
          %s189 = smul.addr %s188, 10
          %s190 = smul.addr %s189, 4
          %s191 = scalar_lea.vmem %s0, %s190
        $region24: #{simple_model_forward.1} parent=19 // pred_fallthru
          _
        // Predicated region
        $region25: #{simple_model_forward.1} parent=19 // pred_check
          %p192 = pneg %p75
        $region26: #{simple_model_forward.1} parent=19 // pred_check_branch
          %194 = sbr.rel (%p192) target = $region28
        $region27: #{simple_model_forward.1} parent=19 // pred_region
          %s195 = smul.u32 4, %s24
          %p196 = scmp.lt.s32.totalorder %s195, 7
          %s197 = scalar_select %p196, %s195, 7
          %s198 = smul.addr %s197, 8
          %s199 = scalar_lea.vmem %s1, %s198
          %s200 = smul.u32 4, %s24
        $region28: #{simple_model_forward.1} parent=19 // pred_fallthru
          _
        // Predicated region
        $region29: #{simple_model_forward.1} parent=19 // pred_check
          %p201 = pneg %p101
        $region30: #{simple_model_forward.1} parent=19 // pred_check_branch
          %203 = sbr.rel (%p201) target = $region32
        $region31: #{simple_model_forward.1} parent=19 // pred_region
          #allocation11 [shape = 'u32[6]{0}', space=smem, size = 0x18, scoped, tag = 'DMA stride descriptor']
          %s204 = sand.u32 %s91, 1
          %s205 = scalar_lea.sflag [#allocation5], %s204
          %s206 = sand.u32 %s91, 1
          %s207 = smul.addr %s206, 2880
          %s208 = scalar_lea.vmem [#allocation4], %s207
          %s209 = smul.u32 4, %s24
          %s211 = ssub.s32 46080, 46080
          %212 = vsyncadd %s205, %s211
          %s213 = smul.addr %s209, 9
          %s214 = smul.addr %s213, 128
          %s215 = scalar_lea.hbm %s2, %s214
          %s217 = sshll.u32 1, 14
          %s218 = sxor.u32 4294967295, %s217
          %s220 = sld [smem:[#allocation0]]
          %s221 = sadd.s32 2, %s220
          %s223 = sshll.u32 7, 26
          %s224 = sxor.u32 4294967295, %s223
          %s225 = sand.u32 0, %s224
          %s226 = sshll.u32 %s221, 26
          %s227 = sor.u32 %s225, %s226
          %s228 = sshll.u32 %s208, 4
          %s229 = int_to_ptr.vmem [resolvable:$true] %s228
          %235 = sst [smem:[#allocation11]] 9216
          %s236 = scalar_lea.smem [#allocation11], 1
          %237 = sst [smem:[%s236]] 4608
          %s238 = scalar_lea.smem [#allocation11], 2
          %239 = sst [smem:[%s238]] 4
          %s240 = scalar_lea.smem [#allocation11], 3
          %241 = sst [smem:[%s240]] 1152
          %s242 = scalar_lea.smem [#allocation11], 4
          %243 = sst [smem:[%s242]] 1152
          %s244 = scalar_lea.smem [#allocation11], 5
          %245 = sst [smem:[%s244]] 72
          %247 = dma.general %s215, 46080, %s229, %s205, 131072, [#allocation11], %s227, 0
        $region32: #{simple_model_forward.1} parent=19 // pred_fallthru
          _
      $region20: #{simple_model_forward.1} parent=5 // pred_fallthru
        _
      %p248 = scmp.le.s32.totalorder 1, %s17
      %p249 = scmp.lt.s32.totalorder %s17, 5
      %p250 = pnand %p248, %p249
      %p251 = pneg %p250
      // Predicated region
      $region33: #{simple_model_forward.1} parent=5 // pred_check
        _
      $region34: #{simple_model_forward.1} parent=5 // pred_check_branch
        %253 = sbr.rel (%p250) target = $region36
      $region35: #{simple_model_forward.1} parent=5 // pred_region
        %s254 = ssub.s32 %s17, 1
        %s255 = sand.u32 %s94, 1
        %s256 = scalar_lea.sflag [#allocation5], %s255
        %s257 = sand.u32 %s94, 1
        %s258 = smul.addr %s257, 2880
        %s259 = scalar_lea.vmem [#allocation4], %s258
        // Predicated region
        $region37: #{simple_model_forward.1} parent=35 // pred_check
          %p260 = pneg %p107
        $region38: #{simple_model_forward.1} parent=35 // pred_check_branch
          %262 = sbr.rel (%p260) target = $region40
        $region39: #{simple_model_forward.1} parent=35 // pred_region
          %263 = dma.done %s256, 46080
        $region40: #{simple_model_forward.1} parent=35 // pred_fallthru
          _
        // Predicated region
        $region41: #{simple_model_forward.1} parent=35 // pred_check
          %p264 = pneg %p128
        $region42: #{simple_model_forward.1} parent=35 // pred_check_branch
          %266 = sbr.rel (%p264) target = $region44
        $region43: #{simple_model_forward.1} parent=35 // pred_region
          %267 = dma.done [#allocation8], 16
        $region44: #{simple_model_forward.1} parent=35 // pred_fallthru
          _
        %p268 = scmp.lt.s32.totalorder %s27, 1
        %s269 = scalar_select %p268, %s27, 1
        %s270 = smul.addr %s269, 10
        %s271 = smul.addr %s270, 4
        %s272 = scalar_lea.vmem %s0, %s271
        %p273 = pneg %p55
        %p274 = pneg %p52
        %s275 = smul.u32 4, %s26
        %p276 = scmp.lt.s32.totalorder %s275, 7
        %s277 = scalar_select %p276, %s275, 7
        %s278 = smul.addr %s277, 8
        %s279 = scalar_lea.vmem %s1, %s278
        %p280 = pneg %p81
        %p281 = pneg %p78
        %s282 = sand.u32 %s94, 1
        %s283 = scalar_lea.sflag [#allocation5], %s282
        %s284 = sand.u32 %s94, 1
        %s285 = smul.addr %s284, 2880
        %s286 = scalar_lea.vmem [#allocation4], %s285
        %p287 = pneg %p107
        %p288 = pneg %p104
        %p289 = pneg %p128
        %p290 = pneg %p125
        %p291 = pneg %p154
        %p292 = pneg %p151
        %s293 = sand.u32 %s141, 1
        %s294 = scalar_lea.sflag [#allocation6], %s293
        %s295 = sand.u32 %s141, 1
        %s296 = scalar_lea.vmem [#allocation9], %s295
        %p297 = scmp.lt.s32.totalorder %s27, 1
        %s298 = scalar_select %p297, %s27, 1
        %s299 = smul.addr %s298, 10
        %s300 = smul.addr %s299, 4
        %s301 = scalar_lea.vmem %s0, %s300
        %s302 = smul.u32 4, %s26
        %p303 = scmp.lt.s32.totalorder %s302, 7
        %s304 = scalar_select %p303, %s302, 7
        %s305 = smul.addr %s304, 8
        %s306 = scalar_lea.vmem %s1, %s305
        %s307 = smul.u32 4, %s26
        %s308 = smul.u32 4, %s26
        %p309 = scmp.eq.s32.totalorder %s26, 0
        // Predicated region
        $region45: #{simple_model_forward.1} parent=35 // pred_check
          %p310 = pneg %p309
        $region46: #{simple_model_forward.1} parent=35 // pred_check_branch
          %312 = sbr.rel (%p310) target = $region48
        $region47: #{simple_model_forward.1} parent=35 // pred_region
          %v313 = vld [vmem:[%s301] sm:$0x77]
          %v314 = vld [vmem:[%s301 + $0x8] sm:$0x77]
          %v315 = vld [vmem:[%s301 + $0x10] sm:$0x77]
          %v316 = vld [vmem:[%s301 + $0x18] sm:$0x77]
          %v317 = vld [vmem:[%s301 + $0x20] sm:$0x77]
          %s318 = smul.u32 %s27, 36
          %s319 = smul.addr %s318, 8
          %s320 = scalar_lea.vmem [#allocation2], %s319
          %321 = vst [vmem:[%s320] sm:$0xff] 0.0
          %322 = vst [vmem:[%s320 + $0x8] sm:$0xff] 0.0
          %323 = vst [vmem:[%s320 + $0x10] sm:$0xff] 0.0
          %324 = vst [vmem:[%s320 + $0x18] sm:$0xff] 0.0
          %325 = vst [vmem:[%s320 + $0x20] sm:$0xff] 0.0
          %326 = vst [vmem:[%s320 + $0x28] sm:$0xff] 0.0
          %327 = vst [vmem:[%s320 + $0x30] sm:$0xff] 0.0
          %328 = vst [vmem:[%s320 + $0x38] sm:$0xff] 0.0
          %vm329 = vcmask 523264
          %330 = vst.msk [vmem:[%s320 + $0x40] sm:$0xff] %vm329, 0.0
          %331 = vst [vmem:[%s320 + $0x48] sm:$0xff] 0.0
          %332 = vst [vmem:[%s320 + $0x50] sm:$0xff] 0.0
          %333 = vst [vmem:[%s320 + $0x58] sm:$0xff] 0.0
          %334 = vst [vmem:[%s320 + $0x60] sm:$0xff] 0.0
          %335 = vst [vmem:[%s320 + $0x68] sm:$0xff] 0.0
          %336 = vst [vmem:[%s320 + $0x70] sm:$0xff] 0.0
          %337 = vst [vmem:[%s320 + $0x78] sm:$0xff] 0.0
          %338 = vst [vmem:[%s320 + $0x80] sm:$0xff] 0.0
          %339 = vst.msk [vmem:[%s320 + $0x88] sm:$0xff] %vm329, 0.0
          %340 = vst [vmem:[%s320 + $0x90] sm:$0xff] 0.0
          %341 = vst [vmem:[%s320 + $0x98] sm:$0xff] 0.0
          %342 = vst [vmem:[%s320 + $0xa0] sm:$0xff] 0.0
          %343 = vst [vmem:[%s320 + $0xa8] sm:$0xff] 0.0
          %344 = vst [vmem:[%s320 + $0xb0] sm:$0xff] 0.0
          %345 = vst [vmem:[%s320 + $0xb8] sm:$0xff] 0.0
          %346 = vst [vmem:[%s320 + $0xc0] sm:$0xff] 0.0
          %347 = vst [vmem:[%s320 + $0xc8] sm:$0xff] 0.0
          %348 = vst.msk [vmem:[%s320 + $0xd0] sm:$0xff] %vm329, 0.0
          %349 = vst [vmem:[%s320 + $0xd8] sm:$0xff] 0.0
          %350 = vst [vmem:[%s320 + $0xe0] sm:$0xff] 0.0
          %351 = vst [vmem:[%s320 + $0xe8] sm:$0xff] 0.0
          %352 = vst [vmem:[%s320 + $0xf0] sm:$0xff] 0.0
          %353 = vst [vmem:[%s320 + $0xf8] sm:$0xff] 0.0
          %354 = vst [vmem:[%s320 + $0x100] sm:$0xff] 0.0
          %355 = vst [vmem:[%s320 + $0x108] sm:$0xff] 0.0
          %356 = vst [vmem:[%s320 + $0x110] sm:$0xff] 0.0
          %357 = vst.msk [vmem:[%s320 + $0x118] sm:$0xff] %vm329, 0.0
          %v364 = vunpack.c.l.s4 1966171168
          %v365 = vunpack.c.0.s8 %v364
          %v366 = vlaneseq
          %v367 = vshrl.u32 %v366, 7
          %v368 = vsub.s32 %v365, %v367
          %v369 = vrot.slane %v313, %v368
          %v371 = vunpack.c.l.s4 1966171168
          %v372 = vunpack.c.0.s8 %v371
          %v373 = vlaneseq
          %v374 = vshrl.u32 %v373, 7
          %v375 = vsub.s32 %v372, %v374
          %v376 = vrot.slane %v314, %v375
          %v378 = vunpack.c.l.s4 1966171168
          %v379 = vunpack.c.0.s8 %v378
          %v380 = vlaneseq
          %v381 = vshrl.u32 %v380, 7
          %v382 = vsub.s32 %v379, %v381
          %v383 = vrot.slane %v315, %v382
          %v385 = vunpack.c.l.s4 1966171168
          %v386 = vunpack.c.0.s8 %v385
          %v387 = vlaneseq
          %v388 = vshrl.u32 %v387, 7
          %v389 = vsub.s32 %v386, %v388
          %v390 = vrot.slane %v316, %v389
          %v391 = vcombine.low %v369, %v376
          %v392 = vcombine.low %v383, %v390
          %v394 = vunpack.c.l.s4 1966171168
          %v395 = vunpack.c.0.s8 %v394
          %v396 = vlaneseq
          %v397 = vshrl.u32 %v396, 7
          %v398 = vsub.s32 %v395, %v397
          %v399 = vrot.slane %v391, %v398
          %v401 = vunpack.c.l.s4 1966171168
          %v402 = vunpack.c.0.s8 %v401
          %v403 = vlaneseq
          %v404 = vshrl.u32 %v403, 7
          %v405 = vsub.s32 %v402, %v404
          %v406 = vrot.slane %v392, %v405
          %v407 = vcombine.low %v399, %v406
          %v409 = vunpack.c.l.s4 1966171168
          %v410 = vunpack.c.0.s8 %v409
          %v411 = vlaneseq
          %v412 = vshrl.u32 %v411, 7
          %v413 = vsub.s32 %v410, %v412
          %v414 = vrot.slane %v317, %v413
          %v416 = vunpack.c.l.s4 1966171168
          %v417 = vunpack.c.0.s8 %v416
          %v418 = vlaneseq
          %v419 = vshrl.u32 %v418, 7
          %v420 = vsub.s32 %v417, %v419
          %v421 = vrot.slane %v414, %v420
          %422 = vrot.lane.b32.xlu0 %v407, 95
          %v423 = vpop.permute.xlu0 %422
          %424 = vrot.lane.b32.xlu0 %v421, 95
          %v425 = vpop.permute.xlu0 %424
          %v426 = vrot.slane %v423, 1
          %v427 = vrot.slane %v425, 1
          %vm428 = vcmask 1046528
          %v429 = vsel %vm428, %v426, %v427
          %vm430 = vcmask 777216
          %v431 = vsel %vm430, %v423, %v429
          %434 = vst [vmem:[%s320] ss:$8 sm:$0xf] %v431
          %435 = vst [vmem:[%s320] ss:$8 sm:$0xf0] %v431
          %v436 = vlaneseq
          %vm437 = vcmp.ge.s32.totalorder %v436, 0
          %vm438 = vcmp.lt.s32.totalorder %v436, 64
          %vm439 = vmand %vm437, %vm438
          %s440 = scalar_lea.vmem %s320, 64 [#allocation2]
          %441 = vst.msk [vmem:[%s440] ss:$8 sm:$0x1] %vm439, %v425
          %442 = vst.msk [vmem:[%s440] ss:$8 sm:$0x0] %vm439, %v425
          %443 = vrot.lane.b32.xlu0 %v407, 94
          %v444 = vpop.permute.xlu0 %443
          %445 = vrot.lane.b32.xlu0 %v421, 94
          %v446 = vpop.permute.xlu0 %445
          %v447 = vrot.slane %v444, 1
          %v448 = vrot.slane %v446, 1
          %v449 = vsel %vm428, %v447, %v448
          %vm450 = vcmask 769024
          %v451 = vsel %vm450, %v444, %v449
          %s454 = scalar_lea.vmem %s320, 1 [#allocation2]
          %455 = vst [vmem:[%s454] ss:$8 sm:$0xf] %v451
          %456 = vst [vmem:[%s454] ss:$8 sm:$0xf0] %v451
          %s457 = scalar_lea.vmem %s320, 65 [#allocation2]
          %458 = vst.msk [vmem:[%s457] ss:$8 sm:$0x1] %vm439, %v446
          %459 = vst.msk [vmem:[%s457] ss:$8 sm:$0x0] %vm439, %v446
          %460 = vrot.lane.b32.xlu0 %v407, 93
          %v461 = vpop.permute.xlu0 %460
          %462 = vrot.lane.b32.xlu0 %v421, 93
          %v463 = vpop.permute.xlu0 %462
          %v464 = vrot.slane %v461, 1
          %v465 = vrot.slane %v463, 1
          %v466 = vsel %vm428, %v464, %v465
          %vm467 = vcmask 760832
          %v468 = vsel %vm467, %v461, %v466
          %s471 = scalar_lea.vmem %s320, 2 [#allocation2]
          %472 = vst [vmem:[%s471] ss:$8 sm:$0xf] %v468
          %473 = vst [vmem:[%s471] ss:$8 sm:$0xf0] %v468
          %s474 = scalar_lea.vmem %s320, 66 [#allocation2]
          %475 = vst.msk [vmem:[%s474] ss:$8 sm:$0x1] %vm439, %v463
          %476 = vst.msk [vmem:[%s474] ss:$8 sm:$0x0] %vm439, %v463
          %477 = vrot.lane.b32.xlu0 %v407, 61
          %v478 = vpop.permute.xlu0 %477
          %479 = vrot.lane.b32.xlu0 %v421, 61
          %v480 = vpop.permute.xlu0 %479
          %v481 = vrot.slane %v478, 1
          %v482 = vrot.slane %v480, 1
          %v483 = vsel %vm428, %v481, %v482
          %vm484 = vcmask 498688
          %v485 = vsel %vm484, %v478, %v483
          %v486 = vsel %vm484, %v480, %v482
          %s489 = scalar_lea.vmem %s320, 3 [#allocation2]
          %490 = vst [vmem:[%s489] ss:$8 sm:$0xf] %v485
          %491 = vst [vmem:[%s489] ss:$8 sm:$0xf0] %v485
          %s492 = scalar_lea.vmem %s320, 67 [#allocation2]
          %493 = vst.msk [vmem:[%s492] ss:$8 sm:$0x1] %vm439, %v486
          %494 = vst.msk [vmem:[%s492] ss:$8 sm:$0x0] %vm439, %v486
          %495 = vrot.lane.b32.xlu0 %v407, 60
          %v496 = vpop.permute.xlu0 %495
          %497 = vrot.lane.b32.xlu0 %v421, 60
          %v498 = vpop.permute.xlu0 %497
          %v499 = vrot.slane %v496, 1
          %v500 = vrot.slane %v498, 1
          %v501 = vsel %vm428, %v499, %v500
          %vm502 = vcmask 490496
          %v503 = vsel %vm502, %v496, %v501
          %v504 = vsel %vm502, %v498, %v500
          %s507 = scalar_lea.vmem %s320, 4 [#allocation2]
          %508 = vst [vmem:[%s507] ss:$8 sm:$0xf] %v503
          %509 = vst [vmem:[%s507] ss:$8 sm:$0xf0] %v503
          %s510 = scalar_lea.vmem %s320, 68 [#allocation2]
          %511 = vst.msk [vmem:[%s510] ss:$8 sm:$0x1] %vm439, %v504
          %512 = vst.msk [vmem:[%s510] ss:$8 sm:$0x0] %vm439, %v504
          %513 = vrot.lane.b32.xlu0 %v407, 59
          %v514 = vpop.permute.xlu0 %513
          %515 = vrot.lane.b32.xlu0 %v421, 59
          %v516 = vpop.permute.xlu0 %515
          %v517 = vrot.slane %v514, 1
          %v518 = vrot.slane %v516, 1
          %v519 = vsel %vm428, %v517, %v518
          %vm520 = vcmask 482304
          %v521 = vsel %vm520, %v514, %v519
          %v522 = vsel %vm520, %v516, %v518
          %s525 = scalar_lea.vmem %s320, 5 [#allocation2]
          %526 = vst [vmem:[%s525] ss:$8 sm:$0xf] %v521
          %527 = vst [vmem:[%s525] ss:$8 sm:$0xf0] %v521
          %s528 = scalar_lea.vmem %s320, 69 [#allocation2]
          %529 = vst.msk [vmem:[%s528] ss:$8 sm:$0x1] %vm439, %v522
          %530 = vst.msk [vmem:[%s528] ss:$8 sm:$0x0] %vm439, %v522
          %531 = vrot.lane.b32.xlu0 %v407, 27
          %v532 = vpop.permute.xlu0 %531
          %533 = vrot.lane.b32.xlu0 %v421, 27
          %v534 = vpop.permute.xlu0 %533
          %v535 = vrot.slane %v532, 1
          %v536 = vrot.slane %v534, 1
          %v537 = vsel %vm428, %v535, %v536
          %vm538 = vcmask 220160
          %v539 = vsel %vm538, %v532, %v537
          %v540 = vsel %vm538, %v534, %v536
          %s543 = scalar_lea.vmem %s320, 6 [#allocation2]
          %544 = vst [vmem:[%s543] ss:$8 sm:$0xf] %v539
          %545 = vst [vmem:[%s543] ss:$8 sm:$0xf0] %v539
          %s546 = scalar_lea.vmem %s320, 70 [#allocation2]
          %547 = vst.msk [vmem:[%s546] ss:$8 sm:$0x1] %vm439, %v540
          %548 = vst.msk [vmem:[%s546] ss:$8 sm:$0x0] %vm439, %v540
          %549 = vrot.lane.b32.xlu0 %v407, 26
          %v550 = vpop.permute.xlu0 %549
          %551 = vrot.lane.b32.xlu0 %v421, 26
          %v552 = vpop.permute.xlu0 %551
          %v553 = vrot.slane %v550, 1
          %v554 = vrot.slane %v552, 1
          %v555 = vsel %vm428, %v553, %v554
          %vm556 = vcmask 211968
          %v557 = vsel %vm556, %v550, %v555
          %v558 = vsel %vm556, %v552, %v554
          %s561 = scalar_lea.vmem %s320, 7 [#allocation2]
          %562 = vst [vmem:[%s561] ss:$8 sm:$0xf] %v557
          %563 = vst [vmem:[%s561] ss:$8 sm:$0xf0] %v557
          %s564 = scalar_lea.vmem %s320, 71 [#allocation2]
          %565 = vst.msk [vmem:[%s564] ss:$8 sm:$0x1] %vm439, %v558
          %566 = vst.msk [vmem:[%s564] ss:$8 sm:$0x0] %vm439, %v558
          %567 = vrot.lane.b32.xlu0 %v407, 25
          %v568 = vpop.permute.xlu0 %567
          %569 = vrot.lane.b32.xlu0 %v421, 25
          %v570 = vpop.permute.xlu0 %569
          %v571 = vrot.slane %v568, 1
          %v572 = vrot.slane %v570, 1
          %v573 = vsel %vm428, %v571, %v572
          %vm574 = vcmask 203776
          %v575 = vsel %vm574, %v568, %v573
          %v576 = vsel %vm574, %v570, %v572
          %s579 = scalar_lea.vmem %s320, 72 [#allocation2]
          %580 = vst [vmem:[%s579] ss:$8 sm:$0xf] %v575
          %581 = vst [vmem:[%s579] ss:$8 sm:$0xf0] %v575
          %s582 = scalar_lea.vmem %s320, 136 [#allocation2]
          %583 = vst.msk [vmem:[%s582] ss:$8 sm:$0x1] %vm439, %v576
          %584 = vst.msk [vmem:[%s582] ss:$8 sm:$0x0] %vm439, %v576
          %v585 = vcombine.high %v369, %v376
          %v586 = vcombine.high %v383, %v390
          %v588 = vunpack.c.l.s4 1966171168
          %v589 = vunpack.c.0.s8 %v588
          %v590 = vlaneseq
          %v591 = vshrl.u32 %v590, 7
          %v592 = vsub.s32 %v589, %v591
          %v593 = vrot.slane %v585, %v592
          %v595 = vunpack.c.l.s4 1966171168
          %v596 = vunpack.c.0.s8 %v595
          %v597 = vlaneseq
          %v598 = vshrl.u32 %v597, 7
          %v599 = vsub.s32 %v596, %v598
          %v600 = vrot.slane %v586, %v599
          %v601 = vcombine.low %v593, %v600
          %v602 = vcombine.high %v414, %v414
          %v604 = vunpack.c.l.s4 1966171168
          %v605 = vunpack.c.0.s8 %v604
          %v606 = vlaneseq
          %v607 = vshrl.u32 %v606, 7
          %v608 = vsub.s32 %v605, %v607
          %v609 = vrot.slane %v602, %v608
          %610 = vrot.lane.b32.xlu0 %v601, 95
          %v611 = vpop.permute.xlu0 %610
          %612 = vrot.lane.b32.xlu0 %v609, 95
          %v613 = vpop.permute.xlu0 %612
          %v614 = vrot.slane %v611, 1
          %v615 = vrot.slane %v613, 1
          %v616 = vsel %vm428, %v614, %v615
          %v617 = vsel %vm430, %v611, %v616
          %s620 = scalar_lea.vmem %s320, 73 [#allocation2]
          %621 = vst [vmem:[%s620] ss:$8 sm:$0xf] %v617
          %622 = vst [vmem:[%s620] ss:$8 sm:$0xf0] %v617
          %s623 = scalar_lea.vmem %s320, 137 [#allocation2]
          %624 = vst.msk [vmem:[%s623] ss:$8 sm:$0x1] %vm439, %v613
          %625 = vst.msk [vmem:[%s623] ss:$8 sm:$0x0] %vm439, %v613
          %626 = vrot.lane.b32.xlu0 %v601, 94
          %v627 = vpop.permute.xlu0 %626
          %628 = vrot.lane.b32.xlu0 %v609, 94
          %v629 = vpop.permute.xlu0 %628
          %v630 = vrot.slane %v627, 1
          %v631 = vrot.slane %v629, 1
          %v632 = vsel %vm428, %v630, %v631
          %v633 = vsel %vm450, %v627, %v632
          %s636 = scalar_lea.vmem %s320, 74 [#allocation2]
          %637 = vst [vmem:[%s636] ss:$8 sm:$0xf] %v633
          %638 = vst [vmem:[%s636] ss:$8 sm:$0xf0] %v633
          %s639 = scalar_lea.vmem %s320, 138 [#allocation2]
          %640 = vst.msk [vmem:[%s639] ss:$8 sm:$0x1] %vm439, %v629
          %641 = vst.msk [vmem:[%s639] ss:$8 sm:$0x0] %vm439, %v629
          %642 = vrot.lane.b32.xlu0 %v601, 93
          %v643 = vpop.permute.xlu0 %642
          %644 = vrot.lane.b32.xlu0 %v609, 93
          %v645 = vpop.permute.xlu0 %644
          %v646 = vrot.slane %v643, 1
          %v647 = vrot.slane %v645, 1
          %v648 = vsel %vm428, %v646, %v647
          %v649 = vsel %vm467, %v643, %v648
          %s652 = scalar_lea.vmem %s320, 75 [#allocation2]
          %653 = vst [vmem:[%s652] ss:$8 sm:$0xf] %v649
          %654 = vst [vmem:[%s652] ss:$8 sm:$0xf0] %v649
          %s655 = scalar_lea.vmem %s320, 139 [#allocation2]
          %656 = vst.msk [vmem:[%s655] ss:$8 sm:$0x1] %vm439, %v645
          %657 = vst.msk [vmem:[%s655] ss:$8 sm:$0x0] %vm439, %v645
          %658 = vrot.lane.b32.xlu0 %v601, 61
          %v659 = vpop.permute.xlu0 %658
          %660 = vrot.lane.b32.xlu0 %v609, 61
          %v661 = vpop.permute.xlu0 %660
          %v662 = vrot.slane %v659, 1
          %v663 = vrot.slane %v661, 1
          %v664 = vsel %vm428, %v662, %v663
          %v665 = vsel %vm484, %v659, %v664
          %v666 = vsel %vm484, %v661, %v663
          %s669 = scalar_lea.vmem %s320, 76 [#allocation2]
          %670 = vst [vmem:[%s669] ss:$8 sm:$0xf] %v665
          %671 = vst [vmem:[%s669] ss:$8 sm:$0xf0] %v665
          %s672 = scalar_lea.vmem %s320, 140 [#allocation2]
          %673 = vst.msk [vmem:[%s672] ss:$8 sm:$0x1] %vm439, %v666
          %674 = vst.msk [vmem:[%s672] ss:$8 sm:$0x0] %vm439, %v666
          %675 = vrot.lane.b32.xlu0 %v601, 60
          %v676 = vpop.permute.xlu0 %675
          %677 = vrot.lane.b32.xlu0 %v609, 60
          %v678 = vpop.permute.xlu0 %677
          %v679 = vrot.slane %v676, 1
          %v680 = vrot.slane %v678, 1
          %v681 = vsel %vm428, %v679, %v680
          %v682 = vsel %vm502, %v676, %v681
          %v683 = vsel %vm502, %v678, %v680
          %s686 = scalar_lea.vmem %s320, 77 [#allocation2]
          %687 = vst [vmem:[%s686] ss:$8 sm:$0xf] %v682
          %688 = vst [vmem:[%s686] ss:$8 sm:$0xf0] %v682
          %s689 = scalar_lea.vmem %s320, 141 [#allocation2]
          %690 = vst.msk [vmem:[%s689] ss:$8 sm:$0x1] %vm439, %v683
          %691 = vst.msk [vmem:[%s689] ss:$8 sm:$0x0] %vm439, %v683
          %692 = vrot.lane.b32.xlu0 %v601, 59
          %v693 = vpop.permute.xlu0 %692
          %694 = vrot.lane.b32.xlu0 %v609, 59
          %v695 = vpop.permute.xlu0 %694
          %v696 = vrot.slane %v693, 1
          %v697 = vrot.slane %v695, 1
          %v698 = vsel %vm428, %v696, %v697
          %v699 = vsel %vm520, %v693, %v698
          %v700 = vsel %vm520, %v695, %v697
          %s703 = scalar_lea.vmem %s320, 78 [#allocation2]
          %704 = vst [vmem:[%s703] ss:$8 sm:$0xf] %v699
          %705 = vst [vmem:[%s703] ss:$8 sm:$0xf0] %v699
          %s706 = scalar_lea.vmem %s320, 142 [#allocation2]
          %707 = vst.msk [vmem:[%s706] ss:$8 sm:$0x1] %vm439, %v700
          %708 = vst.msk [vmem:[%s706] ss:$8 sm:$0x0] %vm439, %v700
          %709 = vrot.lane.b32.xlu0 %v601, 27
          %v710 = vpop.permute.xlu0 %709
          %711 = vrot.lane.b32.xlu0 %v609, 27
          %v712 = vpop.permute.xlu0 %711
          %v713 = vrot.slane %v710, 1
          %v714 = vrot.slane %v712, 1
          %v715 = vsel %vm428, %v713, %v714
          %v716 = vsel %vm538, %v710, %v715
          %v717 = vsel %vm538, %v712, %v714
          %s720 = scalar_lea.vmem %s320, 79 [#allocation2]
          %721 = vst [vmem:[%s720] ss:$8 sm:$0xf] %v716
          %722 = vst [vmem:[%s720] ss:$8 sm:$0xf0] %v716
          %s723 = scalar_lea.vmem %s320, 143 [#allocation2]
          %724 = vst.msk [vmem:[%s723] ss:$8 sm:$0x1] %vm439, %v717
          %725 = vst.msk [vmem:[%s723] ss:$8 sm:$0x0] %vm439, %v717
          %726 = vrot.lane.b32.xlu0 %v601, 26
          %v727 = vpop.permute.xlu0 %726
          %728 = vrot.lane.b32.xlu0 %v609, 26
          %v729 = vpop.permute.xlu0 %728
          %v730 = vrot.slane %v727, 1
          %v731 = vrot.slane %v729, 1
          %v732 = vsel %vm428, %v730, %v731
          %v733 = vsel %vm556, %v727, %v732
          %v734 = vsel %vm556, %v729, %v731
          %s737 = scalar_lea.vmem %s320, 144 [#allocation2]
          %738 = vst [vmem:[%s737] ss:$8 sm:$0xf] %v733
          %739 = vst [vmem:[%s737] ss:$8 sm:$0xf0] %v733
          %s740 = scalar_lea.vmem %s320, 208 [#allocation2]
          %741 = vst.msk [vmem:[%s740] ss:$8 sm:$0x1] %vm439, %v734
          %742 = vst.msk [vmem:[%s740] ss:$8 sm:$0x0] %vm439, %v734
          %743 = vrot.lane.b32.xlu0 %v601, 25
          %v744 = vpop.permute.xlu0 %743
          %745 = vrot.lane.b32.xlu0 %v609, 25
          %v746 = vpop.permute.xlu0 %745
          %v747 = vrot.slane %v744, 1
          %v748 = vrot.slane %v746, 1
          %v749 = vsel %vm428, %v747, %v748
          %v750 = vsel %vm574, %v744, %v749
          %v751 = vsel %vm574, %v746, %v748
          %s754 = scalar_lea.vmem %s320, 145 [#allocation2]
          %755 = vst [vmem:[%s754] ss:$8 sm:$0xf] %v750
          %756 = vst [vmem:[%s754] ss:$8 sm:$0xf0] %v750
          %s757 = scalar_lea.vmem %s320, 209 [#allocation2]
          %758 = vst.msk [vmem:[%s757] ss:$8 sm:$0x1] %vm439, %v751
          %759 = vst.msk [vmem:[%s757] ss:$8 sm:$0x0] %vm439, %v751
          %v760 = vcombine.high %v399, %v406
          %v761 = vcombine.high %v421, %v421
          %762 = vrot.lane.b32.xlu0 %v760, 95
          %v763 = vpop.permute.xlu0 %762
          %764 = vrot.lane.b32.xlu0 %v761, 95
          %v765 = vpop.permute.xlu0 %764
          %v766 = vrot.slane %v763, 1
          %v767 = vrot.slane %v765, 1
          %v768 = vsel %vm428, %v766, %v767
          %v769 = vsel %vm430, %v763, %v768
          %s772 = scalar_lea.vmem %s320, 146 [#allocation2]
          %773 = vst [vmem:[%s772] ss:$8 sm:$0xf] %v769
          %774 = vst [vmem:[%s772] ss:$8 sm:$0xf0] %v769
          %s775 = scalar_lea.vmem %s320, 210 [#allocation2]
          %776 = vst.msk [vmem:[%s775] ss:$8 sm:$0x1] %vm439, %v765
          %777 = vst.msk [vmem:[%s775] ss:$8 sm:$0x0] %vm439, %v765
          %778 = vrot.lane.b32.xlu0 %v760, 94
          %v779 = vpop.permute.xlu0 %778
          %780 = vrot.lane.b32.xlu0 %v761, 94
          %v781 = vpop.permute.xlu0 %780
          %v782 = vrot.slane %v779, 1
          %v783 = vrot.slane %v781, 1
          %v784 = vsel %vm428, %v782, %v783
          %v785 = vsel %vm450, %v779, %v784
          %s788 = scalar_lea.vmem %s320, 147 [#allocation2]
          %789 = vst [vmem:[%s788] ss:$8 sm:$0xf] %v785
          %790 = vst [vmem:[%s788] ss:$8 sm:$0xf0] %v785
          %s791 = scalar_lea.vmem %s320, 211 [#allocation2]
          %792 = vst.msk [vmem:[%s791] ss:$8 sm:$0x1] %vm439, %v781
          %793 = vst.msk [vmem:[%s791] ss:$8 sm:$0x0] %vm439, %v781
          %794 = vrot.lane.b32.xlu0 %v760, 93
          %v795 = vpop.permute.xlu0 %794
          %796 = vrot.lane.b32.xlu0 %v761, 93
          %v797 = vpop.permute.xlu0 %796
          %v798 = vrot.slane %v795, 1
          %v799 = vrot.slane %v797, 1
          %v800 = vsel %vm428, %v798, %v799
          %v801 = vsel %vm467, %v795, %v800
          %s804 = scalar_lea.vmem %s320, 148 [#allocation2]
          %805 = vst [vmem:[%s804] ss:$8 sm:$0xf] %v801
          %806 = vst [vmem:[%s804] ss:$8 sm:$0xf0] %v801
          %s807 = scalar_lea.vmem %s320, 212 [#allocation2]
          %808 = vst.msk [vmem:[%s807] ss:$8 sm:$0x1] %vm439, %v797
          %809 = vst.msk [vmem:[%s807] ss:$8 sm:$0x0] %vm439, %v797
          %810 = vrot.lane.b32.xlu0 %v760, 61
          %v811 = vpop.permute.xlu0 %810
          %812 = vrot.lane.b32.xlu0 %v761, 61
          %v813 = vpop.permute.xlu0 %812
          %v814 = vrot.slane %v811, 1
          %v815 = vrot.slane %v813, 1
          %v816 = vsel %vm428, %v814, %v815
          %v817 = vsel %vm484, %v811, %v816
          %v818 = vsel %vm484, %v813, %v815
          %s821 = scalar_lea.vmem %s320, 149 [#allocation2]
          %822 = vst [vmem:[%s821] ss:$8 sm:$0xf] %v817
          %823 = vst [vmem:[%s821] ss:$8 sm:$0xf0] %v817
          %s824 = scalar_lea.vmem %s320, 213 [#allocation2]
          %825 = vst.msk [vmem:[%s824] ss:$8 sm:$0x1] %vm439, %v818
          %826 = vst.msk [vmem:[%s824] ss:$8 sm:$0x0] %vm439, %v818
          %827 = vrot.lane.b32.xlu0 %v760, 60
          %v828 = vpop.permute.xlu0 %827
          %829 = vrot.lane.b32.xlu0 %v761, 60
          %v830 = vpop.permute.xlu0 %829
          %v831 = vrot.slane %v828, 1
          %v832 = vrot.slane %v830, 1
          %v833 = vsel %vm428, %v831, %v832
          %v834 = vsel %vm502, %v828, %v833
          %v835 = vsel %vm502, %v830, %v832
          %s838 = scalar_lea.vmem %s320, 150 [#allocation2]
          %839 = vst [vmem:[%s838] ss:$8 sm:$0xf] %v834
          %840 = vst [vmem:[%s838] ss:$8 sm:$0xf0] %v834
          %s841 = scalar_lea.vmem %s320, 214 [#allocation2]
          %842 = vst.msk [vmem:[%s841] ss:$8 sm:$0x1] %vm439, %v835
          %843 = vst.msk [vmem:[%s841] ss:$8 sm:$0x0] %vm439, %v835
          %844 = vrot.lane.b32.xlu0 %v760, 59
          %v845 = vpop.permute.xlu0 %844
          %846 = vrot.lane.b32.xlu0 %v761, 59
          %v847 = vpop.permute.xlu0 %846
          %v848 = vrot.slane %v845, 1
          %v849 = vrot.slane %v847, 1
          %v850 = vsel %vm428, %v848, %v849
          %v851 = vsel %vm520, %v845, %v850
          %v852 = vsel %vm520, %v847, %v849
          %s855 = scalar_lea.vmem %s320, 151 [#allocation2]
          %856 = vst [vmem:[%s855] ss:$8 sm:$0xf] %v851
          %857 = vst [vmem:[%s855] ss:$8 sm:$0xf0] %v851
          %s858 = scalar_lea.vmem %s320, 215 [#allocation2]
          %859 = vst.msk [vmem:[%s858] ss:$8 sm:$0x1] %vm439, %v852
          %860 = vst.msk [vmem:[%s858] ss:$8 sm:$0x0] %vm439, %v852
          %861 = vrot.lane.b32.xlu0 %v760, 27
          %v862 = vpop.permute.xlu0 %861
          %863 = vrot.lane.b32.xlu0 %v761, 27
          %v864 = vpop.permute.xlu0 %863
          %v865 = vrot.slane %v862, 1
          %v866 = vrot.slane %v864, 1
          %v867 = vsel %vm428, %v865, %v866
          %v868 = vsel %vm538, %v862, %v867
          %v869 = vsel %vm538, %v864, %v866
          %s872 = scalar_lea.vmem %s320, 216 [#allocation2]
          %873 = vst [vmem:[%s872] ss:$8 sm:$0xf] %v868
          %874 = vst [vmem:[%s872] ss:$8 sm:$0xf0] %v868
          %s875 = scalar_lea.vmem %s320, 280 [#allocation2]
          %876 = vst.msk [vmem:[%s875] ss:$8 sm:$0x1] %vm439, %v869
          %877 = vst.msk [vmem:[%s875] ss:$8 sm:$0x0] %vm439, %v869
          %878 = vrot.lane.b32.xlu0 %v760, 26
          %v879 = vpop.permute.xlu0 %878
          %880 = vrot.lane.b32.xlu0 %v761, 26
          %v881 = vpop.permute.xlu0 %880
          %v882 = vrot.slane %v879, 1
          %v883 = vrot.slane %v881, 1
          %v884 = vsel %vm428, %v882, %v883
          %v885 = vsel %vm556, %v879, %v884
          %v886 = vsel %vm556, %v881, %v883
          %s889 = scalar_lea.vmem %s320, 217 [#allocation2]
          %890 = vst [vmem:[%s889] ss:$8 sm:$0xf] %v885
          %891 = vst [vmem:[%s889] ss:$8 sm:$0xf0] %v885
          %s892 = scalar_lea.vmem %s320, 281 [#allocation2]
          %893 = vst.msk [vmem:[%s892] ss:$8 sm:$0x1] %vm439, %v886
          %894 = vst.msk [vmem:[%s892] ss:$8 sm:$0x0] %vm439, %v886
          %895 = vrot.lane.b32.xlu0 %v760, 25
          %v896 = vpop.permute.xlu0 %895
          %897 = vrot.lane.b32.xlu0 %v761, 25
          %v898 = vpop.permute.xlu0 %897
          %v899 = vrot.slane %v896, 1
          %v900 = vrot.slane %v898, 1
          %v901 = vsel %vm428, %v899, %v900
          %v902 = vsel %vm574, %v896, %v901
          %v903 = vsel %vm574, %v898, %v900
          %s906 = scalar_lea.vmem %s320, 218 [#allocation2]
          %907 = vst [vmem:[%s906] ss:$8 sm:$0xf] %v902
          %908 = vst [vmem:[%s906] ss:$8 sm:$0xf0] %v902
          %s909 = scalar_lea.vmem %s320, 282 [#allocation2]
          %910 = vst.msk [vmem:[%s909] ss:$8 sm:$0x1] %vm439, %v903
          %911 = vst.msk [vmem:[%s909] ss:$8 sm:$0x0] %vm439, %v903
          %s912 = scalar_lea.vmem %s320, 219 [#allocation2]
          %913 = vst [vmem:[%s912] ss:$8 sm:$0xf] 1.0
          %914 = vst [vmem:[%s912] ss:$8 sm:$0xf0] 1.0
          %s915 = scalar_lea.vmem %s320, 283 [#allocation2]
          %916 = vst.msk [vmem:[%s915] ss:$8 sm:$0x1] %vm439, 1.0
          %917 = vst.msk [vmem:[%s915] ss:$8 sm:$0x0] %vm439, 1.0
          %s918 = smul.u32 %s27, 18
          %s919 = smul.addr %s918, 8
          %s920 = scalar_lea.vmem [#allocation3], %s919
          %921 = vst [vmem:[%s920] sm:$0xff] 0.0
          %922 = vst [vmem:[%s920 + $0x8] sm:$0xff] 0.0
          %923 = vst [vmem:[%s920 + $0x10] sm:$0xff] 0.0
          %924 = vst [vmem:[%s920 + $0x18] sm:$0xff] 0.0
          %925 = vst [vmem:[%s920 + $0x20] sm:$0xff] 0.0
          %926 = vst [vmem:[%s920 + $0x28] sm:$0xff] 0.0
          %927 = vst [vmem:[%s920 + $0x30] sm:$0xff] 0.0
          %928 = vst [vmem:[%s920 + $0x38] sm:$0xff] 0.0
          %929 = vst.msk [vmem:[%s920 + $0x40] sm:$0xff] %vm329, 0.0
          %930 = vst [vmem:[%s920 + $0x48] sm:$0x3] 0.0
          %931 = vst [vmem:[%s920 + $0x50] sm:$0x3] 0.0
          %932 = vst [vmem:[%s920 + $0x58] sm:$0x3] 0.0
          %933 = vst [vmem:[%s920 + $0x60] sm:$0x3] 0.0
          %934 = vst [vmem:[%s920 + $0x68] sm:$0x3] 0.0
          %935 = vst [vmem:[%s920 + $0x70] sm:$0x3] 0.0
          %936 = vst [vmem:[%s920 + $0x78] sm:$0x3] 0.0
          %937 = vst [vmem:[%s920 + $0x80] sm:$0x3] 0.0
          %vm938 = vcmask 517120
          %939 = vst.msk [vmem:[%s920 + $0x88] sm:$0x3] %vm938, 0.0
        $region48: #{simple_model_forward.1} parent=35 // pred_fallthru
          _
        %v940 = vld [vmem:[%s306] sm:$0xff]
        %v941 = vld [vmem:[%s306 + $0x8] sm:$0xff]
        %v942 = vld [vmem:[%s306 + $0x10] sm:$0xff]
        %v943 = vld [vmem:[%s306 + $0x18] sm:$0xff]
        %s944 = smul.u32 %s27, 36
        %s945 = smul.addr %s944, 8
        %s946 = scalar_lea.vmem [#allocation2], %s945
        %v947 = vld [vmem:[%s946] sm:$0xff]
        %v948 = vld [vmem:[%s946 + $0x8] sm:$0xff]
        %v949 = vld [vmem:[%s946 + $0x10] sm:$0xff]
        %v950 = vld [vmem:[%s946 + $0x18] sm:$0xff]
        %v951 = vld [vmem:[%s946 + $0x20] sm:$0xff]
        %v952 = vld [vmem:[%s946 + $0x28] sm:$0xff]
        %v953 = vld [vmem:[%s946 + $0x30] sm:$0xff]
        %v954 = vld [vmem:[%s946 + $0x38] sm:$0xff]
        %v955 = vld [vmem:[%s946 + $0x40] sm:$0xff]
        %v956 = vld [vmem:[%s946 + $0x48] sm:$0xff]
        %v957 = vld [vmem:[%s946 + $0x50] sm:$0xff]
        %v958 = vld [vmem:[%s946 + $0x58] sm:$0xff]
        %v959 = vld [vmem:[%s946 + $0x60] sm:$0xff]
        %v960 = vld [vmem:[%s946 + $0x68] sm:$0xff]
        %v961 = vld [vmem:[%s946 + $0x70] sm:$0xff]
        %v962 = vld [vmem:[%s946 + $0x78] sm:$0xff]
        %v963 = vld [vmem:[%s946 + $0x80] sm:$0xff]
        %v964 = vld [vmem:[%s946 + $0x88] sm:$0xff]
        %v965 = vld [vmem:[%s946 + $0x90] sm:$0xff]
        %v966 = vld [vmem:[%s946 + $0x98] sm:$0xff]
        %v967 = vld [vmem:[%s946 + $0xa0] sm:$0xff]
        %v968 = vld [vmem:[%s946 + $0xa8] sm:$0xff]
        %v969 = vld [vmem:[%s946 + $0xb0] sm:$0xff]
        %v970 = vld [vmem:[%s946 + $0xb8] sm:$0xff]
        %v971 = vld [vmem:[%s946 + $0xc0] sm:$0xff]
        %v972 = vld [vmem:[%s946 + $0xc8] sm:$0xff]
        %v973 = vld [vmem:[%s946 + $0xd0] sm:$0xff]
        %v974 = vld [vmem:[%s946 + $0xd8] sm:$0xff]
        %v975 = vld [vmem:[%s946 + $0xe0] sm:$0xff]
        %v976 = vld [vmem:[%s946 + $0xe8] sm:$0xff]
        %v977 = vld [vmem:[%s946 + $0xf0] sm:$0xff]
        %v978 = vld [vmem:[%s946 + $0xf8] sm:$0xff]
        %v979 = vld [vmem:[%s946 + $0x100] sm:$0xff]
        %v980 = vld [vmem:[%s946 + $0x108] sm:$0xff]
        %v981 = vld [vmem:[%s946 + $0x110] sm:$0xff]
        %v982 = vld [vmem:[%s946 + $0x118] sm:$0xff]
        %vm983 = vcmask 261120
        %v985 = vsel %vm983, %v940, 0
        %v988 = vsel %vm983, %v941, 0
        %v991 = vsel %vm983, %v942, 0
        %v994 = vsel %vm983, %v943, 0
        %996 = vmatprep.subr.mxu0 0.0
        %997 = vmatpush1.msra.mxu0 0.0
        %998 = vmatprep.subr.mxu0 0.0
        %999 = vmatpush1.msra.mxu0 0.0
        %1000 = vmatprep.subr.mxu0 0.0
        %1001 = vmatpush1.msra.mxu0 0.0
        %1002 = vmatprep.subr.mxu0 0.0
        %1003 = vmatpush1.msra.mxu0 0.0
        %1004 = vmatprep.subr.mxu0 0.0
        %1005 = vmatpush1.msra.mxu0 0.0
        %1006 = vmatprep.subr.mxu0 0.0
        %1007 = vmatpush1.msra.mxu0 0.0
        %1008 = vmatprep.subr.mxu0 0.0
        %1009 = vmatpush1.msra.mxu0 0.0
        %1010 = vmatprep.subr.mxu0 0.0
        %1011 = vmatpush1.msra.mxu0 0.0
        %1012 = vmatprep.subr.mxu0 0.0
        %1013 = vmatpush1.msra.mxu0 0.0
        %1014 = vmatprep.subr.mxu0 0.0
        %1015 = vmatpush1.msra.mxu0 0.0
        %1016 = vmatprep.subr.mxu0 0.0
        %1017 = vmatpush1.msra.mxu0 0.0
        %1018 = vmatprep.subr.mxu0 0.0
        %1019 = vmatpush1.msra.mxu0 0.0
        %1020 = vmatprep.subr.mxu0 %v975
        %1021 = vmatpush1.msra.mxu0 %v974
        %1022 = vmatprep.subr.mxu0 %v966
        %1023 = vmatpush1.msra.mxu0 %v965
        %1024 = vmatprep.subr.mxu0 %v957
        %1025 = vmatpush1.msra.mxu0 %v956
        %1026 = vmatprep.subr.mxu0 %v948
        %1027 = vmatpush1.msra.mxu0 %v947
        %1028 = vmatprep.subr.mxu0 0.0
        %1029 = vmatpush2.msra.mxu0 0.0
        %1030 = vmatprep.subr.mxu0 0.0
        %1031 = vmatpush2.msra.mxu0 0.0
        %1032 = vmatprep.subr.mxu0 0.0
        %1033 = vmatpush2.msra.mxu0 0.0
        %1034 = vmatprep.subr.mxu0 0.0
        %1035 = vmatpush2.msra.mxu0 0.0
        %1036 = vmatprep.subr.mxu0 0.0
        %1037 = vmatpush2.msra.mxu0 0.0
        %1038 = vmatprep.subr.mxu0 0.0
        %1039 = vmatpush2.msra.mxu0 0.0
        %1040 = vmatprep.subr.mxu0 0.0
        %1041 = vmatpush2.msra.mxu0 0.0
        %1042 = vmatprep.subr.mxu0 0.0
        %1043 = vmatpush2.msra.mxu0 0.0
        %1044 = vmatprep.subr.mxu0 0.0
        %1045 = vmatpush2.msra.mxu0 0.0
        %1046 = vmatprep.subr.mxu0 0.0
        %1047 = vmatpush2.msra.mxu0 0.0
        %1048 = vmatprep.subr.mxu0 0.0
        %1049 = vmatpush2.msra.mxu0 0.0
        %1050 = vmatprep.subr.mxu0 0.0
        %1051 = vmatpush2.msra.mxu0 0.0
        %1052 = vmatprep.subr.mxu0 0.0
        %1053 = vmatpush2.msra.mxu0 0.0
        %1054 = vmatprep.subr.mxu0 0.0
        %1055 = vmatpush2.msra.mxu0 0.0
        %1056 = vmatprep.subr.mxu0 0.0
        %1057 = vmatpush2.msra.mxu0 0.0
        %1058 = vmatprep.subr.mxu0 0.0
        %1059 = vmatpush2.msra.mxu0 0.0
        %1060 = vmatprep.mubr.f32.mxu0 0.0
        %1061 = vmatmul.mubr.f32.gmra.mxu0 %v985
        %v1062 = vpop.f32.mrf.mxu0
        %v1063 = vadd.f32 0.0, %v1062
        %v1064 = vpop.f32.mrf.mxu0
        %v1065 = vadd.f32 0.0, %v1064
        %1066 = vmatprep.mubr.f32.mxu0 0.0
        %1067 = vmatmul.mubr.f32.gmra.mxu0 %v988
        %v1068 = vpop.f32.mrf.mxu0
        %v1069 = vadd.f32 0.0, %v1068
        %v1070 = vpop.f32.mrf.mxu0
        %v1071 = vadd.f32 0.0, %v1070
        %1072 = vmatprep.mubr.f32.mxu0 0.0
        %1073 = vmatmul.mubr.f32.gmra.mxu0 %v991
        %v1074 = vpop.f32.mrf.mxu0
        %v1075 = vadd.f32 0.0, %v1074
        %v1076 = vpop.f32.mrf.mxu0
        %v1077 = vadd.f32 0.0, %v1076
        %1078 = vmatprep.mubr.f32.mxu0 0.0
        %1079 = vmatmul.mubr.f32.gmra.mxu0 %v994
        %v1080 = vpop.f32.mrf.mxu0
        %v1081 = vadd.f32 0.0, %v1080
        %v1082 = vpop.f32.mrf.mxu0
        %v1083 = vadd.f32 0.0, %v1082
        %1084 = vdwg.mxu0
        %1085 = vmatprep.subr.mxu0 0.0
        %1086 = vmatpush1.msra.mxu0 0.0
        %1087 = vmatprep.subr.mxu0 0.0
        %1088 = vmatpush1.msra.mxu0 0.0
        %1089 = vmatprep.subr.mxu0 0.0
        %1090 = vmatpush1.msra.mxu0 0.0
        %1091 = vmatprep.subr.mxu0 0.0
        %1092 = vmatpush1.msra.mxu0 0.0
        %1093 = vmatprep.subr.mxu0 0.0
        %1094 = vmatpush1.msra.mxu0 0.0
        %1095 = vmatprep.subr.mxu0 0.0
        %1096 = vmatpush1.msra.mxu0 0.0
        %1097 = vmatprep.subr.mxu0 0.0
        %1098 = vmatpush1.msra.mxu0 0.0
        %1099 = vmatprep.subr.mxu0 0.0
        %1100 = vmatpush1.msra.mxu0 0.0
        %1101 = vmatprep.subr.mxu0 0.0
        %1102 = vmatpush1.msra.mxu0 0.0
        %1103 = vmatprep.subr.mxu0 0.0
        %1104 = vmatpush1.msra.mxu0 0.0
        %1105 = vmatprep.subr.mxu0 0.0
        %1106 = vmatpush1.msra.mxu0 0.0
        %1107 = vmatprep.subr.mxu0 0.0
        %1108 = vmatpush1.msra.mxu0 0.0
        %1109 = vmatprep.subr.mxu0 %v977
        %1110 = vmatpush1.msra.mxu0 %v976
        %1111 = vmatprep.subr.mxu0 %v968
        %1112 = vmatpush1.msra.mxu0 %v967
        %1113 = vmatprep.subr.mxu0 %v959
        %1114 = vmatpush1.msra.mxu0 %v958
        %1115 = vmatprep.subr.mxu0 %v950
        %1116 = vmatpush1.msra.mxu0 %v949
        %1117 = vmatprep.subr.mxu0 0.0
        %1118 = vmatpush2.msra.mxu0 0.0
        %1119 = vmatprep.subr.mxu0 0.0
        %1120 = vmatpush2.msra.mxu0 0.0
        %1121 = vmatprep.subr.mxu0 0.0
        %1122 = vmatpush2.msra.mxu0 0.0
        %1123 = vmatprep.subr.mxu0 0.0
        %1124 = vmatpush2.msra.mxu0 0.0
        %1125 = vmatprep.subr.mxu0 0.0
        %1126 = vmatpush2.msra.mxu0 0.0
        %1127 = vmatprep.subr.mxu0 0.0
        %1128 = vmatpush2.msra.mxu0 0.0
        %1129 = vmatprep.subr.mxu0 0.0
        %1130 = vmatpush2.msra.mxu0 0.0
        %1131 = vmatprep.subr.mxu0 0.0
        %1132 = vmatpush2.msra.mxu0 0.0
        %1133 = vmatprep.subr.mxu0 0.0
        %1134 = vmatpush2.msra.mxu0 0.0
        %1135 = vmatprep.subr.mxu0 0.0
        %1136 = vmatpush2.msra.mxu0 0.0
        %1137 = vmatprep.subr.mxu0 0.0
        %1138 = vmatpush2.msra.mxu0 0.0
        %1139 = vmatprep.subr.mxu0 0.0
        %1140 = vmatpush2.msra.mxu0 0.0
        %1141 = vmatprep.subr.mxu0 0.0
        %1142 = vmatpush2.msra.mxu0 0.0
        %1143 = vmatprep.subr.mxu0 0.0
        %1144 = vmatpush2.msra.mxu0 0.0
        %1145 = vmatprep.subr.mxu0 0.0
        %1146 = vmatpush2.msra.mxu0 0.0
        %1147 = vmatprep.subr.mxu0 0.0
        %1148 = vmatpush2.msra.mxu0 0.0
        %1149 = vmatprep.mubr.f32.mxu0 0.0
        %1150 = vmatmul.mubr.f32.gmra.mxu0 %v985
        %v1151 = vpop.f32.mrf.mxu0
        %v1152 = vadd.f32 0.0, %v1151
        %v1153 = vpop.f32.mrf.mxu0
        %v1154 = vadd.f32 0.0, %v1153
        %1155 = vmatprep.mubr.f32.mxu0 0.0
        %1156 = vmatmul.mubr.f32.gmra.mxu0 %v988
        %v1157 = vpop.f32.mrf.mxu0
        %v1158 = vadd.f32 0.0, %v1157
        %v1159 = vpop.f32.mrf.mxu0
        %v1160 = vadd.f32 0.0, %v1159
        %1161 = vmatprep.mubr.f32.mxu0 0.0
        %1162 = vmatmul.mubr.f32.gmra.mxu0 %v991
        %v1163 = vpop.f32.mrf.mxu0
        %v1164 = vadd.f32 0.0, %v1163
        %v1165 = vpop.f32.mrf.mxu0
        %v1166 = vadd.f32 0.0, %v1165
        %1167 = vmatprep.mubr.f32.mxu0 0.0
        %1168 = vmatmul.mubr.f32.gmra.mxu0 %v994
        %v1169 = vpop.f32.mrf.mxu0
        %v1170 = vadd.f32 0.0, %v1169
        %v1171 = vpop.f32.mrf.mxu0
        %v1172 = vadd.f32 0.0, %v1171
        %1173 = vdwg.mxu0
        %1174 = vmatprep.subr.mxu0 0.0
        %1175 = vmatpush1.msra.mxu0 0.0
        %1176 = vmatprep.subr.mxu0 0.0
        %1177 = vmatpush1.msra.mxu0 0.0
        %1178 = vmatprep.subr.mxu0 0.0
        %1179 = vmatpush1.msra.mxu0 0.0
        %1180 = vmatprep.subr.mxu0 0.0
        %1181 = vmatpush1.msra.mxu0 0.0
        %1182 = vmatprep.subr.mxu0 0.0
        %1183 = vmatpush1.msra.mxu0 0.0
        %1184 = vmatprep.subr.mxu0 0.0
        %1185 = vmatpush1.msra.mxu0 0.0
        %1186 = vmatprep.subr.mxu0 0.0
        %1187 = vmatpush1.msra.mxu0 0.0
        %1188 = vmatprep.subr.mxu0 0.0
        %1189 = vmatpush1.msra.mxu0 0.0
        %1190 = vmatprep.subr.mxu0 0.0
        %1191 = vmatpush1.msra.mxu0 0.0
        %1192 = vmatprep.subr.mxu0 0.0
        %1193 = vmatpush1.msra.mxu0 0.0
        %1194 = vmatprep.subr.mxu0 0.0
        %1195 = vmatpush1.msra.mxu0 0.0
        %1196 = vmatprep.subr.mxu0 0.0
        %1197 = vmatpush1.msra.mxu0 0.0
        %1198 = vmatprep.subr.mxu0 %v979
        %1199 = vmatpush1.msra.mxu0 %v978
        %1200 = vmatprep.subr.mxu0 %v970
        %1201 = vmatpush1.msra.mxu0 %v969
        %1202 = vmatprep.subr.mxu0 %v961
        %1203 = vmatpush1.msra.mxu0 %v960
        %1204 = vmatprep.subr.mxu0 %v952
        %1205 = vmatpush1.msra.mxu0 %v951
        %1206 = vmatprep.subr.mxu0 0.0
        %1207 = vmatpush2.msra.mxu0 0.0
        %1208 = vmatprep.subr.mxu0 0.0
        %1209 = vmatpush2.msra.mxu0 0.0
        %1210 = vmatprep.subr.mxu0 0.0
        %1211 = vmatpush2.msra.mxu0 0.0
        %1212 = vmatprep.subr.mxu0 0.0
        %1213 = vmatpush2.msra.mxu0 0.0
        %1214 = vmatprep.subr.mxu0 0.0
        %1215 = vmatpush2.msra.mxu0 0.0
        %1216 = vmatprep.subr.mxu0 0.0
        %1217 = vmatpush2.msra.mxu0 0.0
        %1218 = vmatprep.subr.mxu0 0.0
        %1219 = vmatpush2.msra.mxu0 0.0
        %1220 = vmatprep.subr.mxu0 0.0
        %1221 = vmatpush2.msra.mxu0 0.0
        %1222 = vmatprep.subr.mxu0 0.0
        %1223 = vmatpush2.msra.mxu0 0.0
        %1224 = vmatprep.subr.mxu0 0.0
        %1225 = vmatpush2.msra.mxu0 0.0
        %1226 = vmatprep.subr.mxu0 0.0
        %1227 = vmatpush2.msra.mxu0 0.0
        %1228 = vmatprep.subr.mxu0 0.0
        %1229 = vmatpush2.msra.mxu0 0.0
        %1230 = vmatprep.subr.mxu0 0.0
        %1231 = vmatpush2.msra.mxu0 0.0
        %1232 = vmatprep.subr.mxu0 0.0
        %1233 = vmatpush2.msra.mxu0 0.0
        %1234 = vmatprep.subr.mxu0 0.0
        %1235 = vmatpush2.msra.mxu0 0.0
        %1236 = vmatprep.subr.mxu0 0.0
        %1237 = vmatpush2.msra.mxu0 0.0
        %1238 = vmatprep.mubr.f32.mxu0 0.0
        %1239 = vmatmul.mubr.f32.gmra.mxu0 %v985
        %v1240 = vpop.f32.mrf.mxu0
        %v1241 = vadd.f32 0.0, %v1240
        %v1242 = vpop.f32.mrf.mxu0
        %v1243 = vadd.f32 0.0, %v1242
        %1244 = vmatprep.mubr.f32.mxu0 0.0
        %1245 = vmatmul.mubr.f32.gmra.mxu0 %v988
        %v1246 = vpop.f32.mrf.mxu0
        %v1247 = vadd.f32 0.0, %v1246
        %v1248 = vpop.f32.mrf.mxu0
        %v1249 = vadd.f32 0.0, %v1248
        %1250 = vmatprep.mubr.f32.mxu0 0.0
        %1251 = vmatmul.mubr.f32.gmra.mxu0 %v991
        %v1252 = vpop.f32.mrf.mxu0
        %v1253 = vadd.f32 0.0, %v1252
        %v1254 = vpop.f32.mrf.mxu0
        %v1255 = vadd.f32 0.0, %v1254
        %1256 = vmatprep.mubr.f32.mxu0 0.0
        %1257 = vmatmul.mubr.f32.gmra.mxu0 %v994
        %v1258 = vpop.f32.mrf.mxu0
        %v1259 = vadd.f32 0.0, %v1258
        %v1260 = vpop.f32.mrf.mxu0
        %v1261 = vadd.f32 0.0, %v1260
        %1262 = vdwg.mxu0
        %1263 = vmatprep.subr.mxu0 0.0
        %1264 = vmatpush1.msra.mxu0 0.0
        %1265 = vmatprep.subr.mxu0 0.0
        %1266 = vmatpush1.msra.mxu0 0.0
        %1267 = vmatprep.subr.mxu0 0.0
        %1268 = vmatpush1.msra.mxu0 0.0
        %1269 = vmatprep.subr.mxu0 0.0
        %1270 = vmatpush1.msra.mxu0 0.0
        %1271 = vmatprep.subr.mxu0 0.0
        %1272 = vmatpush1.msra.mxu0 0.0
        %1273 = vmatprep.subr.mxu0 0.0
        %1274 = vmatpush1.msra.mxu0 0.0
        %1275 = vmatprep.subr.mxu0 0.0
        %1276 = vmatpush1.msra.mxu0 0.0
        %1277 = vmatprep.subr.mxu0 0.0
        %1278 = vmatpush1.msra.mxu0 0.0
        %1279 = vmatprep.subr.mxu0 0.0
        %1280 = vmatpush1.msra.mxu0 0.0
        %1281 = vmatprep.subr.mxu0 0.0
        %1282 = vmatpush1.msra.mxu0 0.0
        %1283 = vmatprep.subr.mxu0 0.0
        %1284 = vmatpush1.msra.mxu0 0.0
        %1285 = vmatprep.subr.mxu0 0.0
        %1286 = vmatpush1.msra.mxu0 0.0
        %1287 = vmatprep.subr.mxu0 %v981
        %1288 = vmatpush1.msra.mxu0 %v980
        %1289 = vmatprep.subr.mxu0 %v972
        %1290 = vmatpush1.msra.mxu0 %v971
        %1291 = vmatprep.subr.mxu0 %v963
        %1292 = vmatpush1.msra.mxu0 %v962
        %1293 = vmatprep.subr.mxu0 %v954
        %1294 = vmatpush1.msra.mxu0 %v953
        %1295 = vmatprep.subr.mxu0 0.0
        %1296 = vmatpush2.msra.mxu0 0.0
        %1297 = vmatprep.subr.mxu0 0.0
        %1298 = vmatpush2.msra.mxu0 0.0
        %1299 = vmatprep.subr.mxu0 0.0
        %1300 = vmatpush2.msra.mxu0 0.0
        %1301 = vmatprep.subr.mxu0 0.0
        %1302 = vmatpush2.msra.mxu0 0.0
        %1303 = vmatprep.subr.mxu0 0.0
        %1304 = vmatpush2.msra.mxu0 0.0
        %1305 = vmatprep.subr.mxu0 0.0
        %1306 = vmatpush2.msra.mxu0 0.0
        %1307 = vmatprep.subr.mxu0 0.0
        %1308 = vmatpush2.msra.mxu0 0.0
        %1309 = vmatprep.subr.mxu0 0.0
        %1310 = vmatpush2.msra.mxu0 0.0
        %1311 = vmatprep.subr.mxu0 0.0
        %1312 = vmatpush2.msra.mxu0 0.0
        %1313 = vmatprep.subr.mxu0 0.0
        %1314 = vmatpush2.msra.mxu0 0.0
        %1315 = vmatprep.subr.mxu0 0.0
        %1316 = vmatpush2.msra.mxu0 0.0
        %1317 = vmatprep.subr.mxu0 0.0
        %1318 = vmatpush2.msra.mxu0 0.0
        %1319 = vmatprep.subr.mxu0 0.0
        %1320 = vmatpush2.msra.mxu0 0.0
        %1321 = vmatprep.subr.mxu0 0.0
        %1322 = vmatpush2.msra.mxu0 0.0
        %1323 = vmatprep.subr.mxu0 0.0
        %1324 = vmatpush2.msra.mxu0 0.0
        %1325 = vmatprep.subr.mxu0 0.0
        %1326 = vmatpush2.msra.mxu0 0.0
        %1327 = vmatprep.mubr.f32.mxu0 0.0
        %1328 = vmatmul.mubr.f32.gmra.mxu0 %v985
        %v1329 = vpop.f32.mrf.mxu0
        %v1330 = vadd.f32 0.0, %v1329
        %v1331 = vpop.f32.mrf.mxu0
        %v1332 = vadd.f32 0.0, %v1331
        %1333 = vmatprep.mubr.f32.mxu0 0.0
        %1334 = vmatmul.mubr.f32.gmra.mxu0 %v988
        %v1335 = vpop.f32.mrf.mxu0
        %v1336 = vadd.f32 0.0, %v1335
        %v1337 = vpop.f32.mrf.mxu0
        %v1338 = vadd.f32 0.0, %v1337
        %1339 = vmatprep.mubr.f32.mxu0 0.0
        %1340 = vmatmul.mubr.f32.gmra.mxu0 %v991
        %v1341 = vpop.f32.mrf.mxu0
        %v1342 = vadd.f32 0.0, %v1341
        %v1343 = vpop.f32.mrf.mxu0
        %v1344 = vadd.f32 0.0, %v1343
        %1345 = vmatprep.mubr.f32.mxu0 0.0
        %1346 = vmatmul.mubr.f32.gmra.mxu0 %v994
        %v1347 = vpop.f32.mrf.mxu0
        %v1348 = vadd.f32 0.0, %v1347
        %v1349 = vpop.f32.mrf.mxu0
        %v1350 = vadd.f32 0.0, %v1349
        %1351 = vdwg.mxu0
        %1352 = vmatprep.subr.mxu0 0.0
        %1353 = vmatpush1.msra.mxu0 0.0
        %1354 = vmatprep.subr.mxu0 0.0
        %1355 = vmatpush1.msra.mxu0 0.0
        %1356 = vmatprep.subr.mxu0 0.0
        %1357 = vmatpush1.msra.mxu0 0.0
        %1358 = vmatprep.subr.mxu0 0.0
        %1359 = vmatpush1.msra.mxu0 0.0
        %1360 = vmatprep.subr.mxu0 0.0
        %1361 = vmatpush1.msra.mxu0 0.0
        %1362 = vmatprep.subr.mxu0 0.0
        %1363 = vmatpush1.msra.mxu0 0.0
        %1364 = vmatprep.subr.mxu0 0.0
        %1365 = vmatpush1.msra.mxu0 0.0
        %1366 = vmatprep.subr.mxu0 0.0
        %1367 = vmatpush1.msra.mxu0 0.0
        %1368 = vmatprep.subr.mxu0 0.0
        %1369 = vmatpush1.msra.mxu0 0.0
        %1370 = vmatprep.subr.mxu0 0.0
        %1371 = vmatpush1.msra.mxu0 0.0
        %1372 = vmatprep.subr.mxu0 0.0
        %1373 = vmatpush1.msra.mxu0 0.0
        %1374 = vmatprep.subr.mxu0 0.0
        %1375 = vmatpush1.msra.mxu0 0.0
        %1376 = vmatprep.subr.mxu0 0.0
        %1377 = vmatpush1.msra.mxu0 %v982
        %1378 = vmatprep.subr.mxu0 0.0
        %1379 = vmatpush1.msra.mxu0 %v973
        %1380 = vmatprep.subr.mxu0 0.0
        %1381 = vmatpush1.msra.mxu0 %v964
        %1382 = vmatprep.subr.mxu0 0.0
        %1383 = vmatpush1.msra.mxu0 %v955
        %1384 = vmatprep.subr.mxu0 0.0
        %1385 = vmatpush2.msra.mxu0 0.0
        %1386 = vmatprep.subr.mxu0 0.0
        %1387 = vmatpush2.msra.mxu0 0.0
        %1388 = vmatprep.subr.mxu0 0.0
        %1389 = vmatpush2.msra.mxu0 0.0
        %1390 = vmatprep.subr.mxu0 0.0
        %1391 = vmatpush2.msra.mxu0 0.0
        %1392 = vmatprep.subr.mxu0 0.0
        %1393 = vmatpush2.msra.mxu0 0.0
        %1394 = vmatprep.subr.mxu0 0.0
        %1395 = vmatpush2.msra.mxu0 0.0
        %1396 = vmatprep.subr.mxu0 0.0
        %1397 = vmatpush2.msra.mxu0 0.0
        %1398 = vmatprep.subr.mxu0 0.0
        %1399 = vmatpush2.msra.mxu0 0.0
        %1400 = vmatprep.subr.mxu0 0.0
        %1401 = vmatpush2.msra.mxu0 0.0
        %1402 = vmatprep.subr.mxu0 0.0
        %1403 = vmatpush2.msra.mxu0 0.0
        %1404 = vmatprep.subr.mxu0 0.0
        %1405 = vmatpush2.msra.mxu0 0.0
        %1406 = vmatprep.subr.mxu0 0.0
        %1407 = vmatpush2.msra.mxu0 0.0
        %1408 = vmatprep.subr.mxu0 0.0
        %1409 = vmatpush2.msra.mxu0 0.0
        %1410 = vmatprep.subr.mxu0 0.0
        %1411 = vmatpush2.msra.mxu0 0.0
        %1412 = vmatprep.subr.mxu0 0.0
        %1413 = vmatpush2.msra.mxu0 0.0
        %1414 = vmatprep.subr.mxu0 0.0
        %1415 = vmatpush2.msra.mxu0 0.0
        %1416 = vmatprep.mubr.f32.mxu0 0.0
        %1417 = vmatmul.mubr.f32.gmra.mxu0 %v985
        %v1418 = vpop.f32.mrf.mxu0
        %v1419 = vadd.f32 0.0, %v1418
        %v1420 = vpop.f32.mrf.mxu0
        %1421 = vmatprep.mubr.f32.mxu0 0.0
        %1422 = vmatmul.mubr.f32.gmra.mxu0 %v988
        %v1423 = vpop.f32.mrf.mxu0
        %v1424 = vadd.f32 0.0, %v1423
        %v1425 = vpop.f32.mrf.mxu0
        %1426 = vmatprep.mubr.f32.mxu0 0.0
        %1427 = vmatmul.mubr.f32.gmra.mxu0 %v991
        %v1428 = vpop.f32.mrf.mxu0
        %v1429 = vadd.f32 0.0, %v1428
        %v1430 = vpop.f32.mrf.mxu0
        %1431 = vmatprep.mubr.f32.mxu0 0.0
        %1432 = vmatmul.mubr.f32.gmra.mxu0 %v994
        %v1433 = vpop.f32.mrf.mxu0
        %v1434 = vadd.f32 0.0, %v1433
        %v1435 = vpop.f32.mrf.mxu0
        %1436 = vdwg.mxu0
        %v1437 = vmax.f32 %v1063, 0.0
        %v1438 = vmax.f32 %v1065, 0.0
        %v1439 = vmax.f32 %v1152, 0.0
        %v1440 = vmax.f32 %v1154, 0.0
        %v1441 = vmax.f32 %v1241, 0.0
        %v1442 = vmax.f32 %v1243, 0.0
        %v1443 = vmax.f32 %v1330, 0.0
        %v1444 = vmax.f32 %v1332, 0.0
        %v1445 = vmax.f32 %v1419, 0.0
        %v1446 = vmax.f32 %v1069, 0.0
        %v1447 = vmax.f32 %v1071, 0.0
        %v1448 = vmax.f32 %v1158, 0.0
        %v1449 = vmax.f32 %v1160, 0.0
        %v1450 = vmax.f32 %v1247, 0.0
        %v1451 = vmax.f32 %v1249, 0.0
        %v1452 = vmax.f32 %v1336, 0.0
        %v1453 = vmax.f32 %v1338, 0.0
        %v1454 = vmax.f32 %v1424, 0.0
        %v1455 = vmax.f32 %v1075, 0.0
        %v1456 = vmax.f32 %v1077, 0.0
        %v1457 = vmax.f32 %v1164, 0.0
        %v1458 = vmax.f32 %v1166, 0.0
        %v1459 = vmax.f32 %v1253, 0.0
        %v1460 = vmax.f32 %v1255, 0.0
        %v1461 = vmax.f32 %v1342, 0.0
        %v1462 = vmax.f32 %v1344, 0.0
        %v1463 = vmax.f32 %v1429, 0.0
        %v1464 = vmax.f32 %v1081, 0.0
        %v1465 = vmax.f32 %v1083, 0.0
        %v1466 = vmax.f32 %v1170, 0.0
        %v1467 = vmax.f32 %v1172, 0.0
        %v1468 = vmax.f32 %v1259, 0.0
        %v1469 = vmax.f32 %v1261, 0.0
        %v1470 = vmax.f32 %v1348, 0.0
        %v1471 = vmax.f32 %v1350, 0.0
        %v1472 = vmax.f32 %v1434, 0.0
        %v1473 = vld [vmem:[%s259] sm:$0xff]
        %v1474 = vld [vmem:[%s259 + $0x8] sm:$0xff]
        %v1475 = vld [vmem:[%s259 + $0x10] sm:$0xff]
        %v1476 = vld [vmem:[%s259 + $0x18] sm:$0xff]
        %v1477 = vld [vmem:[%s259 + $0x20] sm:$0xff]
        %v1478 = vld [vmem:[%s259 + $0x28] sm:$0xff]
        %v1479 = vld [vmem:[%s259 + $0x30] sm:$0xff]
        %v1480 = vld [vmem:[%s259 + $0x38] sm:$0xff]
        %v1481 = vld [vmem:[%s259 + $0x40] sm:$0xff]
        %v1482 = vld [vmem:[%s259 + $0x48] sm:$0xff]
        %v1483 = vld [vmem:[%s259 + $0x50] sm:$0xff]
        %v1484 = vld [vmem:[%s259 + $0x58] sm:$0xff]
        %v1485 = vld [vmem:[%s259 + $0x60] sm:$0xff]
        %v1486 = vld [vmem:[%s259 + $0x68] sm:$0xff]
        %v1487 = vld [vmem:[%s259 + $0x70] sm:$0xff]
        %v1488 = vld [vmem:[%s259 + $0x78] sm:$0xff]
        %v1489 = vld [vmem:[%s259 + $0x80] sm:$0xff]
        %v1490 = vld [vmem:[%s259 + $0x88] sm:$0xff]
        %v1491 = vld [vmem:[%s259 + $0x90] sm:$0xff]
        %v1492 = vld [vmem:[%s259 + $0x98] sm:$0xff]
        %v1493 = vld [vmem:[%s259 + $0xa0] sm:$0xff]
        %v1494 = vld [vmem:[%s259 + $0xa8] sm:$0xff]
        %v1495 = vld [vmem:[%s259 + $0xb0] sm:$0xff]
        %v1496 = vld [vmem:[%s259 + $0xb8] sm:$0xff]
        %v1497 = vld [vmem:[%s259 + $0xc0] sm:$0xff]
        %v1498 = vld [vmem:[%s259 + $0xc8] sm:$0xff]
        %v1499 = vld [vmem:[%s259 + $0xd0] sm:$0xff]
        %v1500 = vld [vmem:[%s259 + $0xd8] sm:$0xff]
        %v1501 = vld [vmem:[%s259 + $0xe0] sm:$0xff]
        %v1502 = vld [vmem:[%s259 + $0xe8] sm:$0xff]
        %v1503 = vld [vmem:[%s259 + $0xf0] sm:$0xff]
        %v1504 = vld [vmem:[%s259 + $0xf8] sm:$0xff]
        %v1505 = vld [vmem:[%s259 + $0x100] sm:$0xff]
        %v1506 = vld [vmem:[%s259 + $0x108] sm:$0xff]
        %v1507 = vld [vmem:[%s259 + $0x110] sm:$0xff]
        %v1508 = vld [vmem:[%s259 + $0x118] sm:$0xff]
        %v1509 = vld [vmem:[%s259 + $0x120] sm:$0xff]
        %v1510 = vld [vmem:[%s259 + $0x128] sm:$0xff]
        %v1511 = vld [vmem:[%s259 + $0x130] sm:$0xff]
        %v1512 = vld [vmem:[%s259 + $0x138] sm:$0xff]
        %v1513 = vld [vmem:[%s259 + $0x140] sm:$0xff]
        %v1514 = vld [vmem:[%s259 + $0x148] sm:$0xff]
        %v1515 = vld [vmem:[%s259 + $0x150] sm:$0xff]
        %v1516 = vld [vmem:[%s259 + $0x158] sm:$0xff]
        %v1517 = vld [vmem:[%s259 + $0x160] sm:$0xff]
        %v1518 = vld [vmem:[%s259 + $0x168] sm:$0xff]
        %v1519 = vld [vmem:[%s259 + $0x170] sm:$0xff]
        %v1520 = vld [vmem:[%s259 + $0x178] sm:$0xff]
        %v1521 = vld [vmem:[%s259 + $0x180] sm:$0xff]
        %v1522 = vld [vmem:[%s259 + $0x188] sm:$0xff]
        %v1523 = vld [vmem:[%s259 + $0x190] sm:$0xff]
        %v1524 = vld [vmem:[%s259 + $0x198] sm:$0xff]
        %v1525 = vld [vmem:[%s259 + $0x1a0] sm:$0xff]
        %v1526 = vld [vmem:[%s259 + $0x1a8] sm:$0xff]
        %v1527 = vld [vmem:[%s259 + $0x1b0] sm:$0xff]
        %v1528 = vld [vmem:[%s259 + $0x1b8] sm:$0xff]
        %v1529 = vld [vmem:[%s259 + $0x1c0] sm:$0xff]
        %v1530 = vld [vmem:[%s259 + $0x1c8] sm:$0xff]
        %v1531 = vld [vmem:[%s259 + $0x1d0] sm:$0xff]
        %v1532 = vld [vmem:[%s259 + $0x1d8] sm:$0xff]
        %v1533 = vld [vmem:[%s259 + $0x1e0] sm:$0xff]
        %v1534 = vld [vmem:[%s259 + $0x1e8] sm:$0xff]
        %v1535 = vld [vmem:[%s259 + $0x1f0] sm:$0xff]
        %v1536 = vld [vmem:[%s259 + $0x1f8] sm:$0xff]
        %v1537 = vld [vmem:[%s259 + $0x200] sm:$0xff]
        %v1538 = vld [vmem:[%s259 + $0x208] sm:$0xff]
        %v1539 = vld [vmem:[%s259 + $0x210] sm:$0xff]
        %v1540 = vld [vmem:[%s259 + $0x218] sm:$0xff]
        %v1541 = vld [vmem:[%s259 + $0x220] sm:$0xff]
        %v1542 = vld [vmem:[%s259 + $0x228] sm:$0xff]
        %v1543 = vld [vmem:[%s259 + $0x230] sm:$0xff]
        %v1544 = vld [vmem:[%s259 + $0x238] sm:$0xff]
        %v1545 = vld [vmem:[%s259 + $0x240] sm:$0xff]
        %v1546 = vld [vmem:[%s259 + $0x248] sm:$0xff]
        %v1547 = vld [vmem:[%s259 + $0x250] sm:$0xff]
        %v1548 = vld [vmem:[%s259 + $0x258] sm:$0xff]
        %v1549 = vld [vmem:[%s259 + $0x260] sm:$0xff]
        %v1550 = vld [vmem:[%s259 + $0x268] sm:$0xff]
        %v1551 = vld [vmem:[%s259 + $0x270] sm:$0xff]
        %v1552 = vld [vmem:[%s259 + $0x278] sm:$0xff]
        %v1553 = vld [vmem:[%s259 + $0x280] sm:$0xff]
        %v1554 = vld [vmem:[%s259 + $0x288] sm:$0xff]
        %v1555 = vld [vmem:[%s259 + $0x290] sm:$0xff]
        %v1556 = vld [vmem:[%s259 + $0x298] sm:$0xff]
        %v1557 = vld [vmem:[%s259 + $0x2a0] sm:$0xff]
        %v1558 = vld [vmem:[%s259 + $0x2a8] sm:$0xff]
        %v1559 = vld [vmem:[%s259 + $0x2b0] sm:$0xff]
        %v1560 = vld [vmem:[%s259 + $0x2b8] sm:$0xff]
        %v1561 = vld [vmem:[%s259 + $0x2c0] sm:$0xff]
        %v1562 = vld [vmem:[%s259 + $0x2c8] sm:$0xff]
        %v1563 = vld [vmem:[%s259 + $0x2d0] sm:$0xff]
        %v1564 = vld [vmem:[%s259 + $0x2d8] sm:$0xff]
        %v1565 = vld [vmem:[%s259 + $0x2e0] sm:$0xff]
        %v1566 = vld [vmem:[%s259 + $0x2e8] sm:$0xff]
        %v1567 = vld [vmem:[%s259 + $0x2f0] sm:$0xff]
        %v1568 = vld [vmem:[%s259 + $0x2f8] sm:$0xff]
        %v1569 = vld [vmem:[%s259 + $0x300] sm:$0xff]
        %v1570 = vld [vmem:[%s259 + $0x308] sm:$0xff]
        %v1571 = vld [vmem:[%s259 + $0x310] sm:$0xff]
        %v1572 = vld [vmem:[%s259 + $0x318] sm:$0xff]
        %v1573 = vld [vmem:[%s259 + $0x320] sm:$0xff]
        %v1574 = vld [vmem:[%s259 + $0x328] sm:$0xff]
        %v1575 = vld [vmem:[%s259 + $0x330] sm:$0xff]
        %v1576 = vld [vmem:[%s259 + $0x338] sm:$0xff]
        %v1577 = vld [vmem:[%s259 + $0x340] sm:$0xff]
        %v1578 = vld [vmem:[%s259 + $0x348] sm:$0xff]
        %v1579 = vld [vmem:[%s259 + $0x350] sm:$0xff]
        %v1580 = vld [vmem:[%s259 + $0x358] sm:$0xff]
        %v1581 = vld [vmem:[%s259 + $0x360] sm:$0xff]
        %v1582 = vld [vmem:[%s259 + $0x368] sm:$0xff]
        %v1583 = vld [vmem:[%s259 + $0x370] sm:$0xff]
        %v1584 = vld [vmem:[%s259 + $0x378] sm:$0xff]
        %v1585 = vld [vmem:[%s259 + $0x380] sm:$0xff]
        %v1586 = vld [vmem:[%s259 + $0x388] sm:$0xff]
        %v1587 = vld [vmem:[%s259 + $0x390] sm:$0xff]
        %v1588 = vld [vmem:[%s259 + $0x398] sm:$0xff]
        %v1589 = vld [vmem:[%s259 + $0x3a0] sm:$0xff]
        %v1590 = vld [vmem:[%s259 + $0x3a8] sm:$0xff]
        %v1591 = vld [vmem:[%s259 + $0x3b0] sm:$0xff]
        %v1592 = vld [vmem:[%s259 + $0x3b8] sm:$0xff]
        %v1593 = vld [vmem:[%s259 + $0x3c0] sm:$0xff]
        %v1594 = vld [vmem:[%s259 + $0x3c8] sm:$0xff]
        %v1595 = vld [vmem:[%s259 + $0x3d0] sm:$0xff]
        %v1596 = vld [vmem:[%s259 + $0x3d8] sm:$0xff]
        %v1597 = vld [vmem:[%s259 + $0x3e0] sm:$0xff]
        %v1598 = vld [vmem:[%s259 + $0x3e8] sm:$0xff]
        %v1599 = vld [vmem:[%s259 + $0x3f0] sm:$0xff]
        %v1600 = vld [vmem:[%s259 + $0x3f8] sm:$0xff]
        %v1601 = vld [vmem:[%s259 + $0x400] sm:$0xff]
        %v1602 = vld [vmem:[%s259 + $0x408] sm:$0xff]
        %v1603 = vld [vmem:[%s259 + $0x410] sm:$0xff]
        %v1604 = vld [vmem:[%s259 + $0x418] sm:$0xff]
        %v1605 = vld [vmem:[%s259 + $0x420] sm:$0xff]
        %v1606 = vld [vmem:[%s259 + $0x428] sm:$0xff]
        %v1607 = vld [vmem:[%s259 + $0x430] sm:$0xff]
        %v1608 = vld [vmem:[%s259 + $0x438] sm:$0xff]
        %v1609 = vld [vmem:[%s259 + $0x440] sm:$0xff]
        %v1610 = vld [vmem:[%s259 + $0x448] sm:$0xff]
        %v1611 = vld [vmem:[%s259 + $0x450] sm:$0xff]
        %v1612 = vld [vmem:[%s259 + $0x458] sm:$0xff]
        %v1613 = vld [vmem:[%s259 + $0x460] sm:$0xff]
        %v1614 = vld [vmem:[%s259 + $0x468] sm:$0xff]
        %v1615 = vld [vmem:[%s259 + $0x470] sm:$0xff]
        %v1616 = vld [vmem:[%s259 + $0x478] sm:$0xff]
        %v1617 = vld [vmem:[%s259 + $0x480] sm:$0xff]
        %v1618 = vld [vmem:[%s259 + $0x488] sm:$0xff]
        %v1619 = vld [vmem:[%s259 + $0x490] sm:$0xff]
        %v1620 = vld [vmem:[%s259 + $0x498] sm:$0xff]
        %v1621 = vld [vmem:[%s259 + $0x4a0] sm:$0xff]
        %v1622 = vld [vmem:[%s259 + $0x4a8] sm:$0xff]
        %v1623 = vld [vmem:[%s259 + $0x4b0] sm:$0xff]
        %v1624 = vld [vmem:[%s259 + $0x4b8] sm:$0xff]
        %v1625 = vld [vmem:[%s259 + $0x4c0] sm:$0xff]
        %v1626 = vld [vmem:[%s259 + $0x4c8] sm:$0xff]
        %v1627 = vld [vmem:[%s259 + $0x4d0] sm:$0xff]
        %v1628 = vld [vmem:[%s259 + $0x4d8] sm:$0xff]
        %v1629 = vld [vmem:[%s259 + $0x4e0] sm:$0xff]
        %v1630 = vld [vmem:[%s259 + $0x4e8] sm:$0xff]
        %v1631 = vld [vmem:[%s259 + $0x4f0] sm:$0xff]
        %v1632 = vld [vmem:[%s259 + $0x4f8] sm:$0xff]
        %v1633 = vld [vmem:[%s259 + $0x500] sm:$0xff]
        %v1634 = vld [vmem:[%s259 + $0x508] sm:$0xff]
        %v1635 = vld [vmem:[%s259 + $0x510] sm:$0xff]
        %v1636 = vld [vmem:[%s259 + $0x518] sm:$0xff]
        %v1637 = vld [vmem:[%s259 + $0x520] sm:$0xff]
        %v1638 = vld [vmem:[%s259 + $0x528] sm:$0xff]
        %v1639 = vld [vmem:[%s259 + $0x530] sm:$0xff]
        %v1640 = vld [vmem:[%s259 + $0x538] sm:$0xff]
        %v1641 = vld [vmem:[%s259 + $0x540] sm:$0xff]
        %v1642 = vld [vmem:[%s259 + $0x548] sm:$0xff]
        %v1643 = vld [vmem:[%s259 + $0x550] sm:$0xff]
        %v1644 = vld [vmem:[%s259 + $0x558] sm:$0xff]
        %v1645 = vld [vmem:[%s259 + $0x560] sm:$0xff]
        %v1646 = vld [vmem:[%s259 + $0x568] sm:$0xff]
        %v1647 = vld [vmem:[%s259 + $0x570] sm:$0xff]
        %v1648 = vld [vmem:[%s259 + $0x578] sm:$0xff]
        %v1649 = vld [vmem:[%s259 + $0x580] sm:$0xff]
        %v1650 = vld [vmem:[%s259 + $0x588] sm:$0xff]
        %v1651 = vld [vmem:[%s259 + $0x590] sm:$0xff]
        %v1652 = vld [vmem:[%s259 + $0x598] sm:$0xff]
        %v1653 = vld [vmem:[%s259 + $0x5a0] sm:$0xff]
        %v1654 = vld [vmem:[%s259 + $0x5a8] sm:$0xff]
        %v1655 = vld [vmem:[%s259 + $0x5b0] sm:$0xff]
        %v1656 = vld [vmem:[%s259 + $0x5b8] sm:$0xff]
        %v1657 = vld [vmem:[%s259 + $0x5c0] sm:$0xff]
        %v1658 = vld [vmem:[%s259 + $0x5c8] sm:$0xff]
        %v1659 = vld [vmem:[%s259 + $0x5d0] sm:$0xff]
        %v1660 = vld [vmem:[%s259 + $0x5d8] sm:$0xff]
        %v1661 = vld [vmem:[%s259 + $0x5e0] sm:$0xff]
        %v1662 = vld [vmem:[%s259 + $0x5e8] sm:$0xff]
        %v1663 = vld [vmem:[%s259 + $0x5f0] sm:$0xff]
        %v1664 = vld [vmem:[%s259 + $0x5f8] sm:$0xff]
        %v1665 = vld [vmem:[%s259 + $0x600] sm:$0xff]
        %v1666 = vld [vmem:[%s259 + $0x608] sm:$0xff]
        %v1667 = vld [vmem:[%s259 + $0x610] sm:$0xff]
        %v1668 = vld [vmem:[%s259 + $0x618] sm:$0xff]
        %v1669 = vld [vmem:[%s259 + $0x620] sm:$0xff]
        %v1670 = vld [vmem:[%s259 + $0x628] sm:$0xff]
        %v1671 = vld [vmem:[%s259 + $0x630] sm:$0xff]
        %v1672 = vld [vmem:[%s259 + $0x638] sm:$0xff]
        %v1673 = vld [vmem:[%s259 + $0x640] sm:$0xff]
        %v1674 = vld [vmem:[%s259 + $0x648] sm:$0xff]
        %v1675 = vld [vmem:[%s259 + $0x650] sm:$0xff]
        %v1676 = vld [vmem:[%s259 + $0x658] sm:$0xff]
        %v1677 = vld [vmem:[%s259 + $0x660] sm:$0xff]
        %v1678 = vld [vmem:[%s259 + $0x668] sm:$0xff]
        %v1679 = vld [vmem:[%s259 + $0x670] sm:$0xff]
        %v1680 = vld [vmem:[%s259 + $0x678] sm:$0xff]
        %v1681 = vld [vmem:[%s259 + $0x680] sm:$0xff]
        %v1682 = vld [vmem:[%s259 + $0x688] sm:$0xff]
        %v1683 = vld [vmem:[%s259 + $0x690] sm:$0xff]
        %v1684 = vld [vmem:[%s259 + $0x698] sm:$0xff]
        %v1685 = vld [vmem:[%s259 + $0x6a0] sm:$0xff]
        %v1686 = vld [vmem:[%s259 + $0x6a8] sm:$0xff]
        %v1687 = vld [vmem:[%s259 + $0x6b0] sm:$0xff]
        %v1688 = vld [vmem:[%s259 + $0x6b8] sm:$0xff]
        %v1689 = vld [vmem:[%s259 + $0x6c0] sm:$0xff]
        %v1690 = vld [vmem:[%s259 + $0x6c8] sm:$0xff]
        %v1691 = vld [vmem:[%s259 + $0x6d0] sm:$0xff]
        %v1692 = vld [vmem:[%s259 + $0x6d8] sm:$0xff]
        %v1693 = vld [vmem:[%s259 + $0x6e0] sm:$0xff]
        %v1694 = vld [vmem:[%s259 + $0x6e8] sm:$0xff]
        %v1695 = vld [vmem:[%s259 + $0x6f0] sm:$0xff]
        %v1696 = vld [vmem:[%s259 + $0x6f8] sm:$0xff]
        %v1697 = vld [vmem:[%s259 + $0x700] sm:$0xff]
        %v1698 = vld [vmem:[%s259 + $0x708] sm:$0xff]
        %v1699 = vld [vmem:[%s259 + $0x710] sm:$0xff]
        %v1700 = vld [vmem:[%s259 + $0x718] sm:$0xff]
        %v1701 = vld [vmem:[%s259 + $0x720] sm:$0xff]
        %v1702 = vld [vmem:[%s259 + $0x728] sm:$0xff]
        %v1703 = vld [vmem:[%s259 + $0x730] sm:$0xff]
        %v1704 = vld [vmem:[%s259 + $0x738] sm:$0xff]
        %v1705 = vld [vmem:[%s259 + $0x740] sm:$0xff]
        %v1706 = vld [vmem:[%s259 + $0x748] sm:$0xff]
        %v1707 = vld [vmem:[%s259 + $0x750] sm:$0xff]
        %v1708 = vld [vmem:[%s259 + $0x758] sm:$0xff]
        %v1709 = vld [vmem:[%s259 + $0x760] sm:$0xff]
        %v1710 = vld [vmem:[%s259 + $0x768] sm:$0xff]
        %v1711 = vld [vmem:[%s259 + $0x770] sm:$0xff]
        %v1712 = vld [vmem:[%s259 + $0x778] sm:$0xff]
        %v1713 = vld [vmem:[%s259 + $0x780] sm:$0xff]
        %v1714 = vld [vmem:[%s259 + $0x788] sm:$0xff]
        %v1715 = vld [vmem:[%s259 + $0x790] sm:$0xff]
        %v1716 = vld [vmem:[%s259 + $0x798] sm:$0xff]
        %v1717 = vld [vmem:[%s259 + $0x7a0] sm:$0xff]
        %v1718 = vld [vmem:[%s259 + $0x7a8] sm:$0xff]
        %v1719 = vld [vmem:[%s259 + $0x7b0] sm:$0xff]
        %v1720 = vld [vmem:[%s259 + $0x7b8] sm:$0xff]
        %v1721 = vld [vmem:[%s259 + $0x7c0] sm:$0xff]
        %v1722 = vld [vmem:[%s259 + $0x7c8] sm:$0xff]
        %v1723 = vld [vmem:[%s259 + $0x7d0] sm:$0xff]
        %v1724 = vld [vmem:[%s259 + $0x7d8] sm:$0xff]
        %v1725 = vld [vmem:[%s259 + $0x7e0] sm:$0xff]
        %v1726 = vld [vmem:[%s259 + $0x7e8] sm:$0xff]
        %v1727 = vld [vmem:[%s259 + $0x7f0] sm:$0xff]
        %v1728 = vld [vmem:[%s259 + $0x7f8] sm:$0xff]
        %v1729 = vld [vmem:[%s259 + $0x800] sm:$0xff]
        %v1730 = vld [vmem:[%s259 + $0x808] sm:$0xff]
        %v1731 = vld [vmem:[%s259 + $0x810] sm:$0xff]
        %v1732 = vld [vmem:[%s259 + $0x818] sm:$0xff]
        %v1733 = vld [vmem:[%s259 + $0x820] sm:$0xff]
        %v1734 = vld [vmem:[%s259 + $0x828] sm:$0xff]
        %v1735 = vld [vmem:[%s259 + $0x830] sm:$0xff]
        %v1736 = vld [vmem:[%s259 + $0x838] sm:$0xff]
        %v1737 = vld [vmem:[%s259 + $0x840] sm:$0xff]
        %v1738 = vld [vmem:[%s259 + $0x848] sm:$0xff]
        %v1739 = vld [vmem:[%s259 + $0x850] sm:$0xff]
        %v1740 = vld [vmem:[%s259 + $0x858] sm:$0xff]
        %v1741 = vld [vmem:[%s259 + $0x860] sm:$0xff]
        %v1742 = vld [vmem:[%s259 + $0x868] sm:$0xff]
        %v1743 = vld [vmem:[%s259 + $0x870] sm:$0xff]
        %v1744 = vld [vmem:[%s259 + $0x878] sm:$0xff]
        %v1745 = vld [vmem:[%s259 + $0x880] sm:$0xff]
        %v1746 = vld [vmem:[%s259 + $0x888] sm:$0xff]
        %v1747 = vld [vmem:[%s259 + $0x890] sm:$0xff]
        %v1748 = vld [vmem:[%s259 + $0x898] sm:$0xff]
        %v1749 = vld [vmem:[%s259 + $0x8a0] sm:$0xff]
        %v1750 = vld [vmem:[%s259 + $0x8a8] sm:$0xff]
        %v1751 = vld [vmem:[%s259 + $0x8b0] sm:$0xff]
        %v1752 = vld [vmem:[%s259 + $0x8b8] sm:$0xff]
        %v1753 = vld [vmem:[%s259 + $0x8c0] sm:$0xff]
        %v1754 = vld [vmem:[%s259 + $0x8c8] sm:$0xff]
        %v1755 = vld [vmem:[%s259 + $0x8d0] sm:$0xff]
        %v1756 = vld [vmem:[%s259 + $0x8d8] sm:$0xff]
        %v1757 = vld [vmem:[%s259 + $0x8e0] sm:$0xff]
        %v1758 = vld [vmem:[%s259 + $0x8e8] sm:$0xff]
        %v1759 = vld [vmem:[%s259 + $0x8f0] sm:$0xff]
        %v1760 = vld [vmem:[%s259 + $0x8f8] sm:$0xff]
        %v1761 = vld [vmem:[%s259 + $0x900] sm:$0xff]
        %v1762 = vld [vmem:[%s259 + $0x908] sm:$0xff]
        %v1763 = vld [vmem:[%s259 + $0x910] sm:$0xff]
        %v1764 = vld [vmem:[%s259 + $0x918] sm:$0xff]
        %v1765 = vld [vmem:[%s259 + $0x920] sm:$0xff]
        %v1766 = vld [vmem:[%s259 + $0x928] sm:$0xff]
        %v1767 = vld [vmem:[%s259 + $0x930] sm:$0xff]
        %v1768 = vld [vmem:[%s259 + $0x938] sm:$0xff]
        %v1769 = vld [vmem:[%s259 + $0x940] sm:$0xff]
        %v1770 = vld [vmem:[%s259 + $0x948] sm:$0xff]
        %v1771 = vld [vmem:[%s259 + $0x950] sm:$0xff]
        %v1772 = vld [vmem:[%s259 + $0x958] sm:$0xff]
        %v1773 = vld [vmem:[%s259 + $0x960] sm:$0xff]
        %v1774 = vld [vmem:[%s259 + $0x968] sm:$0xff]
        %v1775 = vld [vmem:[%s259 + $0x970] sm:$0xff]
        %v1776 = vld [vmem:[%s259 + $0x978] sm:$0xff]
        %v1777 = vld [vmem:[%s259 + $0x980] sm:$0xff]
        %v1778 = vld [vmem:[%s259 + $0x988] sm:$0xff]
        %v1779 = vld [vmem:[%s259 + $0x990] sm:$0xff]
        %v1780 = vld [vmem:[%s259 + $0x998] sm:$0xff]
        %v1781 = vld [vmem:[%s259 + $0x9a0] sm:$0xff]
        %v1782 = vld [vmem:[%s259 + $0x9a8] sm:$0xff]
        %v1783 = vld [vmem:[%s259 + $0x9b0] sm:$0xff]
        %v1784 = vld [vmem:[%s259 + $0x9b8] sm:$0xff]
        %v1785 = vld [vmem:[%s259 + $0x9c0] sm:$0xff]
        %v1786 = vld [vmem:[%s259 + $0x9c8] sm:$0xff]
        %v1787 = vld [vmem:[%s259 + $0x9d0] sm:$0xff]
        %v1788 = vld [vmem:[%s259 + $0x9d8] sm:$0xff]
        %v1789 = vld [vmem:[%s259 + $0x9e0] sm:$0xff]
        %v1790 = vld [vmem:[%s259 + $0x9e8] sm:$0xff]
        %v1791 = vld [vmem:[%s259 + $0x9f0] sm:$0xff]
        %v1792 = vld [vmem:[%s259 + $0x9f8] sm:$0xff]
        %v1793 = vld [vmem:[%s259 + $0xa00] sm:$0xff]
        %v1794 = vld [vmem:[%s259 + $0xa08] sm:$0xff]
        %v1795 = vld [vmem:[%s259 + $0xa10] sm:$0xff]
        %v1796 = vld [vmem:[%s259 + $0xa18] sm:$0xff]
        %v1797 = vld [vmem:[%s259 + $0xa20] sm:$0xff]
        %v1798 = vld [vmem:[%s259 + $0xa28] sm:$0xff]
        %v1799 = vld [vmem:[%s259 + $0xa30] sm:$0xff]
        %v1800 = vld [vmem:[%s259 + $0xa38] sm:$0xff]
        %v1801 = vld [vmem:[%s259 + $0xa40] sm:$0xff]
        %v1802 = vld [vmem:[%s259 + $0xa48] sm:$0xff]
        %v1803 = vld [vmem:[%s259 + $0xa50] sm:$0xff]
        %v1804 = vld [vmem:[%s259 + $0xa58] sm:$0xff]
        %v1805 = vld [vmem:[%s259 + $0xa60] sm:$0xff]
        %v1806 = vld [vmem:[%s259 + $0xa68] sm:$0xff]
        %v1807 = vld [vmem:[%s259 + $0xa70] sm:$0xff]
        %v1808 = vld [vmem:[%s259 + $0xa78] sm:$0xff]
        %v1809 = vld [vmem:[%s259 + $0xa80] sm:$0xff]
        %v1810 = vld [vmem:[%s259 + $0xa88] sm:$0xff]
        %v1811 = vld [vmem:[%s259 + $0xa90] sm:$0xff]
        %v1812 = vld [vmem:[%s259 + $0xa98] sm:$0xff]
        %v1813 = vld [vmem:[%s259 + $0xaa0] sm:$0xff]
        %v1814 = vld [vmem:[%s259 + $0xaa8] sm:$0xff]
        %v1815 = vld [vmem:[%s259 + $0xab0] sm:$0xff]
        %v1816 = vld [vmem:[%s259 + $0xab8] sm:$0xff]
        %v1817 = vld [vmem:[%s259 + $0xac0] sm:$0xff]
        %v1818 = vld [vmem:[%s259 + $0xac8] sm:$0xff]
        %v1819 = vld [vmem:[%s259 + $0xad0] sm:$0xff]
        %v1820 = vld [vmem:[%s259 + $0xad8] sm:$0xff]
        %v1821 = vld [vmem:[%s259 + $0xae0] sm:$0xff]
        %v1822 = vld [vmem:[%s259 + $0xae8] sm:$0xff]
        %v1823 = vld [vmem:[%s259 + $0xaf0] sm:$0xff]
        %v1824 = vld [vmem:[%s259 + $0xaf8] sm:$0xff]
        %v1825 = vld [vmem:[%s259 + $0xb00] sm:$0xff]
        %v1826 = vld [vmem:[%s259 + $0xb08] sm:$0xff]
        %v1827 = vld [vmem:[%s259 + $0xb10] sm:$0xff]
        %v1828 = vld [vmem:[%s259 + $0xb18] sm:$0xff]
        %v1829 = vld [vmem:[%s259 + $0xb20] sm:$0xff]
        %v1830 = vld [vmem:[%s259 + $0xb28] sm:$0xff]
        %v1831 = vld [vmem:[%s259 + $0xb30] sm:$0xff]
        %v1832 = vld [vmem:[%s259 + $0xb38] sm:$0xff]
        %s1833 = smul.u32 %s27, 18
        %s1834 = smul.addr %s1833, 8
        %s1835 = scalar_lea.vmem [#allocation3], %s1834
        %v1836 = vld [vmem:[%s1835] sm:$0xff]
        %v1837 = vld [vmem:[%s1835 + $0x8] sm:$0xff]
        %v1838 = vld [vmem:[%s1835 + $0x10] sm:$0xff]
        %v1839 = vld [vmem:[%s1835 + $0x18] sm:$0xff]
        %v1840 = vld [vmem:[%s1835 + $0x20] sm:$0xff]
        %v1841 = vld [vmem:[%s1835 + $0x28] sm:$0xff]
        %v1842 = vld [vmem:[%s1835 + $0x30] sm:$0xff]
        %v1843 = vld [vmem:[%s1835 + $0x38] sm:$0xff]
        %v1844 = vld [vmem:[%s1835 + $0x40] sm:$0xff]
        %v1845 = vld [vmem:[%s1835 + $0x48] sm:$0x3]
        %v1846 = vld [vmem:[%s1835 + $0x50] sm:$0x3]
        %v1847 = vld [vmem:[%s1835 + $0x58] sm:$0x3]
        %v1848 = vld [vmem:[%s1835 + $0x60] sm:$0x3]
        %v1849 = vld [vmem:[%s1835 + $0x68] sm:$0x3]
        %v1850 = vld [vmem:[%s1835 + $0x70] sm:$0x3]
        %v1851 = vld [vmem:[%s1835 + $0x78] sm:$0x3]
        %v1852 = vld [vmem:[%s1835 + $0x80] sm:$0x3]
        %v1853 = vld [vmem:[%s1835 + $0x88] sm:$0x3]
        %v1854 = vmul.f32 %v1473, %v1437
        %v1855 = vmul.f32 %v1474, %v1438
        %v1856 = vmul.f32 %v1475, %v1439
        %v1857 = vmul.f32 %v1476, %v1440
        %v1858 = vmul.f32 %v1477, %v1441
        %v1859 = vmul.f32 %v1478, %v1442
        %v1860 = vmul.f32 %v1479, %v1443
        %v1861 = vmul.f32 %v1480, %v1444
        %v1862 = vmul.f32 %v1481, %v1445
        %v1863 = vmul.f32 %v1482, %v1446
        %v1864 = vmul.f32 %v1483, %v1447
        %v1865 = vmul.f32 %v1484, %v1448
        %v1866 = vmul.f32 %v1485, %v1449
        %v1867 = vmul.f32 %v1486, %v1450
        %v1868 = vmul.f32 %v1487, %v1451
        %v1869 = vmul.f32 %v1488, %v1452
        %v1870 = vmul.f32 %v1489, %v1453
        %v1871 = vmul.f32 %v1490, %v1454
        %v1872 = vmul.f32 %v1491, %v1455
        %v1873 = vmul.f32 %v1492, %v1456
        %v1874 = vmul.f32 %v1493, %v1457
        %v1875 = vmul.f32 %v1494, %v1458
        %v1876 = vmul.f32 %v1495, %v1459
        %v1877 = vmul.f32 %v1496, %v1460
        %v1878 = vmul.f32 %v1497, %v1461
        %v1879 = vmul.f32 %v1498, %v1462
        %v1880 = vmul.f32 %v1499, %v1463
        %v1881 = vmul.f32 %v1500, %v1464
        %v1882 = vmul.f32 %v1501, %v1465
        %v1883 = vmul.f32 %v1502, %v1466
        %v1884 = vmul.f32 %v1503, %v1467
        %v1885 = vmul.f32 %v1504, %v1468
        %v1886 = vmul.f32 %v1505, %v1469
        %v1887 = vmul.f32 %v1506, %v1470
        %v1888 = vmul.f32 %v1507, %v1471
        %v1889 = vmul.f32 %v1508, %v1472
        %v1890 = vmul.f32 %v1509, %v1437
        %v1891 = vmul.f32 %v1510, %v1438
        %v1892 = vmul.f32 %v1511, %v1439
        %v1893 = vmul.f32 %v1512, %v1440
        %v1894 = vmul.f32 %v1513, %v1441
        %v1895 = vmul.f32 %v1514, %v1442
        %v1896 = vmul.f32 %v1515, %v1443
        %v1897 = vmul.f32 %v1516, %v1444
        %v1898 = vmul.f32 %v1517, %v1445
        %v1899 = vmul.f32 %v1518, %v1446
        %v1900 = vmul.f32 %v1519, %v1447
        %v1901 = vmul.f32 %v1520, %v1448
        %v1902 = vmul.f32 %v1521, %v1449
        %v1903 = vmul.f32 %v1522, %v1450
        %v1904 = vmul.f32 %v1523, %v1451
        %v1905 = vmul.f32 %v1524, %v1452
        %v1906 = vmul.f32 %v1525, %v1453
        %v1907 = vmul.f32 %v1526, %v1454
        %v1908 = vmul.f32 %v1527, %v1455
        %v1909 = vmul.f32 %v1528, %v1456
        %v1910 = vmul.f32 %v1529, %v1457
        %v1911 = vmul.f32 %v1530, %v1458
        %v1912 = vmul.f32 %v1531, %v1459
        %v1913 = vmul.f32 %v1532, %v1460
        %v1914 = vmul.f32 %v1533, %v1461
        %v1915 = vmul.f32 %v1534, %v1462
        %v1916 = vmul.f32 %v1535, %v1463
        %v1917 = vmul.f32 %v1536, %v1464
        %v1918 = vmul.f32 %v1537, %v1465
        %v1919 = vmul.f32 %v1538, %v1466
        %v1920 = vmul.f32 %v1539, %v1467
        %v1921 = vmul.f32 %v1540, %v1468
        %v1922 = vmul.f32 %v1541, %v1469
        %v1923 = vmul.f32 %v1542, %v1470
        %v1924 = vmul.f32 %v1543, %v1471
        %v1925 = vmul.f32 %v1544, %v1472
        %v1926 = vmul.f32 %v1545, %v1437
        %v1927 = vmul.f32 %v1546, %v1438
        %v1928 = vmul.f32 %v1547, %v1439
        %v1929 = vmul.f32 %v1548, %v1440
        %v1930 = vmul.f32 %v1549, %v1441
        %v1931 = vmul.f32 %v1550, %v1442
        %v1932 = vmul.f32 %v1551, %v1443
        %v1933 = vmul.f32 %v1552, %v1444
        %v1934 = vmul.f32 %v1553, %v1445
        %v1935 = vmul.f32 %v1554, %v1446
        %v1936 = vmul.f32 %v1555, %v1447
        %v1937 = vmul.f32 %v1556, %v1448
        %v1938 = vmul.f32 %v1557, %v1449
        %v1939 = vmul.f32 %v1558, %v1450
        %v1940 = vmul.f32 %v1559, %v1451
        %v1941 = vmul.f32 %v1560, %v1452
        %v1942 = vmul.f32 %v1561, %v1453
        %v1943 = vmul.f32 %v1562, %v1454
        %v1944 = vmul.f32 %v1563, %v1455
        %v1945 = vmul.f32 %v1564, %v1456
        %v1946 = vmul.f32 %v1565, %v1457
        %v1947 = vmul.f32 %v1566, %v1458
        %v1948 = vmul.f32 %v1567, %v1459
        %v1949 = vmul.f32 %v1568, %v1460
        %v1950 = vmul.f32 %v1569, %v1461
        %v1951 = vmul.f32 %v1570, %v1462
        %v1952 = vmul.f32 %v1571, %v1463
        %v1953 = vmul.f32 %v1572, %v1464
        %v1954 = vmul.f32 %v1573, %v1465
        %v1955 = vmul.f32 %v1574, %v1466
        %v1956 = vmul.f32 %v1575, %v1467
        %v1957 = vmul.f32 %v1576, %v1468
        %v1958 = vmul.f32 %v1577, %v1469
        %v1959 = vmul.f32 %v1578, %v1470
        %v1960 = vmul.f32 %v1579, %v1471
        %v1961 = vmul.f32 %v1580, %v1472
        %v1962 = vmul.f32 %v1581, %v1437
        %v1963 = vmul.f32 %v1582, %v1438
        %v1964 = vmul.f32 %v1583, %v1439
        %v1965 = vmul.f32 %v1584, %v1440
        %v1966 = vmul.f32 %v1585, %v1441
        %v1967 = vmul.f32 %v1586, %v1442
        %v1968 = vmul.f32 %v1587, %v1443
        %v1969 = vmul.f32 %v1588, %v1444
        %v1970 = vmul.f32 %v1589, %v1445
        %v1971 = vmul.f32 %v1590, %v1446
        %v1972 = vmul.f32 %v1591, %v1447
        %v1973 = vmul.f32 %v1592, %v1448
        %v1974 = vmul.f32 %v1593, %v1449
        %v1975 = vmul.f32 %v1594, %v1450
        %v1976 = vmul.f32 %v1595, %v1451
        %v1977 = vmul.f32 %v1596, %v1452
        %v1978 = vmul.f32 %v1597, %v1453
        %v1979 = vmul.f32 %v1598, %v1454
        %v1980 = vmul.f32 %v1599, %v1455
        %v1981 = vmul.f32 %v1600, %v1456
        %v1982 = vmul.f32 %v1601, %v1457
        %v1983 = vmul.f32 %v1602, %v1458
        %v1984 = vmul.f32 %v1603, %v1459
        %v1985 = vmul.f32 %v1604, %v1460
        %v1986 = vmul.f32 %v1605, %v1461
        %v1987 = vmul.f32 %v1606, %v1462
        %v1988 = vmul.f32 %v1607, %v1463
        %v1989 = vmul.f32 %v1608, %v1464
        %v1990 = vmul.f32 %v1609, %v1465
        %v1991 = vmul.f32 %v1610, %v1466
        %v1992 = vmul.f32 %v1611, %v1467
        %v1993 = vmul.f32 %v1612, %v1468
        %v1994 = vmul.f32 %v1613, %v1469
        %v1995 = vmul.f32 %v1614, %v1470
        %v1996 = vmul.f32 %v1615, %v1471
        %v1997 = vmul.f32 %v1616, %v1472
        %v1998 = vmul.f32 %v1617, %v1437
        %v1999 = vmul.f32 %v1618, %v1438
        %v2000 = vmul.f32 %v1619, %v1439
        %v2001 = vmul.f32 %v1620, %v1440
        %v2002 = vmul.f32 %v1621, %v1441
        %v2003 = vmul.f32 %v1622, %v1442
        %v2004 = vmul.f32 %v1623, %v1443
        %v2005 = vmul.f32 %v1624, %v1444
        %v2006 = vmul.f32 %v1625, %v1445
        %v2007 = vmul.f32 %v1626, %v1446
        %v2008 = vmul.f32 %v1627, %v1447
        %v2009 = vmul.f32 %v1628, %v1448
        %v2010 = vmul.f32 %v1629, %v1449
        %v2011 = vmul.f32 %v1630, %v1450
        %v2012 = vmul.f32 %v1631, %v1451
        %v2013 = vmul.f32 %v1632, %v1452
        %v2014 = vmul.f32 %v1633, %v1453
        %v2015 = vmul.f32 %v1634, %v1454
        %v2016 = vmul.f32 %v1635, %v1455
        %v2017 = vmul.f32 %v1636, %v1456
        %v2018 = vmul.f32 %v1637, %v1457
        %v2019 = vmul.f32 %v1638, %v1458
        %v2020 = vmul.f32 %v1639, %v1459
        %v2021 = vmul.f32 %v1640, %v1460
        %v2022 = vmul.f32 %v1641, %v1461
        %v2023 = vmul.f32 %v1642, %v1462
        %v2024 = vmul.f32 %v1643, %v1463
        %v2025 = vmul.f32 %v1644, %v1464
        %v2026 = vmul.f32 %v1645, %v1465
        %v2027 = vmul.f32 %v1646, %v1466
        %v2028 = vmul.f32 %v1647, %v1467
        %v2029 = vmul.f32 %v1648, %v1468
        %v2030 = vmul.f32 %v1649, %v1469
        %v2031 = vmul.f32 %v1650, %v1470
        %v2032 = vmul.f32 %v1651, %v1471
        %v2033 = vmul.f32 %v1652, %v1472
        %v2034 = vmul.f32 %v1653, %v1437
        %v2035 = vmul.f32 %v1654, %v1438
        %v2036 = vmul.f32 %v1655, %v1439
        %v2037 = vmul.f32 %v1656, %v1440
        %v2038 = vmul.f32 %v1657, %v1441
        %v2039 = vmul.f32 %v1658, %v1442
        %v2040 = vmul.f32 %v1659, %v1443
        %v2041 = vmul.f32 %v1660, %v1444
        %v2042 = vmul.f32 %v1661, %v1445
        %v2043 = vmul.f32 %v1662, %v1446
        %v2044 = vmul.f32 %v1663, %v1447
        %v2045 = vmul.f32 %v1664, %v1448
        %v2046 = vmul.f32 %v1665, %v1449
        %v2047 = vmul.f32 %v1666, %v1450
        %v2048 = vmul.f32 %v1667, %v1451
        %v2049 = vmul.f32 %v1668, %v1452
        %v2050 = vmul.f32 %v1669, %v1453
        %v2051 = vmul.f32 %v1670, %v1454
        %v2052 = vmul.f32 %v1671, %v1455
        %v2053 = vmul.f32 %v1672, %v1456
        %v2054 = vmul.f32 %v1673, %v1457
        %v2055 = vmul.f32 %v1674, %v1458
        %v2056 = vmul.f32 %v1675, %v1459
        %v2057 = vmul.f32 %v1676, %v1460
        %v2058 = vmul.f32 %v1677, %v1461
        %v2059 = vmul.f32 %v1678, %v1462
        %v2060 = vmul.f32 %v1679, %v1463
        %v2061 = vmul.f32 %v1680, %v1464
        %v2062 = vmul.f32 %v1681, %v1465
        %v2063 = vmul.f32 %v1682, %v1466
        %v2064 = vmul.f32 %v1683, %v1467
        %v2065 = vmul.f32 %v1684, %v1468
        %v2066 = vmul.f32 %v1685, %v1469
        %v2067 = vmul.f32 %v1686, %v1470
        %v2068 = vmul.f32 %v1687, %v1471
        %v2069 = vmul.f32 %v1688, %v1472
        %v2070 = vmul.f32 %v1689, %v1437
        %v2071 = vmul.f32 %v1690, %v1438
        %v2072 = vmul.f32 %v1691, %v1439
        %v2073 = vmul.f32 %v1692, %v1440
        %v2074 = vmul.f32 %v1693, %v1441
        %v2075 = vmul.f32 %v1694, %v1442
        %v2076 = vmul.f32 %v1695, %v1443
        %v2077 = vmul.f32 %v1696, %v1444
        %v2078 = vmul.f32 %v1697, %v1445
        %v2079 = vmul.f32 %v1698, %v1446
        %v2080 = vmul.f32 %v1699, %v1447
        %v2081 = vmul.f32 %v1700, %v1448
        %v2082 = vmul.f32 %v1701, %v1449
        %v2083 = vmul.f32 %v1702, %v1450
        %v2084 = vmul.f32 %v1703, %v1451
        %v2085 = vmul.f32 %v1704, %v1452
        %v2086 = vmul.f32 %v1705, %v1453
        %v2087 = vmul.f32 %v1706, %v1454
        %v2088 = vmul.f32 %v1707, %v1455
        %v2089 = vmul.f32 %v1708, %v1456
        %v2090 = vmul.f32 %v1709, %v1457
        %v2091 = vmul.f32 %v1710, %v1458
        %v2092 = vmul.f32 %v1711, %v1459
        %v2093 = vmul.f32 %v1712, %v1460
        %v2094 = vmul.f32 %v1713, %v1461
        %v2095 = vmul.f32 %v1714, %v1462
        %v2096 = vmul.f32 %v1715, %v1463
        %v2097 = vmul.f32 %v1716, %v1464
        %v2098 = vmul.f32 %v1717, %v1465
        %v2099 = vmul.f32 %v1718, %v1466
        %v2100 = vmul.f32 %v1719, %v1467
        %v2101 = vmul.f32 %v1720, %v1468
        %v2102 = vmul.f32 %v1721, %v1469
        %v2103 = vmul.f32 %v1722, %v1470
        %v2104 = vmul.f32 %v1723, %v1471
        %v2105 = vmul.f32 %v1724, %v1472
        %v2106 = vmul.f32 %v1725, %v1437
        %v2107 = vmul.f32 %v1726, %v1438
        %v2108 = vmul.f32 %v1727, %v1439
        %v2109 = vmul.f32 %v1728, %v1440
        %v2110 = vmul.f32 %v1729, %v1441
        %v2111 = vmul.f32 %v1730, %v1442
        %v2112 = vmul.f32 %v1731, %v1443
        %v2113 = vmul.f32 %v1732, %v1444
        %v2114 = vmul.f32 %v1733, %v1445
        %v2115 = vmul.f32 %v1734, %v1446
        %v2116 = vmul.f32 %v1735, %v1447
        %v2117 = vmul.f32 %v1736, %v1448
        %v2118 = vmul.f32 %v1737, %v1449
        %v2119 = vmul.f32 %v1738, %v1450
        %v2120 = vmul.f32 %v1739, %v1451
        %v2121 = vmul.f32 %v1740, %v1452
        %v2122 = vmul.f32 %v1741, %v1453
        %v2123 = vmul.f32 %v1742, %v1454
        %v2124 = vmul.f32 %v1743, %v1455
        %v2125 = vmul.f32 %v1744, %v1456
        %v2126 = vmul.f32 %v1745, %v1457
        %v2127 = vmul.f32 %v1746, %v1458
        %v2128 = vmul.f32 %v1747, %v1459
        %v2129 = vmul.f32 %v1748, %v1460
        %v2130 = vmul.f32 %v1749, %v1461
        %v2131 = vmul.f32 %v1750, %v1462
        %v2132 = vmul.f32 %v1751, %v1463
        %v2133 = vmul.f32 %v1752, %v1464
        %v2134 = vmul.f32 %v1753, %v1465
        %v2135 = vmul.f32 %v1754, %v1466
        %v2136 = vmul.f32 %v1755, %v1467
        %v2137 = vmul.f32 %v1756, %v1468
        %v2138 = vmul.f32 %v1757, %v1469
        %v2139 = vmul.f32 %v1758, %v1470
        %v2140 = vmul.f32 %v1759, %v1471
        %v2141 = vmul.f32 %v1760, %v1472
        %v2142 = vmul.f32 %v1761, %v1437
        %v2143 = vmul.f32 %v1762, %v1438
        %v2144 = vmul.f32 %v1763, %v1439
        %v2145 = vmul.f32 %v1764, %v1440
        %v2146 = vmul.f32 %v1765, %v1441
        %v2147 = vmul.f32 %v1766, %v1442
        %v2148 = vmul.f32 %v1767, %v1443
        %v2149 = vmul.f32 %v1768, %v1444
        %v2150 = vmul.f32 %v1769, %v1445
        %v2151 = vmul.f32 %v1770, %v1446
        %v2152 = vmul.f32 %v1771, %v1447
        %v2153 = vmul.f32 %v1772, %v1448
        %v2154 = vmul.f32 %v1773, %v1449
        %v2155 = vmul.f32 %v1774, %v1450
        %v2156 = vmul.f32 %v1775, %v1451
        %v2157 = vmul.f32 %v1776, %v1452
        %v2158 = vmul.f32 %v1777, %v1453
        %v2159 = vmul.f32 %v1778, %v1454
        %v2160 = vmul.f32 %v1779, %v1455
        %v2161 = vmul.f32 %v1780, %v1456
        %v2162 = vmul.f32 %v1781, %v1457
        %v2163 = vmul.f32 %v1782, %v1458
        %v2164 = vmul.f32 %v1783, %v1459
        %v2165 = vmul.f32 %v1784, %v1460
        %v2166 = vmul.f32 %v1785, %v1461
        %v2167 = vmul.f32 %v1786, %v1462
        %v2168 = vmul.f32 %v1787, %v1463
        %v2169 = vmul.f32 %v1788, %v1464
        %v2170 = vmul.f32 %v1789, %v1465
        %v2171 = vmul.f32 %v1790, %v1466
        %v2172 = vmul.f32 %v1791, %v1467
        %v2173 = vmul.f32 %v1792, %v1468
        %v2174 = vmul.f32 %v1793, %v1469
        %v2175 = vmul.f32 %v1794, %v1470
        %v2176 = vmul.f32 %v1795, %v1471
        %v2177 = vmul.f32 %v1796, %v1472
        %v2178 = vmul.f32 %v1797, %v1437
        %v2179 = vmul.f32 %v1798, %v1438
        %v2180 = vmul.f32 %v1799, %v1439
        %v2181 = vmul.f32 %v1800, %v1440
        %v2182 = vmul.f32 %v1801, %v1441
        %v2183 = vmul.f32 %v1802, %v1442
        %v2184 = vmul.f32 %v1803, %v1443
        %v2185 = vmul.f32 %v1804, %v1444
        %v2186 = vmul.f32 %v1805, %v1445
        %v2187 = vmul.f32 %v1806, %v1446
        %v2188 = vmul.f32 %v1807, %v1447
        %v2189 = vmul.f32 %v1808, %v1448
        %v2190 = vmul.f32 %v1809, %v1449
        %v2191 = vmul.f32 %v1810, %v1450
        %v2192 = vmul.f32 %v1811, %v1451
        %v2193 = vmul.f32 %v1812, %v1452
        %v2194 = vmul.f32 %v1813, %v1453
        %v2195 = vmul.f32 %v1814, %v1454
        %v2196 = vmul.f32 %v1815, %v1455
        %v2197 = vmul.f32 %v1816, %v1456
        %v2198 = vmul.f32 %v1817, %v1457
        %v2199 = vmul.f32 %v1818, %v1458
        %v2200 = vmul.f32 %v1819, %v1459
        %v2201 = vmul.f32 %v1820, %v1460
        %v2202 = vmul.f32 %v1821, %v1461
        %v2203 = vmul.f32 %v1822, %v1462
        %v2204 = vmul.f32 %v1823, %v1463
        %v2205 = vmul.f32 %v1824, %v1464
        %v2206 = vmul.f32 %v1825, %v1465
        %v2207 = vmul.f32 %v1826, %v1466
        %v2208 = vmul.f32 %v1827, %v1467
        %v2209 = vmul.f32 %v1828, %v1468
        %v2210 = vmul.f32 %v1829, %v1469
        %v2211 = vmul.f32 %v1830, %v1470
        %v2212 = vmul.f32 %v1831, %v1471
        %v2213 = vmul.f32 %v1832, %v1472
        %v2214 = vadd.f32 %v1854, %v1863
        %v2215 = vadd.f32 %v2214, %v1872
        %v2216 = vadd.f32 %v2215, %v1881
        %v2217 = vrot.slane %v2216, 4
        %v2218 = vadd.f32 %v2216, %v2217
        %v2219 = vrot.slane %v2218, 2
        %v2220 = vadd.f32 %v2218, %v2219
        %v2221 = vrot.slane %v2220, 1
        %v2222 = vadd.f32 %v2220, %v2221
        %v2223 = vadd.f32 %v1855, %v1864
        %v2224 = vadd.f32 %v2223, %v1873
        %v2225 = vadd.f32 %v2224, %v1882
        %v2226 = vrot.slane %v2225, 4
        %v2227 = vadd.f32 %v2225, %v2226
        %v2228 = vrot.slane %v2227, 2
        %v2229 = vadd.f32 %v2227, %v2228
        %v2230 = vrot.slane %v2229, 1
        %v2231 = vadd.f32 %v2229, %v2230
        %v2232 = vadd.f32 %v1856, %v1865
        %v2233 = vadd.f32 %v2232, %v1874
        %v2234 = vadd.f32 %v2233, %v1883
        %v2235 = vrot.slane %v2234, 4
        %v2236 = vadd.f32 %v2234, %v2235
        %v2237 = vrot.slane %v2236, 2
        %v2238 = vadd.f32 %v2236, %v2237
        %v2239 = vrot.slane %v2238, 1
        %v2240 = vadd.f32 %v2238, %v2239
        %v2241 = vadd.f32 %v1857, %v1866
        %v2242 = vadd.f32 %v2241, %v1875
        %v2243 = vadd.f32 %v2242, %v1884
        %v2244 = vrot.slane %v2243, 4
        %v2245 = vadd.f32 %v2243, %v2244
        %v2246 = vrot.slane %v2245, 2
        %v2247 = vadd.f32 %v2245, %v2246
        %v2248 = vrot.slane %v2247, 1
        %v2249 = vadd.f32 %v2247, %v2248
        %v2250 = vadd.f32 %v1858, %v1867
        %v2251 = vadd.f32 %v2250, %v1876
        %v2252 = vadd.f32 %v2251, %v1885
        %v2253 = vrot.slane %v2252, 4
        %v2254 = vadd.f32 %v2252, %v2253
        %v2255 = vrot.slane %v2254, 2
        %v2256 = vadd.f32 %v2254, %v2255
        %v2257 = vrot.slane %v2256, 1
        %v2258 = vadd.f32 %v2256, %v2257
        %v2259 = vadd.f32 %v1859, %v1868
        %v2260 = vadd.f32 %v2259, %v1877
        %v2261 = vadd.f32 %v2260, %v1886
        %v2262 = vrot.slane %v2261, 4
        %v2263 = vadd.f32 %v2261, %v2262
        %v2264 = vrot.slane %v2263, 2
        %v2265 = vadd.f32 %v2263, %v2264
        %v2266 = vrot.slane %v2265, 1
        %v2267 = vadd.f32 %v2265, %v2266
        %v2268 = vadd.f32 %v1860, %v1869
        %v2269 = vadd.f32 %v2268, %v1878
        %v2270 = vadd.f32 %v2269, %v1887
        %v2271 = vrot.slane %v2270, 4
        %v2272 = vadd.f32 %v2270, %v2271
        %v2273 = vrot.slane %v2272, 2
        %v2274 = vadd.f32 %v2272, %v2273
        %v2275 = vrot.slane %v2274, 1
        %v2276 = vadd.f32 %v2274, %v2275
        %v2277 = vadd.f32 %v1861, %v1870
        %v2278 = vadd.f32 %v2277, %v1879
        %v2279 = vadd.f32 %v2278, %v1888
        %v2280 = vrot.slane %v2279, 4
        %v2281 = vadd.f32 %v2279, %v2280
        %v2282 = vrot.slane %v2281, 2
        %v2283 = vadd.f32 %v2281, %v2282
        %v2284 = vrot.slane %v2283, 1
        %v2285 = vadd.f32 %v2283, %v2284
        %vm2286 = vcmask 523264
        %v2287 = vsel %vm2286, %v1862, 0.0
        %v2288 = vsel %vm2286, %v1871, 0.0
        %v2289 = vadd.f32 %v2287, %v2288
        %v2290 = vsel %vm2286, %v1880, 0.0
        %v2291 = vadd.f32 %v2289, %v2290
        %v2292 = vsel %vm2286, %v1889, 0.0
        %v2293 = vadd.f32 %v2291, %v2292
        %v2294 = vrot.slane %v2293, 4
        %v2295 = vadd.f32 %v2293, %v2294
        %v2296 = vrot.slane %v2295, 2
        %v2297 = vadd.f32 %v2295, %v2296
        %v2298 = vrot.slane %v2297, 1
        %v2299 = vadd.f32 %v2297, %v2298
        %v2300 = vadd.f32 %v1890, %v1899
        %v2301 = vadd.f32 %v2300, %v1908
        %v2302 = vadd.f32 %v2301, %v1917
        %v2303 = vrot.slane %v2302, 4
        %v2304 = vadd.f32 %v2302, %v2303
        %v2305 = vrot.slane %v2304, 2
        %v2306 = vadd.f32 %v2304, %v2305
        %v2307 = vrot.slane %v2306, 1
        %v2308 = vadd.f32 %v2306, %v2307
        %v2309 = vadd.f32 %v1891, %v1900
        %v2310 = vadd.f32 %v2309, %v1909
        %v2311 = vadd.f32 %v2310, %v1918
        %v2312 = vrot.slane %v2311, 4
        %v2313 = vadd.f32 %v2311, %v2312
        %v2314 = vrot.slane %v2313, 2
        %v2315 = vadd.f32 %v2313, %v2314
        %v2316 = vrot.slane %v2315, 1
        %v2317 = vadd.f32 %v2315, %v2316
        %v2318 = vadd.f32 %v1892, %v1901
        %v2319 = vadd.f32 %v2318, %v1910
        %v2320 = vadd.f32 %v2319, %v1919
        %v2321 = vrot.slane %v2320, 4
        %v2322 = vadd.f32 %v2320, %v2321
        %v2323 = vrot.slane %v2322, 2
        %v2324 = vadd.f32 %v2322, %v2323
        %v2325 = vrot.slane %v2324, 1
        %v2326 = vadd.f32 %v2324, %v2325
        %v2327 = vadd.f32 %v1893, %v1902
        %v2328 = vadd.f32 %v2327, %v1911
        %v2329 = vadd.f32 %v2328, %v1920
        %v2330 = vrot.slane %v2329, 4
        %v2331 = vadd.f32 %v2329, %v2330
        %v2332 = vrot.slane %v2331, 2
        %v2333 = vadd.f32 %v2331, %v2332
        %v2334 = vrot.slane %v2333, 1
        %v2335 = vadd.f32 %v2333, %v2334
        %v2336 = vadd.f32 %v1894, %v1903
        %v2337 = vadd.f32 %v2336, %v1912
        %v2338 = vadd.f32 %v2337, %v1921
        %v2339 = vrot.slane %v2338, 4
        %v2340 = vadd.f32 %v2338, %v2339
        %v2341 = vrot.slane %v2340, 2
        %v2342 = vadd.f32 %v2340, %v2341
        %v2343 = vrot.slane %v2342, 1
        %v2344 = vadd.f32 %v2342, %v2343
        %v2345 = vadd.f32 %v1895, %v1904
        %v2346 = vadd.f32 %v2345, %v1913
        %v2347 = vadd.f32 %v2346, %v1922
        %v2348 = vrot.slane %v2347, 4
        %v2349 = vadd.f32 %v2347, %v2348
        %v2350 = vrot.slane %v2349, 2
        %v2351 = vadd.f32 %v2349, %v2350
        %v2352 = vrot.slane %v2351, 1
        %v2353 = vadd.f32 %v2351, %v2352
        %v2354 = vadd.f32 %v1896, %v1905
        %v2355 = vadd.f32 %v2354, %v1914
        %v2356 = vadd.f32 %v2355, %v1923
        %v2357 = vrot.slane %v2356, 4
        %v2358 = vadd.f32 %v2356, %v2357
        %v2359 = vrot.slane %v2358, 2
        %v2360 = vadd.f32 %v2358, %v2359
        %v2361 = vrot.slane %v2360, 1
        %v2362 = vadd.f32 %v2360, %v2361
        %v2363 = vadd.f32 %v1897, %v1906
        %v2364 = vadd.f32 %v2363, %v1915
        %v2365 = vadd.f32 %v2364, %v1924
        %v2366 = vrot.slane %v2365, 4
        %v2367 = vadd.f32 %v2365, %v2366
        %v2368 = vrot.slane %v2367, 2
        %v2369 = vadd.f32 %v2367, %v2368
        %v2370 = vrot.slane %v2369, 1
        %v2371 = vadd.f32 %v2369, %v2370
        %v2372 = vsel %vm2286, %v1898, 0.0
        %v2373 = vsel %vm2286, %v1907, 0.0
        %v2374 = vadd.f32 %v2372, %v2373
        %v2375 = vsel %vm2286, %v1916, 0.0
        %v2376 = vadd.f32 %v2374, %v2375
        %v2377 = vsel %vm2286, %v1925, 0.0
        %v2378 = vadd.f32 %v2376, %v2377
        %v2379 = vrot.slane %v2378, 4
        %v2380 = vadd.f32 %v2378, %v2379
        %v2381 = vrot.slane %v2380, 2
        %v2382 = vadd.f32 %v2380, %v2381
        %v2383 = vrot.slane %v2382, 1
        %v2384 = vadd.f32 %v2382, %v2383
        %v2385 = vadd.f32 %v1926, %v1935
        %v2386 = vadd.f32 %v2385, %v1944
        %v2387 = vadd.f32 %v2386, %v1953
        %v2388 = vrot.slane %v2387, 4
        %v2389 = vadd.f32 %v2387, %v2388
        %v2390 = vrot.slane %v2389, 2
        %v2391 = vadd.f32 %v2389, %v2390
        %v2392 = vrot.slane %v2391, 1
        %v2393 = vadd.f32 %v2391, %v2392
        %v2394 = vadd.f32 %v1927, %v1936
        %v2395 = vadd.f32 %v2394, %v1945
        %v2396 = vadd.f32 %v2395, %v1954
        %v2397 = vrot.slane %v2396, 4
        %v2398 = vadd.f32 %v2396, %v2397
        %v2399 = vrot.slane %v2398, 2
        %v2400 = vadd.f32 %v2398, %v2399
        %v2401 = vrot.slane %v2400, 1
        %v2402 = vadd.f32 %v2400, %v2401
        %v2403 = vadd.f32 %v1928, %v1937
        %v2404 = vadd.f32 %v2403, %v1946
        %v2405 = vadd.f32 %v2404, %v1955
        %v2406 = vrot.slane %v2405, 4
        %v2407 = vadd.f32 %v2405, %v2406
        %v2408 = vrot.slane %v2407, 2
        %v2409 = vadd.f32 %v2407, %v2408
        %v2410 = vrot.slane %v2409, 1
        %v2411 = vadd.f32 %v2409, %v2410
        %v2412 = vadd.f32 %v1929, %v1938
        %v2413 = vadd.f32 %v2412, %v1947
        %v2414 = vadd.f32 %v2413, %v1956
        %v2415 = vrot.slane %v2414, 4
        %v2416 = vadd.f32 %v2414, %v2415
        %v2417 = vrot.slane %v2416, 2
        %v2418 = vadd.f32 %v2416, %v2417
        %v2419 = vrot.slane %v2418, 1
        %v2420 = vadd.f32 %v2418, %v2419
        %v2421 = vadd.f32 %v1930, %v1939
        %v2422 = vadd.f32 %v2421, %v1948
        %v2423 = vadd.f32 %v2422, %v1957
        %v2424 = vrot.slane %v2423, 4
        %v2425 = vadd.f32 %v2423, %v2424
        %v2426 = vrot.slane %v2425, 2
        %v2427 = vadd.f32 %v2425, %v2426
        %v2428 = vrot.slane %v2427, 1
        %v2429 = vadd.f32 %v2427, %v2428
        %v2430 = vadd.f32 %v1931, %v1940
        %v2431 = vadd.f32 %v2430, %v1949
        %v2432 = vadd.f32 %v2431, %v1958
        %v2433 = vrot.slane %v2432, 4
        %v2434 = vadd.f32 %v2432, %v2433
        %v2435 = vrot.slane %v2434, 2
        %v2436 = vadd.f32 %v2434, %v2435
        %v2437 = vrot.slane %v2436, 1
        %v2438 = vadd.f32 %v2436, %v2437
        %v2439 = vadd.f32 %v1932, %v1941
        %v2440 = vadd.f32 %v2439, %v1950
        %v2441 = vadd.f32 %v2440, %v1959
        %v2442 = vrot.slane %v2441, 4
        %v2443 = vadd.f32 %v2441, %v2442
        %v2444 = vrot.slane %v2443, 2
        %v2445 = vadd.f32 %v2443, %v2444
        %v2446 = vrot.slane %v2445, 1
        %v2447 = vadd.f32 %v2445, %v2446
        %v2448 = vadd.f32 %v1933, %v1942
        %v2449 = vadd.f32 %v2448, %v1951
        %v2450 = vadd.f32 %v2449, %v1960
        %v2451 = vrot.slane %v2450, 4
        %v2452 = vadd.f32 %v2450, %v2451
        %v2453 = vrot.slane %v2452, 2
        %v2454 = vadd.f32 %v2452, %v2453
        %v2455 = vrot.slane %v2454, 1
        %v2456 = vadd.f32 %v2454, %v2455
        %v2457 = vsel %vm2286, %v1934, 0.0
        %v2458 = vsel %vm2286, %v1943, 0.0
        %v2459 = vadd.f32 %v2457, %v2458
        %v2460 = vsel %vm2286, %v1952, 0.0
        %v2461 = vadd.f32 %v2459, %v2460
        %v2462 = vsel %vm2286, %v1961, 0.0
        %v2463 = vadd.f32 %v2461, %v2462
        %v2464 = vrot.slane %v2463, 4
        %v2465 = vadd.f32 %v2463, %v2464
        %v2466 = vrot.slane %v2465, 2
        %v2467 = vadd.f32 %v2465, %v2466
        %v2468 = vrot.slane %v2467, 1
        %v2469 = vadd.f32 %v2467, %v2468
        %v2470 = vadd.f32 %v1962, %v1971
        %v2471 = vadd.f32 %v2470, %v1980
        %v2472 = vadd.f32 %v2471, %v1989
        %v2473 = vrot.slane %v2472, 4
        %v2474 = vadd.f32 %v2472, %v2473
        %v2475 = vrot.slane %v2474, 2
        %v2476 = vadd.f32 %v2474, %v2475
        %v2477 = vrot.slane %v2476, 1
        %v2478 = vadd.f32 %v2476, %v2477
        %v2479 = vadd.f32 %v1963, %v1972
        %v2480 = vadd.f32 %v2479, %v1981
        %v2481 = vadd.f32 %v2480, %v1990
        %v2482 = vrot.slane %v2481, 4
        %v2483 = vadd.f32 %v2481, %v2482
        %v2484 = vrot.slane %v2483, 2
        %v2485 = vadd.f32 %v2483, %v2484
        %v2486 = vrot.slane %v2485, 1
        %v2487 = vadd.f32 %v2485, %v2486
        %v2488 = vadd.f32 %v1964, %v1973
        %v2489 = vadd.f32 %v2488, %v1982
        %v2490 = vadd.f32 %v2489, %v1991
        %v2491 = vrot.slane %v2490, 4
        %v2492 = vadd.f32 %v2490, %v2491
        %v2493 = vrot.slane %v2492, 2
        %v2494 = vadd.f32 %v2492, %v2493
        %v2495 = vrot.slane %v2494, 1
        %v2496 = vadd.f32 %v2494, %v2495
        %v2497 = vadd.f32 %v1965, %v1974
        %v2498 = vadd.f32 %v2497, %v1983
        %v2499 = vadd.f32 %v2498, %v1992
        %v2500 = vrot.slane %v2499, 4
        %v2501 = vadd.f32 %v2499, %v2500
        %v2502 = vrot.slane %v2501, 2
        %v2503 = vadd.f32 %v2501, %v2502
        %v2504 = vrot.slane %v2503, 1
        %v2505 = vadd.f32 %v2503, %v2504
        %v2506 = vadd.f32 %v1966, %v1975
        %v2507 = vadd.f32 %v2506, %v1984
        %v2508 = vadd.f32 %v2507, %v1993
        %v2509 = vrot.slane %v2508, 4
        %v2510 = vadd.f32 %v2508, %v2509
        %v2511 = vrot.slane %v2510, 2
        %v2512 = vadd.f32 %v2510, %v2511
        %v2513 = vrot.slane %v2512, 1
        %v2514 = vadd.f32 %v2512, %v2513
        %v2515 = vadd.f32 %v1967, %v1976
        %v2516 = vadd.f32 %v2515, %v1985
        %v2517 = vadd.f32 %v2516, %v1994
        %v2518 = vrot.slane %v2517, 4
        %v2519 = vadd.f32 %v2517, %v2518
        %v2520 = vrot.slane %v2519, 2
        %v2521 = vadd.f32 %v2519, %v2520
        %v2522 = vrot.slane %v2521, 1
        %v2523 = vadd.f32 %v2521, %v2522
        %v2524 = vadd.f32 %v1968, %v1977
        %v2525 = vadd.f32 %v2524, %v1986
        %v2526 = vadd.f32 %v2525, %v1995
        %v2527 = vrot.slane %v2526, 4
        %v2528 = vadd.f32 %v2526, %v2527
        %v2529 = vrot.slane %v2528, 2
        %v2530 = vadd.f32 %v2528, %v2529
        %v2531 = vrot.slane %v2530, 1
        %v2532 = vadd.f32 %v2530, %v2531
        %v2533 = vadd.f32 %v1969, %v1978
        %v2534 = vadd.f32 %v2533, %v1987
        %v2535 = vadd.f32 %v2534, %v1996
        %v2536 = vrot.slane %v2535, 4
        %v2537 = vadd.f32 %v2535, %v2536
        %v2538 = vrot.slane %v2537, 2
        %v2539 = vadd.f32 %v2537, %v2538
        %v2540 = vrot.slane %v2539, 1
        %v2541 = vadd.f32 %v2539, %v2540
        %v2542 = vsel %vm2286, %v1970, 0.0
        %v2543 = vsel %vm2286, %v1979, 0.0
        %v2544 = vadd.f32 %v2542, %v2543
        %v2545 = vsel %vm2286, %v1988, 0.0
        %v2546 = vadd.f32 %v2544, %v2545
        %v2547 = vsel %vm2286, %v1997, 0.0
        %v2548 = vadd.f32 %v2546, %v2547
        %v2549 = vrot.slane %v2548, 4
        %v2550 = vadd.f32 %v2548, %v2549
        %v2551 = vrot.slane %v2550, 2
        %v2552 = vadd.f32 %v2550, %v2551
        %v2553 = vrot.slane %v2552, 1
        %v2554 = vadd.f32 %v2552, %v2553
        %v2555 = vadd.f32 %v1998, %v2007
        %v2556 = vadd.f32 %v2555, %v2016
        %v2557 = vadd.f32 %v2556, %v2025
        %v2558 = vrot.slane %v2557, 4
        %v2559 = vadd.f32 %v2557, %v2558
        %v2560 = vrot.slane %v2559, 2
        %v2561 = vadd.f32 %v2559, %v2560
        %v2562 = vrot.slane %v2561, 1
        %v2563 = vadd.f32 %v2561, %v2562
        %v2564 = vadd.f32 %v1999, %v2008
        %v2565 = vadd.f32 %v2564, %v2017
        %v2566 = vadd.f32 %v2565, %v2026
        %v2567 = vrot.slane %v2566, 4
        %v2568 = vadd.f32 %v2566, %v2567
        %v2569 = vrot.slane %v2568, 2
        %v2570 = vadd.f32 %v2568, %v2569
        %v2571 = vrot.slane %v2570, 1
        %v2572 = vadd.f32 %v2570, %v2571
        %v2573 = vadd.f32 %v2000, %v2009
        %v2574 = vadd.f32 %v2573, %v2018
        %v2575 = vadd.f32 %v2574, %v2027
        %v2576 = vrot.slane %v2575, 4
        %v2577 = vadd.f32 %v2575, %v2576
        %v2578 = vrot.slane %v2577, 2
        %v2579 = vadd.f32 %v2577, %v2578
        %v2580 = vrot.slane %v2579, 1
        %v2581 = vadd.f32 %v2579, %v2580
        %v2582 = vadd.f32 %v2001, %v2010
        %v2583 = vadd.f32 %v2582, %v2019
        %v2584 = vadd.f32 %v2583, %v2028
        %v2585 = vrot.slane %v2584, 4
        %v2586 = vadd.f32 %v2584, %v2585
        %v2587 = vrot.slane %v2586, 2
        %v2588 = vadd.f32 %v2586, %v2587
        %v2589 = vrot.slane %v2588, 1
        %v2590 = vadd.f32 %v2588, %v2589
        %v2591 = vadd.f32 %v2002, %v2011
        %v2592 = vadd.f32 %v2591, %v2020
        %v2593 = vadd.f32 %v2592, %v2029
        %v2594 = vrot.slane %v2593, 4
        %v2595 = vadd.f32 %v2593, %v2594
        %v2596 = vrot.slane %v2595, 2
        %v2597 = vadd.f32 %v2595, %v2596
        %v2598 = vrot.slane %v2597, 1
        %v2599 = vadd.f32 %v2597, %v2598
        %v2600 = vadd.f32 %v2003, %v2012
        %v2601 = vadd.f32 %v2600, %v2021
        %v2602 = vadd.f32 %v2601, %v2030
        %v2603 = vrot.slane %v2602, 4
        %v2604 = vadd.f32 %v2602, %v2603
        %v2605 = vrot.slane %v2604, 2
        %v2606 = vadd.f32 %v2604, %v2605
        %v2607 = vrot.slane %v2606, 1
        %v2608 = vadd.f32 %v2606, %v2607
        %v2609 = vadd.f32 %v2004, %v2013
        %v2610 = vadd.f32 %v2609, %v2022
        %v2611 = vadd.f32 %v2610, %v2031
        %v2612 = vrot.slane %v2611, 4
        %v2613 = vadd.f32 %v2611, %v2612
        %v2614 = vrot.slane %v2613, 2
        %v2615 = vadd.f32 %v2613, %v2614
        %v2616 = vrot.slane %v2615, 1
        %v2617 = vadd.f32 %v2615, %v2616
        %v2618 = vadd.f32 %v2005, %v2014
        %v2619 = vadd.f32 %v2618, %v2023
        %v2620 = vadd.f32 %v2619, %v2032
        %v2621 = vrot.slane %v2620, 4
        %v2622 = vadd.f32 %v2620, %v2621
        %v2623 = vrot.slane %v2622, 2
        %v2624 = vadd.f32 %v2622, %v2623
        %v2625 = vrot.slane %v2624, 1
        %v2626 = vadd.f32 %v2624, %v2625
        %v2627 = vsel %vm2286, %v2006, 0.0
        %v2628 = vsel %vm2286, %v2015, 0.0
        %v2629 = vadd.f32 %v2627, %v2628
        %v2630 = vsel %vm2286, %v2024, 0.0
        %v2631 = vadd.f32 %v2629, %v2630
        %v2632 = vsel %vm2286, %v2033, 0.0
        %v2633 = vadd.f32 %v2631, %v2632
        %v2634 = vrot.slane %v2633, 4
        %v2635 = vadd.f32 %v2633, %v2634
        %v2636 = vrot.slane %v2635, 2
        %v2637 = vadd.f32 %v2635, %v2636
        %v2638 = vrot.slane %v2637, 1
        %v2639 = vadd.f32 %v2637, %v2638
        %v2640 = vadd.f32 %v2034, %v2043
        %v2641 = vadd.f32 %v2640, %v2052
        %v2642 = vadd.f32 %v2641, %v2061
        %v2643 = vrot.slane %v2642, 4
        %v2644 = vadd.f32 %v2642, %v2643
        %v2645 = vrot.slane %v2644, 2
        %v2646 = vadd.f32 %v2644, %v2645
        %v2647 = vrot.slane %v2646, 1
        %v2648 = vadd.f32 %v2646, %v2647
        %v2649 = vadd.f32 %v2035, %v2044
        %v2650 = vadd.f32 %v2649, %v2053
        %v2651 = vadd.f32 %v2650, %v2062
        %v2652 = vrot.slane %v2651, 4
        %v2653 = vadd.f32 %v2651, %v2652
        %v2654 = vrot.slane %v2653, 2
        %v2655 = vadd.f32 %v2653, %v2654
        %v2656 = vrot.slane %v2655, 1
        %v2657 = vadd.f32 %v2655, %v2656
        %v2658 = vadd.f32 %v2036, %v2045
        %v2659 = vadd.f32 %v2658, %v2054
        %v2660 = vadd.f32 %v2659, %v2063
        %v2661 = vrot.slane %v2660, 4
        %v2662 = vadd.f32 %v2660, %v2661
        %v2663 = vrot.slane %v2662, 2
        %v2664 = vadd.f32 %v2662, %v2663
        %v2665 = vrot.slane %v2664, 1
        %v2666 = vadd.f32 %v2664, %v2665
        %v2667 = vadd.f32 %v2037, %v2046
        %v2668 = vadd.f32 %v2667, %v2055
        %v2669 = vadd.f32 %v2668, %v2064
        %v2670 = vrot.slane %v2669, 4
        %v2671 = vadd.f32 %v2669, %v2670
        %v2672 = vrot.slane %v2671, 2
        %v2673 = vadd.f32 %v2671, %v2672
        %v2674 = vrot.slane %v2673, 1
        %v2675 = vadd.f32 %v2673, %v2674
        %v2676 = vadd.f32 %v2038, %v2047
        %v2677 = vadd.f32 %v2676, %v2056
        %v2678 = vadd.f32 %v2677, %v2065
        %v2679 = vrot.slane %v2678, 4
        %v2680 = vadd.f32 %v2678, %v2679
        %v2681 = vrot.slane %v2680, 2
        %v2682 = vadd.f32 %v2680, %v2681
        %v2683 = vrot.slane %v2682, 1
        %v2684 = vadd.f32 %v2682, %v2683
        %v2685 = vadd.f32 %v2039, %v2048
        %v2686 = vadd.f32 %v2685, %v2057
        %v2687 = vadd.f32 %v2686, %v2066
        %v2688 = vrot.slane %v2687, 4
        %v2689 = vadd.f32 %v2687, %v2688
        %v2690 = vrot.slane %v2689, 2
        %v2691 = vadd.f32 %v2689, %v2690
        %v2692 = vrot.slane %v2691, 1
        %v2693 = vadd.f32 %v2691, %v2692
        %v2694 = vadd.f32 %v2040, %v2049
        %v2695 = vadd.f32 %v2694, %v2058
        %v2696 = vadd.f32 %v2695, %v2067
        %v2697 = vrot.slane %v2696, 4
        %v2698 = vadd.f32 %v2696, %v2697
        %v2699 = vrot.slane %v2698, 2
        %v2700 = vadd.f32 %v2698, %v2699
        %v2701 = vrot.slane %v2700, 1
        %v2702 = vadd.f32 %v2700, %v2701
        %v2703 = vadd.f32 %v2041, %v2050
        %v2704 = vadd.f32 %v2703, %v2059
        %v2705 = vadd.f32 %v2704, %v2068
        %v2706 = vrot.slane %v2705, 4
        %v2707 = vadd.f32 %v2705, %v2706
        %v2708 = vrot.slane %v2707, 2
        %v2709 = vadd.f32 %v2707, %v2708
        %v2710 = vrot.slane %v2709, 1
        %v2711 = vadd.f32 %v2709, %v2710
        %v2712 = vsel %vm2286, %v2042, 0.0
        %v2713 = vsel %vm2286, %v2051, 0.0
        %v2714 = vadd.f32 %v2712, %v2713
        %v2715 = vsel %vm2286, %v2060, 0.0
        %v2716 = vadd.f32 %v2714, %v2715
        %v2717 = vsel %vm2286, %v2069, 0.0
        %v2718 = vadd.f32 %v2716, %v2717
        %v2719 = vrot.slane %v2718, 4
        %v2720 = vadd.f32 %v2718, %v2719
        %v2721 = vrot.slane %v2720, 2
        %v2722 = vadd.f32 %v2720, %v2721
        %v2723 = vrot.slane %v2722, 1
        %v2724 = vadd.f32 %v2722, %v2723
        %v2725 = vadd.f32 %v2070, %v2079
        %v2726 = vadd.f32 %v2725, %v2088
        %v2727 = vadd.f32 %v2726, %v2097
        %v2728 = vrot.slane %v2727, 4
        %v2729 = vadd.f32 %v2727, %v2728
        %v2730 = vrot.slane %v2729, 2
        %v2731 = vadd.f32 %v2729, %v2730
        %v2732 = vrot.slane %v2731, 1
        %v2733 = vadd.f32 %v2731, %v2732
        %v2734 = vadd.f32 %v2071, %v2080
        %v2735 = vadd.f32 %v2734, %v2089
        %v2736 = vadd.f32 %v2735, %v2098
        %v2737 = vrot.slane %v2736, 4
        %v2738 = vadd.f32 %v2736, %v2737
        %v2739 = vrot.slane %v2738, 2
        %v2740 = vadd.f32 %v2738, %v2739
        %v2741 = vrot.slane %v2740, 1
        %v2742 = vadd.f32 %v2740, %v2741
        %v2743 = vadd.f32 %v2072, %v2081
        %v2744 = vadd.f32 %v2743, %v2090
        %v2745 = vadd.f32 %v2744, %v2099
        %v2746 = vrot.slane %v2745, 4
        %v2747 = vadd.f32 %v2745, %v2746
        %v2748 = vrot.slane %v2747, 2
        %v2749 = vadd.f32 %v2747, %v2748
        %v2750 = vrot.slane %v2749, 1
        %v2751 = vadd.f32 %v2749, %v2750
        %v2752 = vadd.f32 %v2073, %v2082
        %v2753 = vadd.f32 %v2752, %v2091
        %v2754 = vadd.f32 %v2753, %v2100
        %v2755 = vrot.slane %v2754, 4
        %v2756 = vadd.f32 %v2754, %v2755
        %v2757 = vrot.slane %v2756, 2
        %v2758 = vadd.f32 %v2756, %v2757
        %v2759 = vrot.slane %v2758, 1
        %v2760 = vadd.f32 %v2758, %v2759
        %v2761 = vadd.f32 %v2074, %v2083
        %v2762 = vadd.f32 %v2761, %v2092
        %v2763 = vadd.f32 %v2762, %v2101
        %v2764 = vrot.slane %v2763, 4
        %v2765 = vadd.f32 %v2763, %v2764
        %v2766 = vrot.slane %v2765, 2
        %v2767 = vadd.f32 %v2765, %v2766
        %v2768 = vrot.slane %v2767, 1
        %v2769 = vadd.f32 %v2767, %v2768
        %v2770 = vadd.f32 %v2075, %v2084
        %v2771 = vadd.f32 %v2770, %v2093
        %v2772 = vadd.f32 %v2771, %v2102
        %v2773 = vrot.slane %v2772, 4
        %v2774 = vadd.f32 %v2772, %v2773
        %v2775 = vrot.slane %v2774, 2
        %v2776 = vadd.f32 %v2774, %v2775
        %v2777 = vrot.slane %v2776, 1
        %v2778 = vadd.f32 %v2776, %v2777
        %v2779 = vadd.f32 %v2076, %v2085
        %v2780 = vadd.f32 %v2779, %v2094
        %v2781 = vadd.f32 %v2780, %v2103
        %v2782 = vrot.slane %v2781, 4
        %v2783 = vadd.f32 %v2781, %v2782
        %v2784 = vrot.slane %v2783, 2
        %v2785 = vadd.f32 %v2783, %v2784
        %v2786 = vrot.slane %v2785, 1
        %v2787 = vadd.f32 %v2785, %v2786
        %v2788 = vadd.f32 %v2077, %v2086
        %v2789 = vadd.f32 %v2788, %v2095
        %v2790 = vadd.f32 %v2789, %v2104
        %v2791 = vrot.slane %v2790, 4
        %v2792 = vadd.f32 %v2790, %v2791
        %v2793 = vrot.slane %v2792, 2
        %v2794 = vadd.f32 %v2792, %v2793
        %v2795 = vrot.slane %v2794, 1
        %v2796 = vadd.f32 %v2794, %v2795
        %v2797 = vsel %vm2286, %v2078, 0.0
        %v2798 = vsel %vm2286, %v2087, 0.0
        %v2799 = vadd.f32 %v2797, %v2798
        %v2800 = vsel %vm2286, %v2096, 0.0
        %v2801 = vadd.f32 %v2799, %v2800
        %v2802 = vsel %vm2286, %v2105, 0.0
        %v2803 = vadd.f32 %v2801, %v2802
        %v2804 = vrot.slane %v2803, 4
        %v2805 = vadd.f32 %v2803, %v2804
        %v2806 = vrot.slane %v2805, 2
        %v2807 = vadd.f32 %v2805, %v2806
        %v2808 = vrot.slane %v2807, 1
        %v2809 = vadd.f32 %v2807, %v2808
        %v2810 = vadd.f32 %v2106, %v2115
        %v2811 = vadd.f32 %v2810, %v2124
        %v2812 = vadd.f32 %v2811, %v2133
        %v2813 = vrot.slane %v2812, 4
        %v2814 = vadd.f32 %v2812, %v2813
        %v2815 = vrot.slane %v2814, 2
        %v2816 = vadd.f32 %v2814, %v2815
        %v2817 = vrot.slane %v2816, 1
        %v2818 = vadd.f32 %v2816, %v2817
        %v2819 = vadd.f32 %v2107, %v2116
        %v2820 = vadd.f32 %v2819, %v2125
        %v2821 = vadd.f32 %v2820, %v2134
        %v2822 = vrot.slane %v2821, 4
        %v2823 = vadd.f32 %v2821, %v2822
        %v2824 = vrot.slane %v2823, 2
        %v2825 = vadd.f32 %v2823, %v2824
        %v2826 = vrot.slane %v2825, 1
        %v2827 = vadd.f32 %v2825, %v2826
        %v2828 = vadd.f32 %v2108, %v2117
        %v2829 = vadd.f32 %v2828, %v2126
        %v2830 = vadd.f32 %v2829, %v2135
        %v2831 = vrot.slane %v2830, 4
        %v2832 = vadd.f32 %v2830, %v2831
        %v2833 = vrot.slane %v2832, 2
        %v2834 = vadd.f32 %v2832, %v2833
        %v2835 = vrot.slane %v2834, 1
        %v2836 = vadd.f32 %v2834, %v2835
        %v2837 = vadd.f32 %v2109, %v2118
        %v2838 = vadd.f32 %v2837, %v2127
        %v2839 = vadd.f32 %v2838, %v2136
        %v2840 = vrot.slane %v2839, 4
        %v2841 = vadd.f32 %v2839, %v2840
        %v2842 = vrot.slane %v2841, 2
        %v2843 = vadd.f32 %v2841, %v2842
        %v2844 = vrot.slane %v2843, 1
        %v2845 = vadd.f32 %v2843, %v2844
        %v2846 = vadd.f32 %v2110, %v2119
        %v2847 = vadd.f32 %v2846, %v2128
        %v2848 = vadd.f32 %v2847, %v2137
        %v2849 = vrot.slane %v2848, 4
        %v2850 = vadd.f32 %v2848, %v2849
        %v2851 = vrot.slane %v2850, 2
        %v2852 = vadd.f32 %v2850, %v2851
        %v2853 = vrot.slane %v2852, 1
        %v2854 = vadd.f32 %v2852, %v2853
        %v2855 = vadd.f32 %v2111, %v2120
        %v2856 = vadd.f32 %v2855, %v2129
        %v2857 = vadd.f32 %v2856, %v2138
        %v2858 = vrot.slane %v2857, 4
        %v2859 = vadd.f32 %v2857, %v2858
        %v2860 = vrot.slane %v2859, 2
        %v2861 = vadd.f32 %v2859, %v2860
        %v2862 = vrot.slane %v2861, 1
        %v2863 = vadd.f32 %v2861, %v2862
        %v2864 = vadd.f32 %v2112, %v2121
        %v2865 = vadd.f32 %v2864, %v2130
        %v2866 = vadd.f32 %v2865, %v2139
        %v2867 = vrot.slane %v2866, 4
        %v2868 = vadd.f32 %v2866, %v2867
        %v2869 = vrot.slane %v2868, 2
        %v2870 = vadd.f32 %v2868, %v2869
        %v2871 = vrot.slane %v2870, 1
        %v2872 = vadd.f32 %v2870, %v2871
        %v2873 = vadd.f32 %v2113, %v2122
        %v2874 = vadd.f32 %v2873, %v2131
        %v2875 = vadd.f32 %v2874, %v2140
        %v2876 = vrot.slane %v2875, 4
        %v2877 = vadd.f32 %v2875, %v2876
        %v2878 = vrot.slane %v2877, 2
        %v2879 = vadd.f32 %v2877, %v2878
        %v2880 = vrot.slane %v2879, 1
        %v2881 = vadd.f32 %v2879, %v2880
        %v2882 = vsel %vm2286, %v2114, 0.0
        %v2883 = vsel %vm2286, %v2123, 0.0
        %v2884 = vadd.f32 %v2882, %v2883
        %v2885 = vsel %vm2286, %v2132, 0.0
        %v2886 = vadd.f32 %v2884, %v2885
        %v2887 = vsel %vm2286, %v2141, 0.0
        %v2888 = vadd.f32 %v2886, %v2887
        %v2889 = vrot.slane %v2888, 4
        %v2890 = vadd.f32 %v2888, %v2889
        %v2891 = vrot.slane %v2890, 2
        %v2892 = vadd.f32 %v2890, %v2891
        %v2893 = vrot.slane %v2892, 1
        %v2894 = vadd.f32 %v2892, %v2893
        %v2895 = vadd.f32 %v2142, %v2151
        %v2896 = vadd.f32 %v2895, %v2160
        %v2897 = vadd.f32 %v2896, %v2169
        %v2898 = vrot.slane %v2897, 4
        %v2899 = vadd.f32 %v2897, %v2898
        %v2900 = vrot.slane %v2899, 2
        %v2901 = vadd.f32 %v2899, %v2900
        %v2902 = vrot.slane %v2901, 1
        %v2903 = vadd.f32 %v2901, %v2902
        %v2904 = vadd.f32 %v2143, %v2152
        %v2905 = vadd.f32 %v2904, %v2161
        %v2906 = vadd.f32 %v2905, %v2170
        %v2907 = vrot.slane %v2906, 4
        %v2908 = vadd.f32 %v2906, %v2907
        %v2909 = vrot.slane %v2908, 2
        %v2910 = vadd.f32 %v2908, %v2909
        %v2911 = vrot.slane %v2910, 1
        %v2912 = vadd.f32 %v2910, %v2911
        %v2913 = vadd.f32 %v2144, %v2153
        %v2914 = vadd.f32 %v2913, %v2162
        %v2915 = vadd.f32 %v2914, %v2171
        %v2916 = vrot.slane %v2915, 4
        %v2917 = vadd.f32 %v2915, %v2916
        %v2918 = vrot.slane %v2917, 2
        %v2919 = vadd.f32 %v2917, %v2918
        %v2920 = vrot.slane %v2919, 1
        %v2921 = vadd.f32 %v2919, %v2920
        %v2922 = vadd.f32 %v2145, %v2154
        %v2923 = vadd.f32 %v2922, %v2163
        %v2924 = vadd.f32 %v2923, %v2172
        %v2925 = vrot.slane %v2924, 4
        %v2926 = vadd.f32 %v2924, %v2925
        %v2927 = vrot.slane %v2926, 2
        %v2928 = vadd.f32 %v2926, %v2927
        %v2929 = vrot.slane %v2928, 1
        %v2930 = vadd.f32 %v2928, %v2929
        %v2931 = vadd.f32 %v2146, %v2155
        %v2932 = vadd.f32 %v2931, %v2164
        %v2933 = vadd.f32 %v2932, %v2173
        %v2934 = vrot.slane %v2933, 4
        %v2935 = vadd.f32 %v2933, %v2934
        %v2936 = vrot.slane %v2935, 2
        %v2937 = vadd.f32 %v2935, %v2936
        %v2938 = vrot.slane %v2937, 1
        %v2939 = vadd.f32 %v2937, %v2938
        %v2940 = vadd.f32 %v2147, %v2156
        %v2941 = vadd.f32 %v2940, %v2165
        %v2942 = vadd.f32 %v2941, %v2174
        %v2943 = vrot.slane %v2942, 4
        %v2944 = vadd.f32 %v2942, %v2943
        %v2945 = vrot.slane %v2944, 2
        %v2946 = vadd.f32 %v2944, %v2945
        %v2947 = vrot.slane %v2946, 1
        %v2948 = vadd.f32 %v2946, %v2947
        %v2949 = vadd.f32 %v2148, %v2157
        %v2950 = vadd.f32 %v2949, %v2166
        %v2951 = vadd.f32 %v2950, %v2175
        %v2952 = vrot.slane %v2951, 4
        %v2953 = vadd.f32 %v2951, %v2952
        %v2954 = vrot.slane %v2953, 2
        %v2955 = vadd.f32 %v2953, %v2954
        %v2956 = vrot.slane %v2955, 1
        %v2957 = vadd.f32 %v2955, %v2956
        %v2958 = vadd.f32 %v2149, %v2158
        %v2959 = vadd.f32 %v2958, %v2167
        %v2960 = vadd.f32 %v2959, %v2176
        %v2961 = vrot.slane %v2960, 4
        %v2962 = vadd.f32 %v2960, %v2961
        %v2963 = vrot.slane %v2962, 2
        %v2964 = vadd.f32 %v2962, %v2963
        %v2965 = vrot.slane %v2964, 1
        %v2966 = vadd.f32 %v2964, %v2965
        %v2967 = vsel %vm2286, %v2150, 0.0
        %v2968 = vsel %vm2286, %v2159, 0.0
        %v2969 = vadd.f32 %v2967, %v2968
        %v2970 = vsel %vm2286, %v2168, 0.0
        %v2971 = vadd.f32 %v2969, %v2970
        %v2972 = vsel %vm2286, %v2177, 0.0
        %v2973 = vadd.f32 %v2971, %v2972
        %v2974 = vrot.slane %v2973, 4
        %v2975 = vadd.f32 %v2973, %v2974
        %v2976 = vrot.slane %v2975, 2
        %v2977 = vadd.f32 %v2975, %v2976
        %v2978 = vrot.slane %v2977, 1
        %v2979 = vadd.f32 %v2977, %v2978
        %v2980 = vadd.f32 %v2178, %v2187
        %v2981 = vadd.f32 %v2980, %v2196
        %v2982 = vadd.f32 %v2981, %v2205
        %v2983 = vrot.slane %v2982, 4
        %v2984 = vadd.f32 %v2982, %v2983
        %v2985 = vrot.slane %v2984, 2
        %v2986 = vadd.f32 %v2984, %v2985
        %v2987 = vrot.slane %v2986, 1
        %v2988 = vadd.f32 %v2986, %v2987
        %v2989 = vadd.f32 %v2179, %v2188
        %v2990 = vadd.f32 %v2989, %v2197
        %v2991 = vadd.f32 %v2990, %v2206
        %v2992 = vrot.slane %v2991, 4
        %v2993 = vadd.f32 %v2991, %v2992
        %v2994 = vrot.slane %v2993, 2
        %v2995 = vadd.f32 %v2993, %v2994
        %v2996 = vrot.slane %v2995, 1
        %v2997 = vadd.f32 %v2995, %v2996
        %v2998 = vadd.f32 %v2180, %v2189
        %v2999 = vadd.f32 %v2998, %v2198
        %v3000 = vadd.f32 %v2999, %v2207
        %v3001 = vrot.slane %v3000, 4
        %v3002 = vadd.f32 %v3000, %v3001
        %v3003 = vrot.slane %v3002, 2
        %v3004 = vadd.f32 %v3002, %v3003
        %v3005 = vrot.slane %v3004, 1
        %v3006 = vadd.f32 %v3004, %v3005
        %v3007 = vadd.f32 %v2181, %v2190
        %v3008 = vadd.f32 %v3007, %v2199
        %v3009 = vadd.f32 %v3008, %v2208
        %v3010 = vrot.slane %v3009, 4
        %v3011 = vadd.f32 %v3009, %v3010
        %v3012 = vrot.slane %v3011, 2
        %v3013 = vadd.f32 %v3011, %v3012
        %v3014 = vrot.slane %v3013, 1
        %v3015 = vadd.f32 %v3013, %v3014
        %v3016 = vadd.f32 %v2182, %v2191
        %v3017 = vadd.f32 %v3016, %v2200
        %v3018 = vadd.f32 %v3017, %v2209
        %v3019 = vrot.slane %v3018, 4
        %v3020 = vadd.f32 %v3018, %v3019
        %v3021 = vrot.slane %v3020, 2
        %v3022 = vadd.f32 %v3020, %v3021
        %v3023 = vrot.slane %v3022, 1
        %v3024 = vadd.f32 %v3022, %v3023
        %v3025 = vadd.f32 %v2183, %v2192
        %v3026 = vadd.f32 %v3025, %v2201
        %v3027 = vadd.f32 %v3026, %v2210
        %v3028 = vrot.slane %v3027, 4
        %v3029 = vadd.f32 %v3027, %v3028
        %v3030 = vrot.slane %v3029, 2
        %v3031 = vadd.f32 %v3029, %v3030
        %v3032 = vrot.slane %v3031, 1
        %v3033 = vadd.f32 %v3031, %v3032
        %v3034 = vadd.f32 %v2184, %v2193
        %v3035 = vadd.f32 %v3034, %v2202
        %v3036 = vadd.f32 %v3035, %v2211
        %v3037 = vrot.slane %v3036, 4
        %v3038 = vadd.f32 %v3036, %v3037
        %v3039 = vrot.slane %v3038, 2
        %v3040 = vadd.f32 %v3038, %v3039
        %v3041 = vrot.slane %v3040, 1
        %v3042 = vadd.f32 %v3040, %v3041
        %v3043 = vadd.f32 %v2185, %v2194
        %v3044 = vadd.f32 %v3043, %v2203
        %v3045 = vadd.f32 %v3044, %v2212
        %v3046 = vrot.slane %v3045, 4
        %v3047 = vadd.f32 %v3045, %v3046
        %v3048 = vrot.slane %v3047, 2
        %v3049 = vadd.f32 %v3047, %v3048
        %v3050 = vrot.slane %v3049, 1
        %v3051 = vadd.f32 %v3049, %v3050
        %v3052 = vsel %vm2286, %v2186, 0.0
        %v3053 = vsel %vm2286, %v2195, 0.0
        %v3054 = vadd.f32 %v3052, %v3053
        %v3055 = vsel %vm2286, %v2204, 0.0
        %v3056 = vadd.f32 %v3054, %v3055
        %v3057 = vsel %vm2286, %v2213, 0.0
        %v3058 = vadd.f32 %v3056, %v3057
        %v3059 = vrot.slane %v3058, 4
        %v3060 = vadd.f32 %v3058, %v3059
        %v3061 = vrot.slane %v3060, 2
        %v3062 = vadd.f32 %v3060, %v3061
        %v3063 = vrot.slane %v3062, 1
        %v3064 = vadd.f32 %v3062, %v3063
        %vm3155 = vcmask 1041409
        %v3156 = vsel %vm3155, %v2308, %v2222
        %vm3157 = vcmask 1042434
        %v3158 = vsel %vm3157, %v2393, %v3156
        %vm3159 = vcmask 1043459
        %v3160 = vsel %vm3159, %v2478, %v3158
        %vm3161 = vcmask 1044484
        %v3162 = vsel %vm3161, %v2563, %v3160
        %vm3163 = vcmask 1045509
        %v3164 = vsel %vm3163, %v2648, %v3162
        %vm3165 = vcmask 1046534
        %v3166 = vsel %vm3165, %v2733, %v3164
        %vm3167 = vcmask 1047559
        %v3168 = vsel %vm3167, %v2818, %v3166
        %v3169 = vsel %vm3155, %v2317, %v2231
        %v3170 = vsel %vm3157, %v2402, %v3169
        %v3171 = vsel %vm3159, %v2487, %v3170
        %v3172 = vsel %vm3161, %v2572, %v3171
        %v3173 = vsel %vm3163, %v2657, %v3172
        %v3174 = vsel %vm3165, %v2742, %v3173
        %v3175 = vsel %vm3167, %v2827, %v3174
        %v3176 = vsel %vm3155, %v2326, %v2240
        %v3177 = vsel %vm3157, %v2411, %v3176
        %v3178 = vsel %vm3159, %v2496, %v3177
        %v3179 = vsel %vm3161, %v2581, %v3178
        %v3180 = vsel %vm3163, %v2666, %v3179
        %v3181 = vsel %vm3165, %v2751, %v3180
        %v3182 = vsel %vm3167, %v2836, %v3181
        %v3183 = vsel %vm3155, %v2335, %v2249
        %v3184 = vsel %vm3157, %v2420, %v3183
        %v3185 = vsel %vm3159, %v2505, %v3184
        %v3186 = vsel %vm3161, %v2590, %v3185
        %v3187 = vsel %vm3163, %v2675, %v3186
        %v3188 = vsel %vm3165, %v2760, %v3187
        %v3189 = vsel %vm3167, %v2845, %v3188
        %v3190 = vsel %vm3155, %v2344, %v2258
        %v3191 = vsel %vm3157, %v2429, %v3190
        %v3192 = vsel %vm3159, %v2514, %v3191
        %v3193 = vsel %vm3161, %v2599, %v3192
        %v3194 = vsel %vm3163, %v2684, %v3193
        %v3195 = vsel %vm3165, %v2769, %v3194
        %v3196 = vsel %vm3167, %v2854, %v3195
        %v3197 = vsel %vm3155, %v2353, %v2267
        %v3198 = vsel %vm3157, %v2438, %v3197
        %v3199 = vsel %vm3159, %v2523, %v3198
        %v3200 = vsel %vm3161, %v2608, %v3199
        %v3201 = vsel %vm3163, %v2693, %v3200
        %v3202 = vsel %vm3165, %v2778, %v3201
        %v3203 = vsel %vm3167, %v2863, %v3202
        %v3204 = vsel %vm3155, %v2362, %v2276
        %v3205 = vsel %vm3157, %v2447, %v3204
        %v3206 = vsel %vm3159, %v2532, %v3205
        %v3207 = vsel %vm3161, %v2617, %v3206
        %v3208 = vsel %vm3163, %v2702, %v3207
        %v3209 = vsel %vm3165, %v2787, %v3208
        %v3210 = vsel %vm3167, %v2872, %v3209
        %v3211 = vsel %vm3155, %v2371, %v2285
        %v3212 = vsel %vm3157, %v2456, %v3211
        %v3213 = vsel %vm3159, %v2541, %v3212
        %v3214 = vsel %vm3161, %v2626, %v3213
        %v3215 = vsel %vm3163, %v2711, %v3214
        %v3216 = vsel %vm3165, %v2796, %v3215
        %v3217 = vsel %vm3167, %v2881, %v3216
        %v3218 = vsel %vm3155, %v2384, %v2299
        %v3219 = vsel %vm3157, %v2469, %v3218
        %v3220 = vsel %vm3159, %v2554, %v3219
        %v3221 = vsel %vm3161, %v2639, %v3220
        %v3222 = vsel %vm3163, %v2724, %v3221
        %v3223 = vsel %vm3165, %v2809, %v3222
        %v3224 = vsel %vm3167, %v2894, %v3223
        %v3225 = vsel %vm3155, %v2988, %v2903
        %v3226 = vsel %vm3155, %v2997, %v2912
        %v3227 = vsel %vm3155, %v3006, %v2921
        %v3228 = vsel %vm3155, %v3015, %v2930
        %v3229 = vsel %vm3155, %v3024, %v2939
        %v3230 = vsel %vm3155, %v3033, %v2948
        %v3231 = vsel %vm3155, %v3042, %v2957
        %v3232 = vsel %vm3155, %v3051, %v2966
        %v3233 = vsel %vm3155, %v3064, %v2979
        %v3252 = vadd.f32 %v1836, %v3168
        %v3253 = vadd.f32 %v1837, %v3175
        %v3254 = vadd.f32 %v1838, %v3182
        %v3255 = vadd.f32 %v1839, %v3189
        %v3256 = vadd.f32 %v1840, %v3196
        %v3257 = vadd.f32 %v1841, %v3203
        %v3258 = vadd.f32 %v1842, %v3210
        %v3259 = vadd.f32 %v1843, %v3217
        %v3260 = vadd.f32 %v1844, %v3224
        %v3261 = vadd.f32 %v1845, %v3225
        %v3262 = vadd.f32 %v1846, %v3226
        %v3263 = vadd.f32 %v1847, %v3227
        %v3264 = vadd.f32 %v1848, %v3228
        %v3265 = vadd.f32 %v1849, %v3229
        %v3266 = vadd.f32 %v1850, %v3230
        %v3267 = vadd.f32 %v1851, %v3231
        %v3268 = vadd.f32 %v1852, %v3232
        %v3269 = vadd.f32 %v1853, %v3233
        %3270 = vst [vmem:[%s1835] sm:$0xff] %v3252
        %3271 = vst [vmem:[%s1835 + $0x8] sm:$0xff] %v3253
        %3272 = vst [vmem:[%s1835 + $0x10] sm:$0xff] %v3254
        %3273 = vst [vmem:[%s1835 + $0x18] sm:$0xff] %v3255
        %3274 = vst [vmem:[%s1835 + $0x20] sm:$0xff] %v3256
        %3275 = vst [vmem:[%s1835 + $0x28] sm:$0xff] %v3257
        %3276 = vst [vmem:[%s1835 + $0x30] sm:$0xff] %v3258
        %3277 = vst [vmem:[%s1835 + $0x38] sm:$0xff] %v3259
        %3278 = vst.msk [vmem:[%s1835 + $0x40] sm:$0xff] %vm2286, %v3260
        %3279 = vst [vmem:[%s1835 + $0x48] sm:$0x3] %v3261
        %3280 = vst [vmem:[%s1835 + $0x50] sm:$0x3] %v3262
        %3281 = vst [vmem:[%s1835 + $0x58] sm:$0x3] %v3263
        %3282 = vst [vmem:[%s1835 + $0x60] sm:$0x3] %v3264
        %3283 = vst [vmem:[%s1835 + $0x68] sm:$0x3] %v3265
        %3284 = vst [vmem:[%s1835 + $0x70] sm:$0x3] %v3266
        %3285 = vst [vmem:[%s1835 + $0x78] sm:$0x3] %v3267
        %3286 = vst [vmem:[%s1835 + $0x80] sm:$0x3] %v3268
        %vm3287 = vcmask 517120
        %3288 = vst.msk [vmem:[%s1835 + $0x88] sm:$0x3] %vm3287, %v3269
        %v3289 = vld [vmem:[%s1835] sm:$0xff]
        %v3290 = vld [vmem:[%s1835 + $0x8] sm:$0xff]
        %v3291 = vld [vmem:[%s1835 + $0x10] sm:$0xff]
        %v3292 = vld [vmem:[%s1835 + $0x18] sm:$0xff]
        %v3293 = vld [vmem:[%s1835 + $0x20] sm:$0xff]
        %v3294 = vld [vmem:[%s1835 + $0x28] sm:$0xff]
        %v3295 = vld [vmem:[%s1835 + $0x30] sm:$0xff]
        %v3296 = vld [vmem:[%s1835 + $0x38] sm:$0xff]
        %v3297 = vld [vmem:[%s1835 + $0x40] sm:$0xff]
        %v3298 = vld [vmem:[%s1835 + $0x48] sm:$0x3]
        %v3299 = vld [vmem:[%s1835 + $0x50] sm:$0x3]
        %v3300 = vld [vmem:[%s1835 + $0x58] sm:$0x3]
        %v3301 = vld [vmem:[%s1835 + $0x60] sm:$0x3]
        %v3302 = vld [vmem:[%s1835 + $0x68] sm:$0x3]
        %v3303 = vld [vmem:[%s1835 + $0x70] sm:$0x3]
        %v3304 = vld [vmem:[%s1835 + $0x78] sm:$0x3]
        %v3305 = vld [vmem:[%s1835 + $0x80] sm:$0x3]
        %v3306 = vld [vmem:[%s1835 + $0x88] sm:$0x3]
        %v3307 = vadd.f32 %v3289, %v3290
        %v3308 = vadd.f32 %v3307, %v3291
        %v3309 = vadd.f32 %v3308, %v3292
        %v3310 = vadd.f32 %v3309, %v3293
        %v3311 = vadd.f32 %v3310, %v3294
        %v3312 = vadd.f32 %v3311, %v3295
        %v3313 = vadd.f32 %v3312, %v3296
        %v3314 = vsel %vm2286, %v3297, 0.0
        %v3315 = vadd.f32 %v3313, %v3314
        %3316 = vadd.xlane.f32.xlu0 %v3315
        %v3317 = vpop.xlane.xlu0 %3316
        %vm3318 = vcmask 1041408
        %v3319 = vsel %vm3318, %v3298, 0.0
        %v3320 = vsel %vm3318, %v3299, 0.0
        %v3321 = vadd.f32 %v3319, %v3320
        %v3322 = vsel %vm3318, %v3300, 0.0
        %v3323 = vadd.f32 %v3321, %v3322
        %v3324 = vsel %vm3318, %v3301, 0.0
        %v3325 = vadd.f32 %v3323, %v3324
        %v3326 = vsel %vm3318, %v3302, 0.0
        %v3327 = vadd.f32 %v3325, %v3326
        %v3328 = vsel %vm3318, %v3303, 0.0
        %v3329 = vadd.f32 %v3327, %v3328
        %v3330 = vsel %vm3318, %v3304, 0.0
        %v3331 = vadd.f32 %v3329, %v3330
        %v3332 = vsel %vm3318, %v3305, 0.0
        %v3333 = vadd.f32 %v3331, %v3332
        %v3334 = vsel %vm3287, %v3306, 0.0
        %v3335 = vadd.f32 %v3333, %v3334
        %3336 = vadd.xlane.f32.xlu0 %v3335
        %v3337 = vpop.xlane.xlu0 %3336
        %v3338 = vld [vmem:[#allocation7] sm:$0x1]
        %v3340 = vlaneseq
        %v3341 = vshrl.u32 %v3340, 7
        %v3342 = vsub.s32 0, %v3341
        %v3343 = vrot.slane %v3338, %v3342
        %3345 = vbcast.lane.b32.xlu0 %v3343, 256
        %v3346 = vpop.permute.xlu0 %3345
        %s3348 = sor.u32 256, 8
        %3349 = vbcast.lane.b32.xlu0 %v3343, %s3348
        %v3350 = vpop.permute.xlu0 %3349
        %v3353 = vadd.f32 %v3317, %v3346
        %v3354 = vadd.f32 %v3337, %v3350
        %3357 = vset.pattern.permute.xlu0 0
        %3358 = vperm.xlu0 %3357, %v3353
        %v3359 = vpop.permute.xlu0 %3358
        %3360 = vset.pattern.permute.xlu0 0
        %3361 = vperm.xlu0 %3360, %v3354
        %v3362 = vpop.permute.xlu0 %3361
        %v3363 = vlaneseq
        %v3364 = vand.u32 %v3363, 127
        %v3365 = vlaneseq
        %v3366 = vshrl.u32 %v3365, 7
        %v3367 = vsub.s32 %v3364, %v3366
        %v3368 = vrot.slane %v3359, %v3367
        %v3369 = vadd.s32 %v3364, 4294967288
        %v3370 = vlaneseq
        %v3371 = vshrl.u32 %v3370, 7
        %v3372 = vsub.s32 %v3369, %v3371
        %v3373 = vrot.slane %v3362, %v3372
        %vm3374 = vcmask 130112
        %v3375 = vsel %vm3374, %v3373, %v3368
        %vm3377 = vcmask 73728
        %3378 = vst.msk [vmem:[%s296] sm:$0x1] %vm3377, %v3375
        %s3379 = sand.u32 %s141, 1
        %s3380 = scalar_lea.sflag [#allocation6], %s3379
        %s3381 = sand.u32 %s141, 1
        %s3382 = scalar_lea.vmem [#allocation9], %s3381
        // Predicated region
        $region49: #{simple_model_forward.1} parent=35 // pred_check
          %p3383 = pneg %p151
        $region50: #{simple_model_forward.1} parent=35 // pred_check_branch
          %3385 = sbr.rel (%p3383) target = $region52
        $region51: #{simple_model_forward.1} parent=35 // pred_region
          %s3387 = ssub.s32 16, 16
          %3388 = vsyncadd %s3380, %s3387
          %s3389 = smul.addr %s27, 16
          %s3390 = scalar_lea.hbm %s4, %s3389
          %s3392 = sshll.u32 %s3382, 4
          %s3393 = int_to_ptr.vmem [resolvable:$true] %s3392
          %3395 = dma.vmem_to_hbm [thread:$0]  %s3393, 16, %s3390, %s3380
        $region52: #{simple_model_forward.1} parent=35 // pred_fallthru
          _
      $region36: #{simple_model_forward.1} parent=5 // pred_fallthru
        _
      %p3396 = scmp.le.s32.totalorder 2, %s17
      // Predicated region
      $region53: #{simple_model_forward.1} parent=5 // pred_check
        %p3397 = pneg %p3396
      $region54: #{simple_model_forward.1} parent=5 // pred_check_branch
        %3399 = sbr.rel (%p3397) target = $region56
      $region55: #{simple_model_forward.1} parent=5 // pred_region
        %s3400 = ssub.s32 %s17, 2
        // Predicated region
        $region57: #{simple_model_forward.1} parent=55 // pred_check
          %p3401 = pneg %p157
        $region58: #{simple_model_forward.1} parent=55 // pred_check_branch
          %3403 = sbr.rel (%p3401) target = $region60
        $region59: #{simple_model_forward.1} parent=55 // pred_region
          %s3404 = sand.u32 %s142, 1
          %s3405 = scalar_lea.sflag [#allocation6], %s3404
          %s3406 = sand.u32 %s142, 1
          %s3407 = scalar_lea.vmem [#allocation9], %s3406
          %3408 = dma.done %s3405, 16
        $region60: #{simple_model_forward.1} parent=55 // pred_fallthru
          _
      $region56: #{simple_model_forward.1} parent=5 // pred_fallthru
        _
    $region6: #{simple_model_forward.1} parent=1 // loop_footer
      %s21 = sadd.s32 1, %s17
    $region7: #{simple_model_forward.1} parent=1 // loop_footer_branch
      %16 = sbr.rel target = $region3
    $region8: #{simple_model_forward.1} parent=1 // loop_exit
      _
    %3409 = vsyncpa [#allocation5], 1
    %s3410 = scalar_lea.sflag [#allocation5], 1
    %3411 = vsyncpa %s3410, 1
    %3412 = vsyncpa [#allocation8], 1
    %3413 = vsyncpa [#allocation6], 1
    %s3414 = scalar_lea.sflag [#allocation6], 1
    %3415 = vsyncpa %s3414, 1

</llo_original>
